<compile_context>
chip_gen: v5e
topology: v5e:2x2
jax: 0.10.0
libtpu: 0.0.40
codegen_flags: <defaults>
</compile_context>

<pallas_src>
import functools

import jax
import jax.numpy as jnp
import numpy as np
from jax.experimental import pallas as pl
from jax.experimental.pallas import tpu as pltpu


def _downsample_conv_kernel(x_ref, w_ref, b_ref, o_ref, *scratch, ksize, padding):
    """B_blk images per grid step.

    x_ref   : (B_blk, H2, 2, W2, 2*C_in) bf16  NHWC input reinterpreted so the size-2 axis is dh
                                               of each 2x2 pool window and the last axis is (dw, c).
    w_ref   : (KH*KW*C_in, C_out)        bf16  conv weights, im2col row order (kh, kw, c_in).
    b_ref   : (1, C_out)                 f32   bias.
    o_ref   : (B_blk, H_out*W_out, C_out) f32  lane-dense output slab (NHWC reshape is free in
                                               the wrapper).
    scratch : optional VMEM (B_blk, H2+2P, W2+2P, C_in) padded pooled map
              (omitted on the 1x1 / pad-0 path).
    """
    KH, KW = ksize
    P = padding
    Bb, H2, _, W2, two_c = x_ref.shape
    C_in = two_c // 2
    _, M_img, C_out = o_ref.shape
    H_out = H2 + 2 * P - KH + 1
    W_out = W2 + 2 * P - KW + 1
    M = Bb * M_img

    # ---- fused 2x2 average pool (sum in f32: v5e has no bf16 VPU), bf16 feed to the MXU. ----
    x_h0 = x_ref[:, :, 0, :, :].astype(jnp.float32)           # (Bb, H2, W2, 2*C_in)  rows 2*h2
    x_h1 = x_ref[:, :, 1, :, :].astype(jnp.float32)           # (Bb, H2, W2, 2*C_in)  rows 2*h2+1
    pooled = (x_h0[..., :C_in] + x_h0[..., C_in:]
              + x_h1[..., :C_in] + x_h1[..., C_in:]) * 0.25   # (Bb, H2, W2, C_in) f32
    pooled = pooled.astype(w_ref.dtype)

    if KH == 1 and KW == 1 and P == 0:
        # ResnetBlockDown shortcut (1x1 conv, no padding): no scratch, one matmul.
        acc = jnp.dot(pooled.reshape(M, C_in), w_ref[...],
                      preferred_element_type=jnp.float32)
    else:
        pad_ref = scratch[0]
        Hp, Wp = H2 + 2 * P, W2 + 2 * P
        if P > 0:
            # Zero only the P-wide ring (interior is fully overwritten below).  Done every step
            # (NOT program_id-gated) so it stays correct when the 'parallel' batch axis is split
            # across TensorCores.
            zrow = jnp.zeros((Bb, P, Wp, C_in), pad_ref.dtype)
            pad_ref[:, :P, :, :] = zrow
            pad_ref[:, Hp - P:, :, :] = zrow
            zcol = jnp.zeros((Bb, Hp, P, C_in), pad_ref.dtype)
            pad_ref[:, :, :P, :] = zcol
            pad_ref[:, :, Wp - P:, :] = zcol
        pad_ref[:, P:P + H2, P:P + W2, :] = pooled

        if C_in % 128 == 0:
            # Lane-aligned channels: accumulate one MXU matmul per (kh, kw) tap (K = C_in),
            # avoiding the KH*KW-way im2col concatenate / rematerialization.
            acc = jnp.zeros((M, C_out), jnp.float32)
            for kh in range(KH):
                for kw in range(KW):
                    t = kh * KW + kw
                    tap = pad_ref[:, kh:kh + H_out, kw:kw + W_out, :].reshape(M, C_in)
                    acc = acc + jnp.dot(tap, w_ref[t * C_in:(t + 1) * C_in, :],
                                        preferred_element_type=jnp.float32)
        else:
            # Narrow-channel fallback (e.g. C_in=4): a single concatenated matmul with
            # K = KH*KW*C_in instead of KH*KW nearly-empty matmuls.
            cols = [pad_ref[:, kh:kh + H_out, kw:kw + W_out, :].reshape(M, C_in)
                    for kh in range(KH) for kw in range(KW)]
            acc = jnp.dot(jnp.concatenate(cols, axis=-1), w_ref[...],
                          preferred_element_type=jnp.float32)

    o_ref[...] = (acc + b_ref[...]).reshape(Bb, M_img, C_out).astype(o_ref.dtype)


def _pick_batch_block(batch, per_image_bytes, *, budget_bytes=8 << 20, max_block=8):
    """Largest divisor of `batch` (<= max_block) whose double-buffered blocks fit the budget
    while keeping the grid length >= 2 (so both v7x TensorCores get work)."""
    best = 1
    for cand in range(1, batch + 1):
        if batch % cand or cand > max_block:
            continue
        if batch >= 2 and batch // cand < 2:
            continue
        if 2 * cand * per_image_bytes > budget_bytes:
            continue
        best = cand
    return best


def downsample_conv2d_nhwc(x_nhwc, w_oihw, bias, *, padding=1, compute_dtype=jnp.bfloat16):
    """avgpool2x2 + conv2d (stride 1) on NHWC input.  Returns NHWC f32 output."""
    B, H, W, C_in = x_nhwc.shape
    C_out, c_in_w, KH, KW = w_oihw.shape
    assert c_in_w == C_in
    assert H % 2 == 0 and W % 2 == 0
    H2, W2 = H // 2, W // 2
    P = padding
    H_out = H2 + 2 * P - KH + 1
    W_out = W2 + 2 * P - KW + 1
    M_img = H_out * W_out
    use_pad = not (KH == 1 and KW == 1 and P == 0)
    itemsize = jnp.dtype(compute_dtype).itemsize

    # Free reinterpretation: (B, H, W, C) -> (B, H2, 2, W2, 2*C); last axis is (dw, c).
    x5 = x_nhwc.astype(compute_dtype).reshape(B, H2, 2, W2, 2 * C_in)
    # OIHW -> HWIO -> (KH*KW*C_in, C_out), matching the kernel's (kh, kw, c_in) row order.
    w2d = jnp.transpose(w_oihw.astype(compute_dtype), (2, 3, 1, 0)).reshape(KH * KW * C_in, C_out)
    b2 = bias.astype(jnp.float32).reshape(1, C_out)

    # ---- batch blocking: VMEM estimates use lane-padded (>=128) channel widths. ----
    cinp, coutp = max(C_in, 128), max(C_out, 128)
    in_img = H2 * 2 * W2 * max(2 * C_in, 128) * itemsize
    out_img = M_img * coutp * 4
    pad_img = ((H2 + 2 * P) * (W2 + 2 * P) * cinp * itemsize) if use_pad else 0
    B_blk = _pick_batch_block(B, in_img + out_img + pad_img)
    grid = (B // B_blk,)

    w_bytes = KH * KW * cinp * coutp * itemsize + coutp * 4
    est = 2 * B_blk * (in_img + out_img) + 2 * w_bytes + B_blk * pad_img
    vmem_limit = int(min(48 << 20, max(16 << 20, 2 * est)))

    scratch = ([pltpu.VMEM((B_blk, H2 + 2 * P, W2 + 2 * P, C_in), compute_dtype)]
               if use_pad else [])
    kernel = functools.partial(_downsample_conv_kernel, ksize=(KH, KW), padding=P)

    out3 = pl.pallas_call(
        kernel,
        out_shape=jax.ShapeDtypeStruct((B, M_img, C_out), jnp.float32),
        grid_spec=pltpu.PrefetchScalarGridSpec(
            num_scalar_prefetch=0,
            grid=grid,
            in_specs=[
                pl.BlockSpec((B_blk, H2, 2, W2, 2 * C_in), lambda b: (b, 0, 0, 0, 0)),
                pl.BlockSpec((KH * KW * C_in, C_out), lambda b: (0, 0)),   # resident weights
                pl.BlockSpec((1, C_out), lambda b: (0, 0)),                # resident bias
            ],
            out_specs=pl.BlockSpec((B_blk, M_img, C_out), lambda b: (b, 0, 0)),
            scratch_shapes=scratch,
        ),
        compiler_params=pltpu.CompilerParams(
            dimension_semantics=("parallel",),
            vmem_limit_bytes=vmem_limit),
    )(x5, w2d, b2)
    # Free reshape to NHWC (kernel stored a lane-dense (B_blk, H_out*W_out, C_out) slab).
    return out3.reshape(B, H_out, W_out, C_out)


def downsample_conv2d(x_nchw, w_oihw, bias, *, padding=1, compute_dtype=jnp.bfloat16):
    """Downsample_Conv2d forward with the PyTorch NCHW interface."""
    # Cast to the compute dtype BEFORE the layout transpose so the HBM relayout moves half the
    # bytes.  Output stays f32 (matches the f32 accumulator / PyTorch semantics).
    # TODO(synk): in the full D/ResnetBlockDown network, keep activations NHWC end-to-end so
    # these two boundary transposes disappear entirely.
    x_nhwc = jnp.transpose(x_nchw.astype(compute_dtype), (0, 2, 3, 1))
    out_nhwc = downsample_conv2d_nhwc(x_nhwc, w_oihw, bias, padding=padding,
                                      compute_dtype=compute_dtype)
    return jnp.transpose(out_nhwc, (0, 3, 1, 2))


def _reference(x_nchw, w_oihw, bias, *, padding=1):
    """Pure-JAX f32 reference: avgpool2x2 then conv2d, NCHW (PyTorch semantics)."""
    x = x_nchw.astype(jnp.float32)
    pooled = jax.lax.reduce_window(
        x, 0.0, jax.lax.add, (1, 1, 2, 2), (1, 1, 2, 2), 'VALID') / 4.0
    out = jax.lax.conv_general_dilated(
        pooled, w_oihw.astype(jnp.float32),
        window_strides=(1, 1), padding=((padding, padding), (padding, padding)),
        dimension_numbers=('NCHW', 'OIHW', 'NCHW'),
        precision=jax.lax.Precision.HIGHEST)
    return out + bias.astype(jnp.float32).reshape(1, -1, 1, 1)


def _run_case(B, C_in, C_out, H, W, K, P, key):
    kx, kw, kb = jax.random.split(key, 3)
    x = jax.random.normal(kx, (B, C_in, H, W), dtype=jnp.float32)
    w = jax.random.normal(kw, (C_out, C_in, K, K), dtype=jnp.float32) * 0.05
    b = jax.random.normal(kb, (C_out,), dtype=jnp.float32) * 0.1
    out = jax.block_until_ready(downsample_conv2d(x, w, b, padding=P))
    ref = jax.block_until_ready(_reference(x, w, b, padding=P))
    assert out.shape == ref.shape, (out.shape, ref.shape)
    # The kernel feeds bf16 activations/weights (f32 accumulation); tolerance is sized for bf16
    # input quantization against the pure-f32 reference — still far below any layout-bug error.
    np.testing.assert_allclose(np.asarray(out), np.asarray(ref), atol=2e-2, rtol=2e-2)


if __name__ == "__main__":
    keys = jax.random.split(jax.random.PRNGKey(0), 3)
    # Module-realistic channels (ResnetBlockDown n_filters=128, CIFAR-scale spatial) with a batch
    # big enough to exercise batch blocking (B_blk=4 -> grid of 2, M=256 rows per matmul).
    _run_case(B=8, C_in=128, C_out=128, H=16, W=16, K=3, P=1, key=keys[0])
    # Narrow-channel fallback path (toy shape, single concatenated-K matmul).
    _run_case(B=2, C_in=4, C_out=8, H=16, W=16, K=3, P=1, key=keys[1])
    # Shortcut branch of ResnetBlockDown: Downsample_Conv2d(kernel_size=(1,1), padding=0).
    _run_case(B=2, C_in=128, C_out=256, H=16, W=16, K=1, P=0, key=keys[2])
    print("KERNEL_OK")
</pallas_src>

<mosaic_0001>
module attributes {stable_mosaic.version = 11 : i64} {
  func.func @_downsample_conv_kernel(%arg0: i32, %arg1: memref<4x8x2x8x256xbf16, #tpu.memory_space<vmem>>, %arg2: memref<1152x128xbf16, #tpu.memory_space<vmem>>, %arg3: memref<1x128xf32, #tpu.memory_space<vmem>>, %arg4: memref<4x64x128xf32, #tpu.memory_space<vmem>>, %arg5: memref<4x10x10x128xbf16, #tpu.memory_space<vmem>>) attributes {dimension_semantics = [#tpu.dimension_semantics<parallel>], iteration_bounds = array<i64: 2>, scalar_prefetch = 0 : i64, scratch_operands = 1 : i64, tpu.core_type = #tpu.core_type<tc>, window_params = [{transform_indices = @transform_0, window_bounds = array<i64: 4, 8, 2, 8, 256>}, {pipeline_mode = #tpu.pipeline_mode<synchronous>, transform_indices = @transform_1, window_bounds = array<i64: 1152, 128>}, {pipeline_mode = #tpu.pipeline_mode<synchronous>, transform_indices = @transform_2, window_bounds = array<i64: 1, 128>}, {transform_indices = @transform_3, window_bounds = array<i64: 4, 64, 128>}]} {
    %c0 = arith.constant 0 : index
    %c0_0 = arith.constant 0 : index
    %c0_1 = arith.constant 0 : index
    %c0_2 = arith.constant 0 : index
    %c0_3 = arith.constant 0 : index
    %0 = vector.load %arg1[%c0, %c0_0, %c0_1, %c0_2, %c0_3] : memref<4x8x2x8x256xbf16, #tpu.memory_space<vmem>>, vector<4x8x1x8x256xbf16>
    %1 = vector.shape_cast %0 : vector<4x8x1x8x256xbf16> to vector<4x8x8x256xbf16>
    %2 = arith.extf %1 : vector<4x8x8x256xbf16> to vector<4x8x8x256xf32>
    %c0_4 = arith.constant 0 : index
    %c0_5 = arith.constant 0 : index
    %c1 = arith.constant 1 : index
    %c0_6 = arith.constant 0 : index
    %c0_7 = arith.constant 0 : index
    %3 = vector.load %arg1[%c0_4, %c0_5, %c1, %c0_6, %c0_7] : memref<4x8x2x8x256xbf16, #tpu.memory_space<vmem>>, vector<4x8x1x8x256xbf16>
    %4 = vector.shape_cast %3 : vector<4x8x1x8x256xbf16> to vector<4x8x8x256xbf16>
    %5 = arith.extf %4 : vector<4x8x8x256xbf16> to vector<4x8x8x256xf32>
    %6 = vector.extract_strided_slice %2 {offsets = [0, 0, 0, 0], sizes = [4, 8, 8, 128], strides = [1, 1, 1, 1]} : vector<4x8x8x256xf32> to vector<4x8x8x128xf32>
    %7 = vector.extract_strided_slice %2 {offsets = [0, 0, 0, 128], sizes = [4, 8, 8, 128], strides = [1, 1, 1, 1]} : vector<4x8x8x256xf32> to vector<4x8x8x128xf32>
    %8 = arith.addf %6, %7 : vector<4x8x8x128xf32>
    %9 = vector.extract_strided_slice %5 {offsets = [0, 0, 0, 0], sizes = [4, 8, 8, 128], strides = [1, 1, 1, 1]} : vector<4x8x8x256xf32> to vector<4x8x8x128xf32>
    %10 = arith.addf %8, %9 : vector<4x8x8x128xf32>
    %11 = vector.extract_strided_slice %5 {offsets = [0, 0, 0, 128], sizes = [4, 8, 8, 128], strides = [1, 1, 1, 1]} : vector<4x8x8x256xf32> to vector<4x8x8x128xf32>
    %12 = arith.addf %10, %11 : vector<4x8x8x128xf32>
    %cst = arith.constant 2.500000e-01 : f32
    %13 = vector.broadcast %cst : f32 to vector<4x8x8x128xf32>
    %14 = arith.mulf %12, %13 : vector<4x8x8x128xf32>
    %15 = arith.truncf %14 : vector<4x8x8x128xf32> to vector<4x8x8x128xbf16>
    %cst_8 = arith.constant 0.000000e+00 : bf16
    %16 = vector.broadcast %cst_8 : bf16 to vector<4x1x10x128xbf16>
    %c0_9 = arith.constant 0 : index
    %c0_10 = arith.constant 0 : index
    %c0_11 = arith.constant 0 : index
    %c0_12 = arith.constant 0 : index
    %17 = vector.load %arg5[%c0_9, %c0_10, %c0_11, %c0_12] : memref<4x10x10x128xbf16, #tpu.memory_space<vmem>>, vector<4x1x10x128xbf16>
    tpu.vector_store %arg5[%c0_9, %c0_10, %c0_11, %c0_12], %16 {strides = array<i32>} : memref<4x10x10x128xbf16, #tpu.memory_space<vmem>>, vector<4x1x10x128xbf16>,
    %c0_13 = arith.constant 0 : index
    %c9 = arith.constant 9 : index
    %c0_14 = arith.constant 0 : index
    %c0_15 = arith.constant 0 : index
    %18 = vector.load %arg5[%c0_13, %c9, %c0_14, %c0_15] : memref<4x10x10x128xbf16, #tpu.memory_space<vmem>>, vector<4x1x10x128xbf16>
    tpu.vector_store %arg5[%c0_13, %c9, %c0_14, %c0_15], %16 {strides = array<i32>} : memref<4x10x10x128xbf16, #tpu.memory_space<vmem>>, vector<4x1x10x128xbf16>,
    %cst_16 = arith.constant 0.000000e+00 : bf16
    %19 = vector.broadcast %cst_16 : bf16 to vector<4x10x1x128xbf16>
    %c0_17 = arith.constant 0 : index
    %c0_18 = arith.constant 0 : index
    %c0_19 = arith.constant 0 : index
    %c0_20 = arith.constant 0 : index
    %20 = vector.load %arg5[%c0_17, %c0_18, %c0_19, %c0_20] : memref<4x10x10x128xbf16, #tpu.memory_space<vmem>>, vector<4x10x1x128xbf16>
    tpu.vector_store %arg5[%c0_17, %c0_18, %c0_19, %c0_20], %19 {strides = array<i32>} : memref<4x10x10x128xbf16, #tpu.memory_space<vmem>>, vector<4x10x1x128xbf16>,
    %c0_21 = arith.constant 0 : index
    %c0_22 = arith.constant 0 : index
    %c9_23 = arith.constant 9 : index
    %c0_24 = arith.constant 0 : index
    %21 = vector.load %arg5[%c0_21, %c0_22, %c9_23, %c0_24] : memref<4x10x10x128xbf16, #tpu.memory_space<vmem>>, vector<4x10x1x128xbf16>
    tpu.vector_store %arg5[%c0_21, %c0_22, %c9_23, %c0_24], %19 {strides = array<i32>} : memref<4x10x10x128xbf16, #tpu.memory_space<vmem>>, vector<4x10x1x128xbf16>,
    %c0_25 = arith.constant 0 : index
    %c1_26 = arith.constant 1 : index
    %c1_27 = arith.constant 1 : index
    %c0_28 = arith.constant 0 : index
    %22 = vector.load %arg5[%c0_25, %c1_26, %c1_27, %c0_28] : memref<4x10x10x128xbf16, #tpu.memory_space<vmem>>, vector<4x8x8x128xbf16>
    tpu.vector_store %arg5[%c0_25, %c1_26, %c1_27, %c0_28], %15 {strides = array<i32>} : memref<4x10x10x128xbf16, #tpu.memory_space<vmem>>, vector<4x8x8x128xbf16>,
    %cst_29 = arith.constant 0.000000e+00 : f32
    %23 = vector.broadcast %cst_29 : f32 to vector<256x128xf32>
    %c0_30 = arith.constant 0 : index
    %c0_31 = arith.constant 0 : index
    %c0_32 = arith.constant 0 : index
    %c0_33 = arith.constant 0 : index
    %24 = vector.load %arg5[%c0_30, %c0_31, %c0_32, %c0_33] : memref<4x10x10x128xbf16, #tpu.memory_space<vmem>>, vector<4x8x8x128xbf16>
    %25 = vector.shape_cast %24 : vector<4x8x8x128xbf16> to vector<256x128xbf16>
    %c0_34 = arith.constant 0 : index
    %c0_35 = arith.constant 0 : index
    %26 = vector.load %arg2[%c0_34, %c0_35] : memref<1152x128xbf16, #tpu.memory_space<vmem>>, vector<128x128xbf16>
    %cst_36 = arith.constant dense<0.000000e+00> : vector<256x128xf32>
    %27 = tpu.matmul %25, %26, %cst_36 {dimension_numbers = #tpu.dot_dimension_numbers<[1], [0], [0], [1], [0, 0, 1, 1], [], []>} : vector<256x128xbf16>, vector<128x128xbf16>, vector<256x128xf32> -> vector<256x128xf32>
    %28 = arith.addf %23, %27 : vector<256x128xf32>
    %c0_37 = arith.constant 0 : index
    %c0_38 = arith.constant 0 : index
    %c1_39 = arith.constant 1 : index
    %c0_40 = arith.constant 0 : index
    %29 = vector.load %arg5[%c0_37, %c0_38, %c1_39, %c0_40] : memref<4x10x10x128xbf16, #tpu.memory_space<vmem>>, vector<4x8x8x128xbf16>
    %30 = vector.shape_cast %29 : vector<4x8x8x128xbf16> to vector<256x128xbf16>
    %c128 = arith.constant 128 : index
    %c0_41 = arith.constant 0 : index
    %31 = vector.load %arg2[%c128, %c0_41] : memref<1152x128xbf16, #tpu.memory_space<vmem>>, vector<128x128xbf16>
    %cst_42 = arith.constant dense<0.000000e+00> : vector<256x128xf32>
    %32 = tpu.matmul %30, %31, %cst_42 {dimension_numbers = #tpu.dot_dimension_numbers<[1], [0], [0], [1], [0, 0, 1, 1], [], []>} : vector<256x128xbf16>, vector<128x128xbf16>, vector<256x128xf32> -> vector<256x128xf32>
    %33 = arith.addf %28, %32 : vector<256x128xf32>
    %c0_43 = arith.constant 0 : index
    %c0_44 = arith.constant 0 : index
    %c2 = arith.constant 2 : index
    %c0_45 = arith.constant 0 : index
    %34 = vector.load %arg5[%c0_43, %c0_44, %c2, %c0_45] : memref<4x10x10x128xbf16, #tpu.memory_space<vmem>>, vector<4x8x8x128xbf16>
    %35 = vector.shape_cast %34 : vector<4x8x8x128xbf16> to vector<256x128xbf16>
    %c256 = arith.constant 256 : index
    %c0_46 = arith.constant 0 : index
    %36 = vector.load %arg2[%c256, %c0_46] : memref<1152x128xbf16, #tpu.memory_space<vmem>>, vector<128x128xbf16>
    %cst_47 = arith.constant dense<0.000000e+00> : vector<256x128xf32>
    %37 = tpu.matmul %35, %36, %cst_47 {dimension_numbers = #tpu.dot_dimension_numbers<[1], [0], [0], [1], [0, 0, 1, 1], [], []>} : vector<256x128xbf16>, vector<128x128xbf16>, vector<256x128xf32> -> vector<256x128xf32>
    %38 = arith.addf %33, %37 : vector<256x128xf32>
    %c0_48 = arith.constant 0 : index
    %c1_49 = arith.constant 1 : index
    %c0_50 = arith.constant 0 : index
    %c0_51 = arith.constant 0 : index
    %39 = vector.load %arg5[%c0_48, %c1_49, %c0_50, %c0_51] : memref<4x10x10x128xbf16, #tpu.memory_space<vmem>>, vector<4x8x8x128xbf16>
    %40 = vector.shape_cast %39 : vector<4x8x8x128xbf16> to vector<256x128xbf16>
    %c384 = arith.constant 384 : index
    %c0_52 = arith.constant 0 : index
    %41 = vector.load %arg2[%c384, %c0_52] : memref<1152x128xbf16, #tpu.memory_space<vmem>>, vector<128x128xbf16>
    %cst_53 = arith.constant dense<0.000000e+00> : vector<256x128xf32>
    %42 = tpu.matmul %40, %41, %cst_53 {dimension_numbers = #tpu.dot_dimension_numbers<[1], [0], [0], [1], [0, 0, 1, 1], [], []>} : vector<256x128xbf16>, vector<128x128xbf16>, vector<256x128xf32> -> vector<256x128xf32>
    %43 = arith.addf %38, %42 : vector<256x128xf32>
    %c0_54 = arith.constant 0 : index
    %c1_55 = arith.constant 1 : index
    %c1_56 = arith.constant 1 : index
    %c0_57 = arith.constant 0 : index
    %44 = vector.load %arg5[%c0_54, %c1_55, %c1_56, %c0_57] : memref<4x10x10x128xbf16, #tpu.memory_space<vmem>>, vector<4x8x8x128xbf16>
    %45 = vector.shape_cast %44 : vector<4x8x8x128xbf16> to vector<256x128xbf16>
    %c512 = arith.constant 512 : index
    %c0_58 = arith.constant 0 : index
    %46 = vector.load %arg2[%c512, %c0_58] : memref<1152x128xbf16, #tpu.memory_space<vmem>>, vector<128x128xbf16>
    %cst_59 = arith.constant dense<0.000000e+00> : vector<256x128xf32>
    %47 = tpu.matmul %45, %46, %cst_59 {dimension_numbers = #tpu.dot_dimension_numbers<[1], [0], [0], [1], [0, 0, 1, 1], [], []>} : vector<256x128xbf16>, vector<128x128xbf16>, vector<256x128xf32> -> vector<256x128xf32>
    %48 = arith.addf %43, %47 : vector<256x128xf32>
    %c0_60 = arith.constant 0 : index
    %c1_61 = arith.constant 1 : index
    %c2_62 = arith.constant 2 : index
    %c0_63 = arith.constant 0 : index
    %49 = vector.load %arg5[%c0_60, %c1_61, %c2_62, %c0_63] : memref<4x10x10x128xbf16, #tpu.memory_space<vmem>>, vector<4x8x8x128xbf16>
    %50 = vector.shape_cast %49 : vector<4x8x8x128xbf16> to vector<256x128xbf16>
    %c640 = arith.constant 640 : index
    %c0_64 = arith.constant 0 : index
    %51 = vector.load %arg2[%c640, %c0_64] : memref<1152x128xbf16, #tpu.memory_space<vmem>>, vector<128x128xbf16>
    %cst_65 = arith.constant dense<0.000000e+00> : vector<256x128xf32>
    %52 = tpu.matmul %50, %51, %cst_65 {dimension_numbers = #tpu.dot_dimension_numbers<[1], [0], [0], [1], [0, 0, 1, 1], [], []>} : vector<256x128xbf16>, vector<128x128xbf16>, vector<256x128xf32> -> vector<256x128xf32>
    %53 = arith.addf %48, %52 : vector<256x128xf32>
    %c0_66 = arith.constant 0 : index
    %c2_67 = arith.constant 2 : index
    %c0_68 = arith.constant 0 : index
    %c0_69 = arith.constant 0 : index
    %54 = vector.load %arg5[%c0_66, %c2_67, %c0_68, %c0_69] : memref<4x10x10x128xbf16, #tpu.memory_space<vmem>>, vector<4x8x8x128xbf16>
    %55 = vector.shape_cast %54 : vector<4x8x8x128xbf16> to vector<256x128xbf16>
    %c768 = arith.constant 768 : index
    %c0_70 = arith.constant 0 : index
    %56 = vector.load %arg2[%c768, %c0_70] : memref<1152x128xbf16, #tpu.memory_space<vmem>>, vector<128x128xbf16>
    %cst_71 = arith.constant dense<0.000000e+00> : vector<256x128xf32>
    %57 = tpu.matmul %55, %56, %cst_71 {dimension_numbers = #tpu.dot_dimension_numbers<[1], [0], [0], [1], [0, 0, 1, 1], [], []>} : vector<256x128xbf16>, vector<128x128xbf16>, vector<256x128xf32> -> vector<256x128xf32>
    %58 = arith.addf %53, %57 : vector<256x128xf32>
    %c0_72 = arith.constant 0 : index
    %c2_73 = arith.constant 2 : index
    %c1_74 = arith.constant 1 : index
    %c0_75 = arith.constant 0 : index
    %59 = vector.load %arg5[%c0_72, %c2_73, %c1_74, %c0_75] : memref<4x10x10x128xbf16, #tpu.memory_space<vmem>>, vector<4x8x8x128xbf16>
    %60 = vector.shape_cast %59 : vector<4x8x8x128xbf16> to vector<256x128xbf16>
    %c896 = arith.constant 896 : index
    %c0_76 = arith.constant 0 : index
    %61 = vector.load %arg2[%c896, %c0_76] : memref<1152x128xbf16, #tpu.memory_space<vmem>>, vector<128x128xbf16>
    %cst_77 = arith.constant dense<0.000000e+00> : vector<256x128xf32>
    %62 = tpu.matmul %60, %61, %cst_77 {dimension_numbers = #tpu.dot_dimension_numbers<[1], [0], [0], [1], [0, 0, 1, 1], [], []>} : vector<256x128xbf16>, vector<128x128xbf16>, vector<256x128xf32> -> vector<256x128xf32>
    %63 = arith.addf %58, %62 : vector<256x128xf32>
    %c0_78 = arith.constant 0 : index
    %c2_79 = arith.constant 2 : index
    %c2_80 = arith.constant 2 : index
    %c0_81 = arith.constant 0 : index
    %64 = vector.load %arg5[%c0_78, %c2_79, %c2_80, %c0_81] : memref<4x10x10x128xbf16, #tpu.memory_space<vmem>>, vector<4x8x8x128xbf16>
    %65 = vector.shape_cast %64 : vector<4x8x8x128xbf16> to vector<256x128xbf16>
    %c1024 = arith.constant 1024 : index
    %c0_82 = arith.constant 0 : index
    %66 = vector.load %arg2[%c1024, %c0_82] : memref<1152x128xbf16, #tpu.memory_space<vmem>>, vector<128x128xbf16>
    %cst_83 = arith.constant dense<0.000000e+00> : vector<256x128xf32>
    %67 = tpu.matmul %65, %66, %cst_83 {dimension_numbers = #tpu.dot_dimension_numbers<[1], [0], [0], [1], [0, 0, 1, 1], [], []>} : vector<256x128xbf16>, vector<128x128xbf16>, vector<256x128xf32> -> vector<256x128xf32>
    %68 = arith.addf %63, %67 : vector<256x128xf32>
    %c0_84 = arith.constant 0 : index
    %c0_85 = arith.constant 0 : index
    %69 = vector.load %arg3[%c0_84, %c0_85] : memref<1x128xf32, #tpu.memory_space<vmem>>, vector<1x128xf32>
    %70 = vector.broadcast %69 : vector<1x128xf32> to vector<256x128xf32>
    %71 = arith.addf %68, %70 : vector<256x128xf32>
    %72 = vector.shape_cast %71 : vector<256x128xf32> to vector<4x64x128xf32>
    %c0_86 = arith.constant 0 : index
    %c0_87 = arith.constant 0 : index
    %c0_88 = arith.constant 0 : index
    %73 = vector.load %arg4[%c0_86, %c0_87, %c0_88] : memref<4x64x128xf32, #tpu.memory_space<vmem>>, vector<4x64x128xf32>
    tpu.vector_store %arg4[%c0_86, %c0_87, %c0_88], %72 {strides = array<i32>} : memref<4x64x128xf32, #tpu.memory_space<vmem>>, vector<4x64x128xf32>,
    return
  }
  func.func @transform_0(%arg0: i32) -> (i32, i32, i32, i32, i32) {
    %c0_i32 = arith.constant 0 : i32
    %c0_i32_0 = arith.constant 0 : i32
    %c0_i32_1 = arith.constant 0 : i32
    %c0_i32_2 = arith.constant 0 : i32
    %c0_i32_3 = arith.constant 0 : i32
    return %arg0, %c0_i32, %c0_i32_0, %c0_i32_1, %c0_i32_2 : i32, i32, i32, i32, i32
  }
  func.func @transform_1(%arg0: i32) -> (i32, i32) {
    %c0_i32 = arith.constant 0 : i32
    %c0_i32_0 = arith.constant 0 : i32
    %c0_i32_1 = arith.constant 0 : i32
    return %c0_i32, %c0_i32_0 : i32, i32
  }
  func.func @transform_2(%arg0: i32) -> (i32, i32) {
    %c0_i32 = arith.constant 0 : i32
    %c0_i32_0 = arith.constant 0 : i32
    %c0_i32_1 = arith.constant 0 : i32
    return %c0_i32, %c0_i32_0 : i32, i32
  }
  func.func @transform_3(%arg0: i32) -> (i32, i32, i32) {
    %c0_i32 = arith.constant 0 : i32
    %c0_i32_0 = arith.constant 0 : i32
    %c0_i32_1 = arith.constant 0 : i32
    return %arg0, %c0_i32, %c0_i32_0 : i32, i32, i32
  }
}

</mosaic_0001>

<llo_original>
// kernel: tpu_custom_call.1
$region0: #{tpu_custom_call.1}
  #allocation0 [shape = 'u32[]', space=smem, size = 0x4, offset = 0x4, fixed_abs, tag = 'smem constant byte address 0x4 - core index']
  #allocation1 [shape = 'u32[72,128]{1,0:T(1,128)}', space=vmem, size = 0x9000, scoped, tag = 'internal scratch']
  #allocation2 [shape = 'bf16[4,10,10,128]{3,2,1,0:T(8,128)(2,1)}', space=vmem, size = 0x28000, scoped, tag = 'scratch operand']
  %s0 = inlined_call_operand.hbm [shape: bf16[8,8,2,8,256], index: 0, kind: input, shape index: {}]
  %s1 = inlined_call_operand.hbm [shape: bf16[1152,128], index: 1, kind: input, shape index: {}]
  %s2 = inlined_call_operand.vmem [shape: f32[1,128], index: 2, kind: input, shape index: {}]
  %s3 = inlined_call_operand.hbm [shape: f32[8,64,128], index: 3, kind: output, shape index: {}]
  %s4 = sld [smem:[#allocation0]]
  $region53: #{tpu_custom_call.1} parent=0
    _
  %s6 = ssub.s32 1, %s4
  %s7 = scalar_select 0, %s6, %s4
  $region1: #{tpu_custom_call.1} parent=0
    #allocation3 [shape = 'u8[524288]{0}', space=vmem, size = 0x80000, scoped, tag = 'input window, operand 0']
    #allocation4 [shape = 's32[2]{0}', space=sflag, size = 0x8, scoped, tag = 'scoped memory for tpu_custom_call.1']
    #allocation5 [shape = 's32[2]{0}', space=sflag, size = 0x8, scoped, tag = 'scoped memory for tpu_custom_call.1']
    #allocation6 [shape = 'u8[294912]{0}', space=vmem, size = 0x48000, scoped, tag = 'input window, operand 1, single buffered']
    #allocation7 [shape = 's32[1]{0}', space=sflag, size = 0x4, scoped, tag = 'scoped memory for tpu_custom_call.1']
    #allocation8 [shape = 'u8[262144]{0}', space=vmem, size = 0x40000, scoped, tag = 'output window, operand 0']
    %8 = vsyncpa [#allocation4], 0
    %s9 = scalar_lea.sflag [#allocation4], 1
    %10 = vsyncpa %s9, 0
    %11 = vsyncpa [#allocation7], 0
    %12 = vsyncpa [#allocation5], 0
    %s13 = scalar_lea.sflag [#allocation5], 1
    %14 = vsyncpa %s13, 0
    loop: start=0, step=1, limit=4
    $region2: #{tpu_custom_call.1} parent=1 // loop_pre_header
      _
    $region3: #{tpu_custom_call.1} parent=1 // loop_header
      %s16 = sphi 0, %s20
      %p17 = scmp.ge.s32.totalorder %s16, 4
      %s26 = sphi 0, %s28
      %s29 = sphi 0, %s26
      %s30 = sphi 0, %s29
      %s46 = sphi 0, %s30
      %s50 = sphi 0, %s50
      %s52 = sphi 0, %s50
      %s53 = sphi 0, %s52
      %s67 = sphi 0, %s53
      %s71 = sphi 0, %s71
      %s73 = sphi 0, %s71
      %s74 = sphi 0, %s73
      %s88 = sphi 0, %s74
      %s94 = sphi 0, %s96
      %s97 = sphi 0, %s94
      %s98 = sphi 0, %s97
      %s114 = sphi 0, %s98
    $region4: #{tpu_custom_call.1} parent=1 // loop_header_branch
      %19 = sbr.rel (%p17) target = $region8
    $region5: #{tpu_custom_call.1} parent=1 // loop_body
      %s21 = ssub.s32 %s16, 1
      %s22 = ssub.s32 %s16, 2
      %s23 = sadd.s32 %s16, 1
      %s24 = ssub.s32 %s16, %s23
      %p25 = scmp.eq.s32.totalorder %s24, 0
      %s27 = sadd.s32 %s26, 1
      %s28 = scalar_select %p25, %s26, %s27
      %p31 = pneg %p25
      %p32 = scmp.eq.s32.totalorder %s16, 1
      %p33 = por %p31, %p32
      %p34 = scmp.ne.s32.totalorder %s26, %s29
      %p35 = scmp.eq.s32.totalorder %s16, 0
      %p36 = por %p34, %p35
      %p37 = scmp.ne.s32.totalorder %s26, %s29
      %p38 = scmp.eq.s32.totalorder %s21, 1
      %p39 = por %p37, %p38
      %p40 = scmp.ne.s32.totalorder %s29, %s30
      %p41 = scmp.eq.s32.totalorder %s21, 0
      %p42 = por %p40, %p41
      %p43 = scmp.ne.s32.totalorder %s29, %s30
      %p44 = scmp.eq.s32.totalorder %s22, 1
      %p45 = por %p43, %p44
      %p47 = scmp.ne.s32.totalorder %s30, %s46
      %p48 = scmp.eq.s32.totalorder %s22, 0
      %p49 = por %p47, %p48
      %s51 = sadd.s32 %s50, 1
      %p54 = scmp.eq.s32.totalorder %s16, 1
      %p55 = scmp.ne.s32.totalorder %s50, %s52
      %p56 = scmp.eq.s32.totalorder %s16, 0
      %p57 = por %p55, %p56
      %p58 = scmp.ne.s32.totalorder %s50, %s52
      %p59 = scmp.eq.s32.totalorder %s21, 1
      %p60 = por %p58, %p59
      %p61 = scmp.ne.s32.totalorder %s52, %s53
      %p62 = scmp.eq.s32.totalorder %s21, 0
      %p63 = por %p61, %p62
      %p64 = scmp.ne.s32.totalorder %s52, %s53
      %p65 = scmp.eq.s32.totalorder %s22, 1
      %p66 = por %p64, %p65
      %p68 = scmp.ne.s32.totalorder %s53, %s67
      %p69 = scmp.eq.s32.totalorder %s22, 0
      %p70 = por %p68, %p69
      %s72 = sadd.s32 %s71, 1
      %p75 = scmp.eq.s32.totalorder %s16, 1
      %p76 = scmp.ne.s32.totalorder %s71, %s73
      %p77 = scmp.eq.s32.totalorder %s16, 0
      %p78 = por %p76, %p77
      %p79 = scmp.ne.s32.totalorder %s71, %s73
      %p80 = scmp.eq.s32.totalorder %s21, 1
      %p81 = por %p79, %p80
      %p82 = scmp.ne.s32.totalorder %s73, %s74
      %p83 = scmp.eq.s32.totalorder %s21, 0
      %p84 = por %p82, %p83
      %p85 = scmp.ne.s32.totalorder %s73, %s74
      %p86 = scmp.eq.s32.totalorder %s22, 1
      %p87 = por %p85, %p86
      %p89 = scmp.ne.s32.totalorder %s74, %s88
      %p90 = scmp.eq.s32.totalorder %s22, 0
      %p91 = por %p89, %p90
      %s92 = ssub.s32 %s16, %s23
      %p93 = scmp.eq.s32.totalorder %s92, 0
      %s95 = sadd.s32 %s94, 1
      %s96 = scalar_select %p93, %s94, %s95
      %p99 = pneg %p93
      %p100 = scmp.eq.s32.totalorder %s16, 1
      %p101 = por %p99, %p100
      %p102 = scmp.ne.s32.totalorder %s94, %s97
      %p103 = scmp.eq.s32.totalorder %s16, 0
      %p104 = por %p102, %p103
      %p105 = scmp.ne.s32.totalorder %s94, %s97
      %p106 = scmp.eq.s32.totalorder %s21, 1
      %p107 = por %p105, %p106
      %p108 = scmp.ne.s32.totalorder %s97, %s98
      %p109 = scmp.eq.s32.totalorder %s21, 0
      %p110 = por %p108, %p109
      %p111 = scmp.ne.s32.totalorder %s97, %s98
      %p112 = scmp.eq.s32.totalorder %s22, 1
      %p113 = por %p111, %p112
      %p115 = scmp.ne.s32.totalorder %s98, %s114
      %p116 = scmp.eq.s32.totalorder %s22, 0
      %p117 = por %p115, %p116
      %p118 = scmp.le.s32.totalorder 1, %s16
      %p119 = scmp.lt.s32.totalorder %s16, 3
      %p120 = pnand %p118, %p119
      %p121 = pneg %p120
      // Predicated region
      $region9: #{tpu_custom_call.1} parent=5 // pred_check
        _
      $region10: #{tpu_custom_call.1} parent=5 // pred_check_branch
        %123 = sbr.rel (%p120) target = $region12
      $region11: #{tpu_custom_call.1} parent=5 // pred_region
        %s124 = ssub.s32 %s16, 1
        // Predicated region
        $region13: #{tpu_custom_call.1} parent=11 // pred_check
          %p125 = pneg %p63
        $region14: #{tpu_custom_call.1} parent=11 // pred_check_branch
          %127 = sbr.rel (%p125) target = $region16
        $region15: #{tpu_custom_call.1} parent=11 // pred_region
          %129 = vsyncadd [#allocation7], 0
          %s130 = sshll.u32 %s1, 4
          %s131 = int_to_ptr.hbm [resolvable:$true] %s130
          %s132 = sshll.u32 [#allocation6], 4
          %s133 = int_to_ptr.vmem [resolvable:$true] %s132
          %138 = dma.hbm_to_vmem [thread:$0]  %s131, 9216, %s133, [#allocation7], 64, 64, 4
        $region16: #{tpu_custom_call.1} parent=11 // pred_fallthru
          _
        // Predicated region
        $region17: #{tpu_custom_call.1} parent=11 // pred_check
          %p139 = pneg %p84
        $region18: #{tpu_custom_call.1} parent=11 // pred_check_branch
          %141 = sbr.rel (%p139) target = $region20
        $region19: #{tpu_custom_call.1} parent=11 // pred_region
          _
        $region20: #{tpu_custom_call.1} parent=11 // pred_fallthru
          _
      $region12: #{tpu_custom_call.1} parent=5 // pred_fallthru
        _
      %p142 = scmp.lt.s32.totalorder %s16, 2
      // Predicated region
      $region21: #{tpu_custom_call.1} parent=5 // pred_check
        %p143 = pneg %p142
      $region22: #{tpu_custom_call.1} parent=5 // pred_check_branch
        %145 = sbr.rel (%p143) target = $region24
      $region23: #{tpu_custom_call.1} parent=5 // pred_region
        // Predicated region
        $region25: #{tpu_custom_call.1} parent=23 // pred_check
          %p146 = pneg %p36
        $region26: #{tpu_custom_call.1} parent=23 // pred_check_branch
          %148 = sbr.rel (%p146) target = $region28
        $region27: #{tpu_custom_call.1} parent=23 // pred_region
          %s149 = sand.u32 %s26, 1
          %s150 = scalar_lea.sflag [#allocation4], %s149
          %s151 = sand.u32 %s26, 1
          %s152 = smul.addr %s151, 512
          %s153 = scalar_lea.vmem [#allocation3], %s152
          %s154 = smul.u32 4, %s16
          %156 = vsyncadd %s150, 0
          %s157 = smul.addr %s154, 32
          %s158 = smul.addr %s157, 4
          %s159 = scalar_lea.hbm %s0, %s158
          %s160 = sshll.u32 %s159, 4
          %s161 = int_to_ptr.hbm [resolvable:$true] %s160
          %s162 = sshll.u32 %s153, 4
          %s163 = int_to_ptr.vmem [resolvable:$true] %s162
          %168 = dma.hbm_to_vmem [thread:$0]  %s161, 8192, %s163, %s150, 128, 128, 8
        $region28: #{tpu_custom_call.1} parent=23 // pred_fallthru
          _
      $region24: #{tpu_custom_call.1} parent=5 // pred_fallthru
        _
      %p169 = scmp.le.s32.totalorder 1, %s16
      %p170 = scmp.lt.s32.totalorder %s16, 3
      %p171 = pnand %p169, %p170
      %p172 = pneg %p171
      // Predicated region
      $region29: #{tpu_custom_call.1} parent=5 // pred_check
        _
      $region30: #{tpu_custom_call.1} parent=5 // pred_check_branch
        %174 = sbr.rel (%p171) target = $region32
      $region31: #{tpu_custom_call.1} parent=5 // pred_region
        %s175 = ssub.s32 %s16, 1
        %s176 = sand.u32 %s29, 1
        %s177 = scalar_lea.sflag [#allocation4], %s176
        %s178 = sand.u32 %s29, 1
        %s179 = smul.addr %s178, 512
        %s180 = scalar_lea.vmem [#allocation3], %s179
        // Predicated region
        $region33: #{tpu_custom_call.1} parent=31 // pred_check
          %p181 = pneg %p42
        $region34: #{tpu_custom_call.1} parent=31 // pred_check_branch
          %183 = sbr.rel (%p181) target = $region36
        $region35: #{tpu_custom_call.1} parent=31 // pred_region
          %185 = dma.done %s177, 8192
        $region36: #{tpu_custom_call.1} parent=31 // pred_fallthru
          _
        // Predicated region
        $region37: #{tpu_custom_call.1} parent=31 // pred_check
          %p186 = pneg %p63
        $region38: #{tpu_custom_call.1} parent=31 // pred_check_branch
          %188 = sbr.rel (%p186) target = $region40
        $region39: #{tpu_custom_call.1} parent=31 // pred_region
          %190 = dma.done [#allocation7], 9216
        $region40: #{tpu_custom_call.1} parent=31 // pred_fallthru
          _
        %s191 = sand.u32 %s29, 1
        %s192 = scalar_lea.sflag [#allocation4], %s191
        %s193 = sand.u32 %s29, 1
        %s194 = smul.addr %s193, 512
        %s195 = scalar_lea.vmem [#allocation3], %s194
        %p196 = pneg %p42
        %p197 = pneg %p39
        %p198 = pneg %p63
        %p199 = pneg %p60
        %p200 = pneg %p84
        %p201 = pneg %p81
        %p202 = pneg %p110
        %p203 = pneg %p107
        %s204 = sand.u32 %s97, 1
        %s205 = scalar_lea.sflag [#allocation5], %s204
        %s206 = sand.u32 %s97, 1
        %s207 = smul.addr %s206, 256
        %s208 = scalar_lea.vmem [#allocation8], %s207
        %s209 = smul.u32 4, %s21
        %s210 = smul.u32 4, %s21
        %v212 = vld [vmem:[%s180] sm:$0xff]
        %v213 = vld [vmem:[%s180 + $0x10] sm:$0xff]
        %v214 = vld [vmem:[%s180 + $0x20] sm:$0xff]
        %v215 = vld [vmem:[%s180 + $0x30] sm:$0xff]
        %v216 = vld [vmem:[%s180 + $0x40] sm:$0xff]
        %v217 = vld [vmem:[%s180 + $0x50] sm:$0xff]
        %v218 = vld [vmem:[%s180 + $0x60] sm:$0xff]
        %v219 = vld [vmem:[%s180 + $0x70] sm:$0xff]
        %v220 = vld [vmem:[%s180 + $0x80] sm:$0xff]
        %v221 = vld [vmem:[%s180 + $0x90] sm:$0xff]
        %v222 = vld [vmem:[%s180 + $0xa0] sm:$0xff]
        %v223 = vld [vmem:[%s180 + $0xb0] sm:$0xff]
        %v224 = vld [vmem:[%s180 + $0xc0] sm:$0xff]
        %v225 = vld [vmem:[%s180 + $0xd0] sm:$0xff]
        %v226 = vld [vmem:[%s180 + $0xe0] sm:$0xff]
        %v227 = vld [vmem:[%s180 + $0xf0] sm:$0xff]
        %v228 = vld [vmem:[%s180 + $0x100] sm:$0xff]
        %v229 = vld [vmem:[%s180 + $0x110] sm:$0xff]
        %v230 = vld [vmem:[%s180 + $0x120] sm:$0xff]
        %v231 = vld [vmem:[%s180 + $0x130] sm:$0xff]
        %v232 = vld [vmem:[%s180 + $0x140] sm:$0xff]
        %v233 = vld [vmem:[%s180 + $0x150] sm:$0xff]
        %v234 = vld [vmem:[%s180 + $0x160] sm:$0xff]
        %v235 = vld [vmem:[%s180 + $0x170] sm:$0xff]
        %v236 = vld [vmem:[%s180 + $0x180] sm:$0xff]
        %v237 = vld [vmem:[%s180 + $0x190] sm:$0xff]
        %v238 = vld [vmem:[%s180 + $0x1a0] sm:$0xff]
        %v239 = vld [vmem:[%s180 + $0x1b0] sm:$0xff]
        %v240 = vld [vmem:[%s180 + $0x1c0] sm:$0xff]
        %v241 = vld [vmem:[%s180 + $0x1d0] sm:$0xff]
        %v242 = vld [vmem:[%s180 + $0x1e0] sm:$0xff]
        %v243 = vld [vmem:[%s180 + $0x1f0] sm:$0xff]
        %v244 = vunpack.c.l.bf16 %v212
        %v245 = vunpack.c.h.bf16 %v212
        %v246 = vunpack.c.l.bf16 %v213
        %v247 = vunpack.c.h.bf16 %v213
        %v248 = vunpack.c.l.bf16 %v214
        %v249 = vunpack.c.h.bf16 %v214
        %v250 = vunpack.c.l.bf16 %v215
        %v251 = vunpack.c.h.bf16 %v215
        %v252 = vunpack.c.l.bf16 %v216
        %v253 = vunpack.c.h.bf16 %v216
        %v254 = vunpack.c.l.bf16 %v217
        %v255 = vunpack.c.h.bf16 %v217
        %v256 = vunpack.c.l.bf16 %v218
        %v257 = vunpack.c.h.bf16 %v218
        %v258 = vunpack.c.l.bf16 %v219
        %v259 = vunpack.c.h.bf16 %v219
        %v260 = vunpack.c.l.bf16 %v220
        %v261 = vunpack.c.h.bf16 %v220
        %v262 = vunpack.c.l.bf16 %v221
        %v263 = vunpack.c.h.bf16 %v221
        %v264 = vunpack.c.l.bf16 %v222
        %v265 = vunpack.c.h.bf16 %v222
        %v266 = vunpack.c.l.bf16 %v223
        %v267 = vunpack.c.h.bf16 %v223
        %v268 = vunpack.c.l.bf16 %v224
        %v269 = vunpack.c.h.bf16 %v224
        %v270 = vunpack.c.l.bf16 %v225
        %v271 = vunpack.c.h.bf16 %v225
        %v272 = vunpack.c.l.bf16 %v226
        %v273 = vunpack.c.h.bf16 %v226
        %v274 = vunpack.c.l.bf16 %v227
        %v275 = vunpack.c.h.bf16 %v227
        %v276 = vunpack.c.l.bf16 %v228
        %v277 = vunpack.c.h.bf16 %v228
        %v278 = vunpack.c.l.bf16 %v229
        %v279 = vunpack.c.h.bf16 %v229
        %v280 = vunpack.c.l.bf16 %v230
        %v281 = vunpack.c.h.bf16 %v230
        %v282 = vunpack.c.l.bf16 %v231
        %v283 = vunpack.c.h.bf16 %v231
        %v284 = vunpack.c.l.bf16 %v232
        %v285 = vunpack.c.h.bf16 %v232
        %v286 = vunpack.c.l.bf16 %v233
        %v287 = vunpack.c.h.bf16 %v233
        %v288 = vunpack.c.l.bf16 %v234
        %v289 = vunpack.c.h.bf16 %v234
        %v290 = vunpack.c.l.bf16 %v235
        %v291 = vunpack.c.h.bf16 %v235
        %v292 = vunpack.c.l.bf16 %v236
        %v293 = vunpack.c.h.bf16 %v236
        %v294 = vunpack.c.l.bf16 %v237
        %v295 = vunpack.c.h.bf16 %v237
        %v296 = vunpack.c.l.bf16 %v238
        %v297 = vunpack.c.h.bf16 %v238
        %v298 = vunpack.c.l.bf16 %v239
        %v299 = vunpack.c.h.bf16 %v239
        %v300 = vunpack.c.l.bf16 %v240
        %v301 = vunpack.c.h.bf16 %v240
        %v302 = vunpack.c.l.bf16 %v241
        %v303 = vunpack.c.h.bf16 %v241
        %v304 = vunpack.c.l.bf16 %v242
        %v305 = vunpack.c.h.bf16 %v242
        %v306 = vunpack.c.l.bf16 %v243
        %v307 = vunpack.c.h.bf16 %v243
        %s308 = scalar_lea.vmem %s180, 8 [#allocation3]
        %v309 = vld [vmem:[%s308] sm:$0xff]
        %v310 = vld [vmem:[%s308 + $0x10] sm:$0xff]
        %v311 = vld [vmem:[%s308 + $0x20] sm:$0xff]
        %v312 = vld [vmem:[%s308 + $0x30] sm:$0xff]
        %v313 = vld [vmem:[%s308 + $0x40] sm:$0xff]
        %v314 = vld [vmem:[%s308 + $0x50] sm:$0xff]
        %v315 = vld [vmem:[%s308 + $0x60] sm:$0xff]
        %v316 = vld [vmem:[%s308 + $0x70] sm:$0xff]
        %v317 = vld [vmem:[%s308 + $0x80] sm:$0xff]
        %v318 = vld [vmem:[%s308 + $0x90] sm:$0xff]
        %v319 = vld [vmem:[%s308 + $0xa0] sm:$0xff]
        %v320 = vld [vmem:[%s308 + $0xb0] sm:$0xff]
        %v321 = vld [vmem:[%s308 + $0xc0] sm:$0xff]
        %v322 = vld [vmem:[%s308 + $0xd0] sm:$0xff]
        %v323 = vld [vmem:[%s308 + $0xe0] sm:$0xff]
        %v324 = vld [vmem:[%s308 + $0xf0] sm:$0xff]
        %v325 = vld [vmem:[%s308 + $0x100] sm:$0xff]
        %v326 = vld [vmem:[%s308 + $0x110] sm:$0xff]
        %v327 = vld [vmem:[%s308 + $0x120] sm:$0xff]
        %v328 = vld [vmem:[%s308 + $0x130] sm:$0xff]
        %v329 = vld [vmem:[%s308 + $0x140] sm:$0xff]
        %v330 = vld [vmem:[%s308 + $0x150] sm:$0xff]
        %v331 = vld [vmem:[%s308 + $0x160] sm:$0xff]
        %v332 = vld [vmem:[%s308 + $0x170] sm:$0xff]
        %v333 = vld [vmem:[%s308 + $0x180] sm:$0xff]
        %v334 = vld [vmem:[%s308 + $0x190] sm:$0xff]
        %v335 = vld [vmem:[%s308 + $0x1a0] sm:$0xff]
        %v336 = vld [vmem:[%s308 + $0x1b0] sm:$0xff]
        %v337 = vld [vmem:[%s308 + $0x1c0] sm:$0xff]
        %v338 = vld [vmem:[%s308 + $0x1d0] sm:$0xff]
        %v339 = vld [vmem:[%s308 + $0x1e0] sm:$0xff]
        %v340 = vld [vmem:[%s308 + $0x1f0] sm:$0xff]
        %v341 = vunpack.c.l.bf16 %v309
        %v342 = vunpack.c.h.bf16 %v309
        %v343 = vunpack.c.l.bf16 %v310
        %v344 = vunpack.c.h.bf16 %v310
        %v345 = vunpack.c.l.bf16 %v311
        %v346 = vunpack.c.h.bf16 %v311
        %v347 = vunpack.c.l.bf16 %v312
        %v348 = vunpack.c.h.bf16 %v312
        %v349 = vunpack.c.l.bf16 %v313
        %v350 = vunpack.c.h.bf16 %v313
        %v351 = vunpack.c.l.bf16 %v314
        %v352 = vunpack.c.h.bf16 %v314
        %v353 = vunpack.c.l.bf16 %v315
        %v354 = vunpack.c.h.bf16 %v315
        %v355 = vunpack.c.l.bf16 %v316
        %v356 = vunpack.c.h.bf16 %v316
        %v357 = vunpack.c.l.bf16 %v317
        %v358 = vunpack.c.h.bf16 %v317
        %v359 = vunpack.c.l.bf16 %v318
        %v360 = vunpack.c.h.bf16 %v318
        %v361 = vunpack.c.l.bf16 %v319
        %v362 = vunpack.c.h.bf16 %v319
        %v363 = vunpack.c.l.bf16 %v320
        %v364 = vunpack.c.h.bf16 %v320
        %v365 = vunpack.c.l.bf16 %v321
        %v366 = vunpack.c.h.bf16 %v321
        %v367 = vunpack.c.l.bf16 %v322
        %v368 = vunpack.c.h.bf16 %v322
        %v369 = vunpack.c.l.bf16 %v323
        %v370 = vunpack.c.h.bf16 %v323
        %v371 = vunpack.c.l.bf16 %v324
        %v372 = vunpack.c.h.bf16 %v324
        %v373 = vunpack.c.l.bf16 %v325
        %v374 = vunpack.c.h.bf16 %v325
        %v375 = vunpack.c.l.bf16 %v326
        %v376 = vunpack.c.h.bf16 %v326
        %v377 = vunpack.c.l.bf16 %v327
        %v378 = vunpack.c.h.bf16 %v327
        %v379 = vunpack.c.l.bf16 %v328
        %v380 = vunpack.c.h.bf16 %v328
        %v381 = vunpack.c.l.bf16 %v329
        %v382 = vunpack.c.h.bf16 %v329
        %v383 = vunpack.c.l.bf16 %v330
        %v384 = vunpack.c.h.bf16 %v330
        %v385 = vunpack.c.l.bf16 %v331
        %v386 = vunpack.c.h.bf16 %v331
        %v387 = vunpack.c.l.bf16 %v332
        %v388 = vunpack.c.h.bf16 %v332
        %v389 = vunpack.c.l.bf16 %v333
        %v390 = vunpack.c.h.bf16 %v333
        %v391 = vunpack.c.l.bf16 %v334
        %v392 = vunpack.c.h.bf16 %v334
        %v393 = vunpack.c.l.bf16 %v335
        %v394 = vunpack.c.h.bf16 %v335
        %v395 = vunpack.c.l.bf16 %v336
        %v396 = vunpack.c.h.bf16 %v336
        %v397 = vunpack.c.l.bf16 %v337
        %v398 = vunpack.c.h.bf16 %v337
        %v399 = vunpack.c.l.bf16 %v338
        %v400 = vunpack.c.h.bf16 %v338
        %v401 = vunpack.c.l.bf16 %v339
        %v402 = vunpack.c.h.bf16 %v339
        %v403 = vunpack.c.l.bf16 %v340
        %v404 = vunpack.c.h.bf16 %v340
        %v405 = vadd.f32 %v244, %v245
        %v406 = vadd.f32 %v246, %v247
        %v407 = vadd.f32 %v248, %v249
        %v408 = vadd.f32 %v250, %v251
        %v409 = vadd.f32 %v252, %v253
        %v410 = vadd.f32 %v254, %v255
        %v411 = vadd.f32 %v256, %v257
        %v412 = vadd.f32 %v258, %v259
        %v413 = vadd.f32 %v260, %v261
        %v414 = vadd.f32 %v262, %v263
        %v415 = vadd.f32 %v264, %v265
        %v416 = vadd.f32 %v266, %v267
        %v417 = vadd.f32 %v268, %v269
        %v418 = vadd.f32 %v270, %v271
        %v419 = vadd.f32 %v272, %v273
        %v420 = vadd.f32 %v274, %v275
        %v421 = vadd.f32 %v276, %v277
        %v422 = vadd.f32 %v278, %v279
        %v423 = vadd.f32 %v280, %v281
        %v424 = vadd.f32 %v282, %v283
        %v425 = vadd.f32 %v284, %v285
        %v426 = vadd.f32 %v286, %v287
        %v427 = vadd.f32 %v288, %v289
        %v428 = vadd.f32 %v290, %v291
        %v429 = vadd.f32 %v292, %v293
        %v430 = vadd.f32 %v294, %v295
        %v431 = vadd.f32 %v296, %v297
        %v432 = vadd.f32 %v298, %v299
        %v433 = vadd.f32 %v300, %v301
        %v434 = vadd.f32 %v302, %v303
        %v435 = vadd.f32 %v304, %v305
        %v436 = vadd.f32 %v306, %v307
        %v437 = vadd.f32 %v405, %v341
        %v438 = vadd.f32 %v406, %v343
        %v439 = vadd.f32 %v407, %v345
        %v440 = vadd.f32 %v408, %v347
        %v441 = vadd.f32 %v409, %v349
        %v442 = vadd.f32 %v410, %v351
        %v443 = vadd.f32 %v411, %v353
        %v444 = vadd.f32 %v412, %v355
        %v445 = vadd.f32 %v413, %v357
        %v446 = vadd.f32 %v414, %v359
        %v447 = vadd.f32 %v415, %v361
        %v448 = vadd.f32 %v416, %v363
        %v449 = vadd.f32 %v417, %v365
        %v450 = vadd.f32 %v418, %v367
        %v451 = vadd.f32 %v419, %v369
        %v452 = vadd.f32 %v420, %v371
        %v453 = vadd.f32 %v421, %v373
        %v454 = vadd.f32 %v422, %v375
        %v455 = vadd.f32 %v423, %v377
        %v456 = vadd.f32 %v424, %v379
        %v457 = vadd.f32 %v425, %v381
        %v458 = vadd.f32 %v426, %v383
        %v459 = vadd.f32 %v427, %v385
        %v460 = vadd.f32 %v428, %v387
        %v461 = vadd.f32 %v429, %v389
        %v462 = vadd.f32 %v430, %v391
        %v463 = vadd.f32 %v431, %v393
        %v464 = vadd.f32 %v432, %v395
        %v465 = vadd.f32 %v433, %v397
        %v466 = vadd.f32 %v434, %v399
        %v467 = vadd.f32 %v435, %v401
        %v468 = vadd.f32 %v436, %v403
        %v469 = vadd.f32 %v437, %v342
        %v470 = vadd.f32 %v438, %v344
        %v471 = vadd.f32 %v439, %v346
        %v472 = vadd.f32 %v440, %v348
        %v473 = vadd.f32 %v441, %v350
        %v474 = vadd.f32 %v442, %v352
        %v475 = vadd.f32 %v443, %v354
        %v476 = vadd.f32 %v444, %v356
        %v477 = vadd.f32 %v445, %v358
        %v478 = vadd.f32 %v446, %v360
        %v479 = vadd.f32 %v447, %v362
        %v480 = vadd.f32 %v448, %v364
        %v481 = vadd.f32 %v449, %v366
        %v482 = vadd.f32 %v450, %v368
        %v483 = vadd.f32 %v451, %v370
        %v484 = vadd.f32 %v452, %v372
        %v485 = vadd.f32 %v453, %v374
        %v486 = vadd.f32 %v454, %v376
        %v487 = vadd.f32 %v455, %v378
        %v488 = vadd.f32 %v456, %v380
        %v489 = vadd.f32 %v457, %v382
        %v490 = vadd.f32 %v458, %v384
        %v491 = vadd.f32 %v459, %v386
        %v492 = vadd.f32 %v460, %v388
        %v493 = vadd.f32 %v461, %v390
        %v494 = vadd.f32 %v462, %v392
        %v495 = vadd.f32 %v463, %v394
        %v496 = vadd.f32 %v464, %v396
        %v497 = vadd.f32 %v465, %v398
        %v498 = vadd.f32 %v466, %v400
        %v499 = vadd.f32 %v467, %v402
        %v500 = vadd.f32 %v468, %v404
        %v501 = vmul.f32 %v469, 0.25
        %v502 = vmul.f32 %v470, 0.25
        %v503 = vmul.f32 %v471, 0.25
        %v504 = vmul.f32 %v472, 0.25
        %v505 = vmul.f32 %v473, 0.25
        %v506 = vmul.f32 %v474, 0.25
        %v507 = vmul.f32 %v475, 0.25
        %v508 = vmul.f32 %v476, 0.25
        %v509 = vmul.f32 %v477, 0.25
        %v510 = vmul.f32 %v478, 0.25
        %v511 = vmul.f32 %v479, 0.25
        %v512 = vmul.f32 %v480, 0.25
        %v513 = vmul.f32 %v481, 0.25
        %v514 = vmul.f32 %v482, 0.25
        %v515 = vmul.f32 %v483, 0.25
        %v516 = vmul.f32 %v484, 0.25
        %v517 = vmul.f32 %v485, 0.25
        %v518 = vmul.f32 %v486, 0.25
        %v519 = vmul.f32 %v487, 0.25
        %v520 = vmul.f32 %v488, 0.25
        %v521 = vmul.f32 %v489, 0.25
        %v522 = vmul.f32 %v490, 0.25
        %v523 = vmul.f32 %v491, 0.25
        %v524 = vmul.f32 %v492, 0.25
        %v525 = vmul.f32 %v493, 0.25
        %v526 = vmul.f32 %v494, 0.25
        %v527 = vmul.f32 %v495, 0.25
        %v528 = vmul.f32 %v496, 0.25
        %v529 = vmul.f32 %v497, 0.25
        %v530 = vmul.f32 %v498, 0.25
        %v531 = vmul.f32 %v499, 0.25
        %v532 = vmul.f32 %v500, 0.25
        %v533 = vpack.c.bf16 %v501, %v501
        %v534 = vpack.c.bf16 %v502, %v502
        %v535 = vpack.c.bf16 %v503, %v503
        %v536 = vpack.c.bf16 %v504, %v504
        %v537 = vpack.c.bf16 %v505, %v505
        %v538 = vpack.c.bf16 %v506, %v506
        %v539 = vpack.c.bf16 %v507, %v507
        %v540 = vpack.c.bf16 %v508, %v508
        %v541 = vpack.c.bf16 %v509, %v509
        %v542 = vpack.c.bf16 %v510, %v510
        %v543 = vpack.c.bf16 %v511, %v511
        %v544 = vpack.c.bf16 %v512, %v512
        %v545 = vpack.c.bf16 %v513, %v513
        %v546 = vpack.c.bf16 %v514, %v514
        %v547 = vpack.c.bf16 %v515, %v515
        %v548 = vpack.c.bf16 %v516, %v516
        %v549 = vpack.c.bf16 %v517, %v517
        %v550 = vpack.c.bf16 %v518, %v518
        %v551 = vpack.c.bf16 %v519, %v519
        %v552 = vpack.c.bf16 %v520, %v520
        %v553 = vpack.c.bf16 %v521, %v521
        %v554 = vpack.c.bf16 %v522, %v522
        %v555 = vpack.c.bf16 %v523, %v523
        %v556 = vpack.c.bf16 %v524, %v524
        %v557 = vpack.c.bf16 %v525, %v525
        %v558 = vpack.c.bf16 %v526, %v526
        %v559 = vpack.c.bf16 %v527, %v527
        %v560 = vpack.c.bf16 %v528, %v528
        %v561 = vpack.c.bf16 %v529, %v529
        %v562 = vpack.c.bf16 %v530, %v530
        %v563 = vpack.c.bf16 %v531, %v531
        %v564 = vpack.c.bf16 %v532, %v532
        %565 = vst [vmem:[#allocation2] sm:$0xf] 0
        %566 = vst [vmem:[#allocation2 + $0x4] sm:$0x1] 0
        %567 = vst [vmem:[#allocation2 + $0x50] sm:$0xf] 0
        %568 = vst [vmem:[#allocation2 + $0x54] sm:$0x1] 0
        %569 = vst [vmem:[#allocation2 + $0xa0] sm:$0xf] 0
        %570 = vst [vmem:[#allocation2 + $0xa4] sm:$0x1] 0
        %571 = vst [vmem:[#allocation2 + $0xf0] sm:$0xf] 0
        %572 = vst [vmem:[#allocation2 + $0xf4] sm:$0x1] 0
        %s573 = scalar_lea.vmem [#allocation2], 72
        %574 = vst [vmem:[%s573] sm:$0xf] 0
        %575 = vst [vmem:[%s573 + $0x4] sm:$0x1] 0
        %576 = vst [vmem:[%s573 + $0x50] sm:$0xf] 0
        %577 = vst [vmem:[%s573 + $0x54] sm:$0x1] 0
        %578 = vst [vmem:[%s573 + $0xa0] sm:$0xf] 0
        %579 = vst [vmem:[%s573 + $0xa4] sm:$0x1] 0
        %580 = vst [vmem:[%s573 + $0xf0] sm:$0xf] 0
        %581 = vst [vmem:[%s573 + $0xf4] sm:$0x1] 0
        %vm582 = vcmask 1040384
        %vm583 = vsmask.f32 256
        %vm584 = vmand %vm582, %vm583
        %v585 = vld [vmem:[#allocation2] sm:$0x1]
        %v586 = vsel %vm584, 0, %v585
        %587 = vst [vmem:[#allocation2] sm:$0x1] %v586
        %v588 = vld [vmem:[#allocation2 + $0x8] sm:$0x1]
        %v589 = vsel %vm584, 0, %v588
        %590 = vst [vmem:[#allocation2 + $0x8] sm:$0x1] %v589
        %v591 = vld [vmem:[#allocation2 + $0x10] sm:$0x1]
        %v592 = vsel %vm584, 0, %v591
        %593 = vst [vmem:[#allocation2 + $0x10] sm:$0x1] %v592
        %v594 = vld [vmem:[#allocation2 + $0x18] sm:$0x1]
        %v595 = vsel %vm584, 0, %v594
        %596 = vst [vmem:[#allocation2 + $0x18] sm:$0x1] %v595
        %v597 = vld [vmem:[#allocation2 + $0x20] sm:$0x1]
        %v598 = vsel %vm584, 0, %v597
        %599 = vst [vmem:[#allocation2 + $0x20] sm:$0x1] %v598
        %v600 = vld [vmem:[#allocation2 + $0x28] sm:$0x1]
        %v601 = vsel %vm584, 0, %v600
        %602 = vst [vmem:[#allocation2 + $0x28] sm:$0x1] %v601
        %v603 = vld [vmem:[#allocation2 + $0x30] sm:$0x1]
        %v604 = vsel %vm584, 0, %v603
        %605 = vst [vmem:[#allocation2 + $0x30] sm:$0x1] %v604
        %v606 = vld [vmem:[#allocation2 + $0x38] sm:$0x1]
        %v607 = vsel %vm584, 0, %v606
        %608 = vst [vmem:[#allocation2 + $0x38] sm:$0x1] %v607
        %v609 = vld [vmem:[#allocation2 + $0x40] sm:$0x1]
        %v610 = vsel %vm584, 0, %v609
        %611 = vst [vmem:[#allocation2 + $0x40] sm:$0x1] %v610
        %v612 = vld [vmem:[#allocation2 + $0x48] sm:$0x1]
        %v613 = vsel %vm584, 0, %v612
        %614 = vst [vmem:[#allocation2 + $0x48] sm:$0x1] %v613
        %v615 = vld [vmem:[#allocation2 + $0x50] sm:$0x1]
        %v616 = vsel %vm584, 0, %v615
        %617 = vst [vmem:[#allocation2 + $0x50] sm:$0x1] %v616
        %v618 = vld [vmem:[#allocation2 + $0x58] sm:$0x1]
        %v619 = vsel %vm584, 0, %v618
        %620 = vst [vmem:[#allocation2 + $0x58] sm:$0x1] %v619
        %v621 = vld [vmem:[#allocation2 + $0x60] sm:$0x1]
        %v622 = vsel %vm584, 0, %v621
        %623 = vst [vmem:[#allocation2 + $0x60] sm:$0x1] %v622
        %v624 = vld [vmem:[#allocation2 + $0x68] sm:$0x1]
        %v625 = vsel %vm584, 0, %v624
        %626 = vst [vmem:[#allocation2 + $0x68] sm:$0x1] %v625
        %v627 = vld [vmem:[#allocation2 + $0x70] sm:$0x1]
        %v628 = vsel %vm584, 0, %v627
        %629 = vst [vmem:[#allocation2 + $0x70] sm:$0x1] %v628
        %v630 = vld [vmem:[#allocation2 + $0x78] sm:$0x1]
        %v631 = vsel %vm584, 0, %v630
        %632 = vst [vmem:[#allocation2 + $0x78] sm:$0x1] %v631
        %v633 = vld [vmem:[#allocation2 + $0x80] sm:$0x1]
        %v634 = vsel %vm584, 0, %v633
        %635 = vst [vmem:[#allocation2 + $0x80] sm:$0x1] %v634
        %v636 = vld [vmem:[#allocation2 + $0x88] sm:$0x1]
        %v637 = vsel %vm584, 0, %v636
        %638 = vst [vmem:[#allocation2 + $0x88] sm:$0x1] %v637
        %v639 = vld [vmem:[#allocation2 + $0x90] sm:$0x1]
        %v640 = vsel %vm584, 0, %v639
        %641 = vst [vmem:[#allocation2 + $0x90] sm:$0x1] %v640
        %v642 = vld [vmem:[#allocation2 + $0x98] sm:$0x1]
        %v643 = vsel %vm584, 0, %v642
        %644 = vst [vmem:[#allocation2 + $0x98] sm:$0x1] %v643
        %v645 = vld [vmem:[#allocation2 + $0xa0] sm:$0x1]
        %v646 = vsel %vm584, 0, %v645
        %647 = vst [vmem:[#allocation2 + $0xa0] sm:$0x1] %v646
        %v648 = vld [vmem:[#allocation2 + $0xa8] sm:$0x1]
        %v649 = vsel %vm584, 0, %v648
        %650 = vst [vmem:[#allocation2 + $0xa8] sm:$0x1] %v649
        %v651 = vld [vmem:[#allocation2 + $0xb0] sm:$0x1]
        %v652 = vsel %vm584, 0, %v651
        %653 = vst [vmem:[#allocation2 + $0xb0] sm:$0x1] %v652
        %v654 = vld [vmem:[#allocation2 + $0xb8] sm:$0x1]
        %v655 = vsel %vm584, 0, %v654
        %656 = vst [vmem:[#allocation2 + $0xb8] sm:$0x1] %v655
        %v657 = vld [vmem:[#allocation2 + $0xc0] sm:$0x1]
        %v658 = vsel %vm584, 0, %v657
        %659 = vst [vmem:[#allocation2 + $0xc0] sm:$0x1] %v658
        %v660 = vld [vmem:[#allocation2 + $0xc8] sm:$0x1]
        %v661 = vsel %vm584, 0, %v660
        %662 = vst [vmem:[#allocation2 + $0xc8] sm:$0x1] %v661
        %v663 = vld [vmem:[#allocation2 + $0xd0] sm:$0x1]
        %v664 = vsel %vm584, 0, %v663
        %665 = vst [vmem:[#allocation2 + $0xd0] sm:$0x1] %v664
        %v666 = vld [vmem:[#allocation2 + $0xd8] sm:$0x1]
        %v667 = vsel %vm584, 0, %v666
        %668 = vst [vmem:[#allocation2 + $0xd8] sm:$0x1] %v667
        %v669 = vld [vmem:[#allocation2 + $0xe0] sm:$0x1]
        %v670 = vsel %vm584, 0, %v669
        %671 = vst [vmem:[#allocation2 + $0xe0] sm:$0x1] %v670
        %v672 = vld [vmem:[#allocation2 + $0xe8] sm:$0x1]
        %v673 = vsel %vm584, 0, %v672
        %674 = vst [vmem:[#allocation2 + $0xe8] sm:$0x1] %v673
        %v675 = vld [vmem:[#allocation2 + $0xf0] sm:$0x1]
        %v676 = vsel %vm584, 0, %v675
        %677 = vst [vmem:[#allocation2 + $0xf0] sm:$0x1] %v676
        %v678 = vld [vmem:[#allocation2 + $0xf8] sm:$0x1]
        %v679 = vsel %vm584, 0, %v678
        %680 = vst [vmem:[#allocation2 + $0xf8] sm:$0x1] %v679
        %v681 = vld [vmem:[#allocation2 + $0x100] sm:$0x1]
        %v682 = vsel %vm584, 0, %v681
        %683 = vst [vmem:[#allocation2 + $0x100] sm:$0x1] %v682
        %v684 = vld [vmem:[#allocation2 + $0x108] sm:$0x1]
        %v685 = vsel %vm584, 0, %v684
        %686 = vst [vmem:[#allocation2 + $0x108] sm:$0x1] %v685
        %v687 = vld [vmem:[#allocation2 + $0x110] sm:$0x1]
        %v688 = vsel %vm584, 0, %v687
        %689 = vst [vmem:[#allocation2 + $0x110] sm:$0x1] %v688
        %v690 = vld [vmem:[#allocation2 + $0x118] sm:$0x1]
        %v691 = vsel %vm584, 0, %v690
        %692 = vst [vmem:[#allocation2 + $0x118] sm:$0x1] %v691
        %v693 = vld [vmem:[#allocation2 + $0x120] sm:$0x1]
        %v694 = vsel %vm584, 0, %v693
        %695 = vst [vmem:[#allocation2 + $0x120] sm:$0x1] %v694
        %v696 = vld [vmem:[#allocation2 + $0x128] sm:$0x1]
        %v697 = vsel %vm584, 0, %v696
        %698 = vst [vmem:[#allocation2 + $0x128] sm:$0x1] %v697
        %v699 = vld [vmem:[#allocation2 + $0x130] sm:$0x1]
        %v700 = vsel %vm584, 0, %v699
        %701 = vst [vmem:[#allocation2 + $0x130] sm:$0x1] %v700
        %v702 = vld [vmem:[#allocation2 + $0x138] sm:$0x1]
        %v703 = vsel %vm584, 0, %v702
        %704 = vst [vmem:[#allocation2 + $0x138] sm:$0x1] %v703
        %vm705 = vsmask.f32 7938
        %vm706 = vmand %vm582, %vm705
        %v707 = vld [vmem:[#allocation2 + $0x4] sm:$0x1]
        %v708 = vsel %vm706, 0, %v707
        %709 = vst [vmem:[#allocation2 + $0x4] sm:$0x1] %v708
        %v710 = vld [vmem:[#allocation2 + $0xc] sm:$0x1]
        %v711 = vsel %vm706, 0, %v710
        %712 = vst [vmem:[#allocation2 + $0xc] sm:$0x1] %v711
        %v713 = vld [vmem:[#allocation2 + $0x14] sm:$0x1]
        %v714 = vsel %vm706, 0, %v713
        %715 = vst [vmem:[#allocation2 + $0x14] sm:$0x1] %v714
        %v716 = vld [vmem:[#allocation2 + $0x1c] sm:$0x1]
        %v717 = vsel %vm706, 0, %v716
        %718 = vst [vmem:[#allocation2 + $0x1c] sm:$0x1] %v717
        %v719 = vld [vmem:[#allocation2 + $0x24] sm:$0x1]
        %v720 = vsel %vm706, 0, %v719
        %721 = vst [vmem:[#allocation2 + $0x24] sm:$0x1] %v720
        %v722 = vld [vmem:[#allocation2 + $0x2c] sm:$0x1]
        %v723 = vsel %vm706, 0, %v722
        %724 = vst [vmem:[#allocation2 + $0x2c] sm:$0x1] %v723
        %v725 = vld [vmem:[#allocation2 + $0x34] sm:$0x1]
        %v726 = vsel %vm706, 0, %v725
        %727 = vst [vmem:[#allocation2 + $0x34] sm:$0x1] %v726
        %v728 = vld [vmem:[#allocation2 + $0x3c] sm:$0x1]
        %v729 = vsel %vm706, 0, %v728
        %730 = vst [vmem:[#allocation2 + $0x3c] sm:$0x1] %v729
        %v731 = vld [vmem:[#allocation2 + $0x44] sm:$0x1]
        %v732 = vsel %vm706, 0, %v731
        %733 = vst [vmem:[#allocation2 + $0x44] sm:$0x1] %v732
        %v734 = vld [vmem:[#allocation2 + $0x4c] sm:$0x1]
        %v735 = vsel %vm706, 0, %v734
        %736 = vst [vmem:[#allocation2 + $0x4c] sm:$0x1] %v735
        %v737 = vld [vmem:[#allocation2 + $0x54] sm:$0x1]
        %v738 = vsel %vm706, 0, %v737
        %739 = vst [vmem:[#allocation2 + $0x54] sm:$0x1] %v738
        %v740 = vld [vmem:[#allocation2 + $0x5c] sm:$0x1]
        %v741 = vsel %vm706, 0, %v740
        %742 = vst [vmem:[#allocation2 + $0x5c] sm:$0x1] %v741
        %v743 = vld [vmem:[#allocation2 + $0x64] sm:$0x1]
        %v744 = vsel %vm706, 0, %v743
        %745 = vst [vmem:[#allocation2 + $0x64] sm:$0x1] %v744
        %v746 = vld [vmem:[#allocation2 + $0x6c] sm:$0x1]
        %v747 = vsel %vm706, 0, %v746
        %748 = vst [vmem:[#allocation2 + $0x6c] sm:$0x1] %v747
        %v749 = vld [vmem:[#allocation2 + $0x74] sm:$0x1]
        %v750 = vsel %vm706, 0, %v749
        %751 = vst [vmem:[#allocation2 + $0x74] sm:$0x1] %v750
        %v752 = vld [vmem:[#allocation2 + $0x7c] sm:$0x1]
        %v753 = vsel %vm706, 0, %v752
        %754 = vst [vmem:[#allocation2 + $0x7c] sm:$0x1] %v753
        %v755 = vld [vmem:[#allocation2 + $0x84] sm:$0x1]
        %v756 = vsel %vm706, 0, %v755
        %757 = vst [vmem:[#allocation2 + $0x84] sm:$0x1] %v756
        %v758 = vld [vmem:[#allocation2 + $0x8c] sm:$0x1]
        %v759 = vsel %vm706, 0, %v758
        %760 = vst [vmem:[#allocation2 + $0x8c] sm:$0x1] %v759
        %v761 = vld [vmem:[#allocation2 + $0x94] sm:$0x1]
        %v762 = vsel %vm706, 0, %v761
        %763 = vst [vmem:[#allocation2 + $0x94] sm:$0x1] %v762
        %v764 = vld [vmem:[#allocation2 + $0x9c] sm:$0x1]
        %v765 = vsel %vm706, 0, %v764
        %766 = vst [vmem:[#allocation2 + $0x9c] sm:$0x1] %v765
        %v767 = vld [vmem:[#allocation2 + $0xa4] sm:$0x1]
        %v768 = vsel %vm706, 0, %v767
        %769 = vst [vmem:[#allocation2 + $0xa4] sm:$0x1] %v768
        %v770 = vld [vmem:[#allocation2 + $0xac] sm:$0x1]
        %v771 = vsel %vm706, 0, %v770
        %772 = vst [vmem:[#allocation2 + $0xac] sm:$0x1] %v771
        %v773 = vld [vmem:[#allocation2 + $0xb4] sm:$0x1]
        %v774 = vsel %vm706, 0, %v773
        %775 = vst [vmem:[#allocation2 + $0xb4] sm:$0x1] %v774
        %v776 = vld [vmem:[#allocation2 + $0xbc] sm:$0x1]
        %v777 = vsel %vm706, 0, %v776
        %778 = vst [vmem:[#allocation2 + $0xbc] sm:$0x1] %v777
        %v779 = vld [vmem:[#allocation2 + $0xc4] sm:$0x1]
        %v780 = vsel %vm706, 0, %v779
        %781 = vst [vmem:[#allocation2 + $0xc4] sm:$0x1] %v780
        %v782 = vld [vmem:[#allocation2 + $0xcc] sm:$0x1]
        %v783 = vsel %vm706, 0, %v782
        %784 = vst [vmem:[#allocation2 + $0xcc] sm:$0x1] %v783
        %v785 = vld [vmem:[#allocation2 + $0xd4] sm:$0x1]
        %v786 = vsel %vm706, 0, %v785
        %787 = vst [vmem:[#allocation2 + $0xd4] sm:$0x1] %v786
        %v788 = vld [vmem:[#allocation2 + $0xdc] sm:$0x1]
        %v789 = vsel %vm706, 0, %v788
        %790 = vst [vmem:[#allocation2 + $0xdc] sm:$0x1] %v789
        %v791 = vld [vmem:[#allocation2 + $0xe4] sm:$0x1]
        %v792 = vsel %vm706, 0, %v791
        %793 = vst [vmem:[#allocation2 + $0xe4] sm:$0x1] %v792
        %v794 = vld [vmem:[#allocation2 + $0xec] sm:$0x1]
        %v795 = vsel %vm706, 0, %v794
        %796 = vst [vmem:[#allocation2 + $0xec] sm:$0x1] %v795
        %v797 = vld [vmem:[#allocation2 + $0xf4] sm:$0x1]
        %v798 = vsel %vm706, 0, %v797
        %799 = vst [vmem:[#allocation2 + $0xf4] sm:$0x1] %v798
        %v800 = vld [vmem:[#allocation2 + $0xfc] sm:$0x1]
        %v801 = vsel %vm706, 0, %v800
        %802 = vst [vmem:[#allocation2 + $0xfc] sm:$0x1] %v801
        %v803 = vld [vmem:[#allocation2 + $0x104] sm:$0x1]
        %v804 = vsel %vm706, 0, %v803
        %805 = vst [vmem:[#allocation2 + $0x104] sm:$0x1] %v804
        %v806 = vld [vmem:[#allocation2 + $0x10c] sm:$0x1]
        %v807 = vsel %vm706, 0, %v806
        %808 = vst [vmem:[#allocation2 + $0x10c] sm:$0x1] %v807
        %v809 = vld [vmem:[#allocation2 + $0x114] sm:$0x1]
        %v810 = vsel %vm706, 0, %v809
        %811 = vst [vmem:[#allocation2 + $0x114] sm:$0x1] %v810
        %v812 = vld [vmem:[#allocation2 + $0x11c] sm:$0x1]
        %v813 = vsel %vm706, 0, %v812
        %814 = vst [vmem:[#allocation2 + $0x11c] sm:$0x1] %v813
        %v815 = vld [vmem:[#allocation2 + $0x124] sm:$0x1]
        %v816 = vsel %vm706, 0, %v815
        %817 = vst [vmem:[#allocation2 + $0x124] sm:$0x1] %v816
        %v818 = vld [vmem:[#allocation2 + $0x12c] sm:$0x1]
        %v819 = vsel %vm706, 0, %v818
        %820 = vst [vmem:[#allocation2 + $0x12c] sm:$0x1] %v819
        %v821 = vld [vmem:[#allocation2 + $0x134] sm:$0x1]
        %v822 = vsel %vm706, 0, %v821
        %823 = vst [vmem:[#allocation2 + $0x134] sm:$0x1] %v822
        %v824 = vld [vmem:[#allocation2 + $0x13c] sm:$0x1]
        %v825 = vsel %vm706, 0, %v824
        %826 = vst [vmem:[#allocation2 + $0x13c] sm:$0x1] %v825
        %v828 = vshrl.u32 %v533, 16
        %v830 = vrot.slane %v828, 7
        %v831 = vshll.u32 %v533, 16
        %v833 = vor.u32 %v830, %v831
        %v834 = vrot.slane %v830, 4
        %v836 = vshrl.u32 %v534, 16
        %v838 = vrot.slane %v836, 7
        %v839 = vshll.u32 %v534, 16
        %v841 = vor.u32 %v838, %v839
        %v842 = vrot.slane %v838, 4
        %v844 = vshrl.u32 %v535, 16
        %v846 = vrot.slane %v844, 7
        %v847 = vshll.u32 %v535, 16
        %v849 = vor.u32 %v846, %v847
        %v850 = vrot.slane %v846, 4
        %v852 = vshrl.u32 %v536, 16
        %v854 = vrot.slane %v852, 7
        %v855 = vshll.u32 %v536, 16
        %v857 = vor.u32 %v854, %v855
        %v858 = vrot.slane %v854, 4
        %v860 = vshrl.u32 %v537, 16
        %v862 = vrot.slane %v860, 7
        %v863 = vshll.u32 %v537, 16
        %v865 = vor.u32 %v862, %v863
        %v866 = vrot.slane %v862, 4
        %v868 = vshrl.u32 %v538, 16
        %v870 = vrot.slane %v868, 7
        %v871 = vshll.u32 %v538, 16
        %v873 = vor.u32 %v870, %v871
        %v874 = vrot.slane %v870, 4
        %v876 = vshrl.u32 %v539, 16
        %v878 = vrot.slane %v876, 7
        %v879 = vshll.u32 %v539, 16
        %v881 = vor.u32 %v878, %v879
        %v882 = vrot.slane %v878, 4
        %v884 = vshrl.u32 %v540, 16
        %v886 = vrot.slane %v884, 7
        %v887 = vshll.u32 %v540, 16
        %v889 = vor.u32 %v886, %v887
        %v890 = vrot.slane %v886, 4
        %v892 = vshrl.u32 %v541, 16
        %v894 = vrot.slane %v892, 7
        %v895 = vshll.u32 %v541, 16
        %v897 = vor.u32 %v894, %v895
        %v898 = vrot.slane %v894, 4
        %v900 = vshrl.u32 %v542, 16
        %v902 = vrot.slane %v900, 7
        %v903 = vshll.u32 %v542, 16
        %v905 = vor.u32 %v902, %v903
        %v906 = vrot.slane %v902, 4
        %v908 = vshrl.u32 %v543, 16
        %v910 = vrot.slane %v908, 7
        %v911 = vshll.u32 %v543, 16
        %v913 = vor.u32 %v910, %v911
        %v914 = vrot.slane %v910, 4
        %v916 = vshrl.u32 %v544, 16
        %v918 = vrot.slane %v916, 7
        %v919 = vshll.u32 %v544, 16
        %v921 = vor.u32 %v918, %v919
        %v922 = vrot.slane %v918, 4
        %v924 = vshrl.u32 %v545, 16
        %v926 = vrot.slane %v924, 7
        %v927 = vshll.u32 %v545, 16
        %v929 = vor.u32 %v926, %v927
        %v930 = vrot.slane %v926, 4
        %v932 = vshrl.u32 %v546, 16
        %v934 = vrot.slane %v932, 7
        %v935 = vshll.u32 %v546, 16
        %v937 = vor.u32 %v934, %v935
        %v938 = vrot.slane %v934, 4
        %v940 = vshrl.u32 %v547, 16
        %v942 = vrot.slane %v940, 7
        %v943 = vshll.u32 %v547, 16
        %v945 = vor.u32 %v942, %v943
        %v946 = vrot.slane %v942, 4
        %v948 = vshrl.u32 %v548, 16
        %v950 = vrot.slane %v948, 7
        %v951 = vshll.u32 %v548, 16
        %v953 = vor.u32 %v950, %v951
        %v954 = vrot.slane %v950, 4
        %v956 = vshrl.u32 %v549, 16
        %v958 = vrot.slane %v956, 7
        %v959 = vshll.u32 %v549, 16
        %v961 = vor.u32 %v958, %v959
        %v962 = vrot.slane %v958, 4
        %v964 = vshrl.u32 %v550, 16
        %v966 = vrot.slane %v964, 7
        %v967 = vshll.u32 %v550, 16
        %v969 = vor.u32 %v966, %v967
        %v970 = vrot.slane %v966, 4
        %v972 = vshrl.u32 %v551, 16
        %v974 = vrot.slane %v972, 7
        %v975 = vshll.u32 %v551, 16
        %v977 = vor.u32 %v974, %v975
        %v978 = vrot.slane %v974, 4
        %v980 = vshrl.u32 %v552, 16
        %v982 = vrot.slane %v980, 7
        %v983 = vshll.u32 %v552, 16
        %v985 = vor.u32 %v982, %v983
        %v986 = vrot.slane %v982, 4
        %v988 = vshrl.u32 %v553, 16
        %v990 = vrot.slane %v988, 7
        %v991 = vshll.u32 %v553, 16
        %v993 = vor.u32 %v990, %v991
        %v994 = vrot.slane %v990, 4
        %v996 = vshrl.u32 %v554, 16
        %v998 = vrot.slane %v996, 7
        %v999 = vshll.u32 %v554, 16
        %v1001 = vor.u32 %v998, %v999
        %v1002 = vrot.slane %v998, 4
        %v1004 = vshrl.u32 %v555, 16
        %v1006 = vrot.slane %v1004, 7
        %v1007 = vshll.u32 %v555, 16
        %v1009 = vor.u32 %v1006, %v1007
        %v1010 = vrot.slane %v1006, 4
        %v1012 = vshrl.u32 %v556, 16
        %v1014 = vrot.slane %v1012, 7
        %v1015 = vshll.u32 %v556, 16
        %v1017 = vor.u32 %v1014, %v1015
        %v1018 = vrot.slane %v1014, 4
        %v1020 = vshrl.u32 %v557, 16
        %v1022 = vrot.slane %v1020, 7
        %v1023 = vshll.u32 %v557, 16
        %v1025 = vor.u32 %v1022, %v1023
        %v1026 = vrot.slane %v1022, 4
        %v1028 = vshrl.u32 %v558, 16
        %v1030 = vrot.slane %v1028, 7
        %v1031 = vshll.u32 %v558, 16
        %v1033 = vor.u32 %v1030, %v1031
        %v1034 = vrot.slane %v1030, 4
        %v1036 = vshrl.u32 %v559, 16
        %v1038 = vrot.slane %v1036, 7
        %v1039 = vshll.u32 %v559, 16
        %v1041 = vor.u32 %v1038, %v1039
        %v1042 = vrot.slane %v1038, 4
        %v1044 = vshrl.u32 %v560, 16
        %v1046 = vrot.slane %v1044, 7
        %v1047 = vshll.u32 %v560, 16
        %v1049 = vor.u32 %v1046, %v1047
        %v1050 = vrot.slane %v1046, 4
        %v1052 = vshrl.u32 %v561, 16
        %v1054 = vrot.slane %v1052, 7
        %v1055 = vshll.u32 %v561, 16
        %v1057 = vor.u32 %v1054, %v1055
        %v1058 = vrot.slane %v1054, 4
        %v1060 = vshrl.u32 %v562, 16
        %v1062 = vrot.slane %v1060, 7
        %v1063 = vshll.u32 %v562, 16
        %v1065 = vor.u32 %v1062, %v1063
        %v1066 = vrot.slane %v1062, 4
        %v1068 = vshrl.u32 %v563, 16
        %v1070 = vrot.slane %v1068, 7
        %v1071 = vshll.u32 %v563, 16
        %v1073 = vor.u32 %v1070, %v1071
        %v1074 = vrot.slane %v1070, 4
        %v1076 = vshrl.u32 %v564, 16
        %v1078 = vrot.slane %v1076, 7
        %v1079 = vshll.u32 %v564, 16
        %v1081 = vor.u32 %v1078, %v1079
        %v1082 = vrot.slane %v1078, 4
        %s1147 = scalar_lea.vmem [#allocation2], 8
        %vm1148 = vcmask 1043456
        %vm1149 = vmand %vm1148, %vm705
        %v1150 = vld [vmem:[%s1147] sm:$0xf]
        %v1151 = vsel %vm1149, %v833, %v1150
        %1152 = vst [vmem:[%s1147] sm:$0xf] %v1151
        %v1153 = vld [vmem:[%s1147 + $0x4] sm:$0x1]
        %v1154 = vsel %vm584, %v834, %v1153
        %1155 = vst [vmem:[%s1147 + $0x4] sm:$0x1] %v1154
        %v1156 = vld [vmem:[%s1147 + $0x8] sm:$0xf]
        %v1157 = vsel %vm1149, %v841, %v1156
        %1158 = vst [vmem:[%s1147 + $0x8] sm:$0xf] %v1157
        %v1159 = vld [vmem:[%s1147 + $0xc] sm:$0x1]
        %v1160 = vsel %vm584, %v842, %v1159
        %1161 = vst [vmem:[%s1147 + $0xc] sm:$0x1] %v1160
        %v1162 = vld [vmem:[%s1147 + $0x10] sm:$0xf]
        %v1163 = vsel %vm1149, %v849, %v1162
        %1164 = vst [vmem:[%s1147 + $0x10] sm:$0xf] %v1163
        %v1165 = vld [vmem:[%s1147 + $0x14] sm:$0x1]
        %v1166 = vsel %vm584, %v850, %v1165
        %1167 = vst [vmem:[%s1147 + $0x14] sm:$0x1] %v1166
        %v1168 = vld [vmem:[%s1147 + $0x18] sm:$0xf]
        %v1169 = vsel %vm1149, %v857, %v1168
        %1170 = vst [vmem:[%s1147 + $0x18] sm:$0xf] %v1169
        %v1171 = vld [vmem:[%s1147 + $0x1c] sm:$0x1]
        %v1172 = vsel %vm584, %v858, %v1171
        %1173 = vst [vmem:[%s1147 + $0x1c] sm:$0x1] %v1172
        %v1174 = vld [vmem:[%s1147 + $0x20] sm:$0xf]
        %v1175 = vsel %vm1149, %v865, %v1174
        %1176 = vst [vmem:[%s1147 + $0x20] sm:$0xf] %v1175
        %v1177 = vld [vmem:[%s1147 + $0x24] sm:$0x1]
        %v1178 = vsel %vm584, %v866, %v1177
        %1179 = vst [vmem:[%s1147 + $0x24] sm:$0x1] %v1178
        %v1180 = vld [vmem:[%s1147 + $0x28] sm:$0xf]
        %v1181 = vsel %vm1149, %v873, %v1180
        %1182 = vst [vmem:[%s1147 + $0x28] sm:$0xf] %v1181
        %v1183 = vld [vmem:[%s1147 + $0x2c] sm:$0x1]
        %v1184 = vsel %vm584, %v874, %v1183
        %1185 = vst [vmem:[%s1147 + $0x2c] sm:$0x1] %v1184
        %v1186 = vld [vmem:[%s1147 + $0x30] sm:$0xf]
        %v1187 = vsel %vm1149, %v881, %v1186
        %1188 = vst [vmem:[%s1147 + $0x30] sm:$0xf] %v1187
        %v1189 = vld [vmem:[%s1147 + $0x34] sm:$0x1]
        %v1190 = vsel %vm584, %v882, %v1189
        %1191 = vst [vmem:[%s1147 + $0x34] sm:$0x1] %v1190
        %v1192 = vld [vmem:[%s1147 + $0x38] sm:$0xf]
        %v1193 = vsel %vm1149, %v889, %v1192
        %1194 = vst [vmem:[%s1147 + $0x38] sm:$0xf] %v1193
        %v1195 = vld [vmem:[%s1147 + $0x3c] sm:$0x1]
        %v1196 = vsel %vm584, %v890, %v1195
        %1197 = vst [vmem:[%s1147 + $0x3c] sm:$0x1] %v1196
        %v1198 = vld [vmem:[%s1147 + $0x50] sm:$0xf]
        %v1199 = vsel %vm1149, %v897, %v1198
        %1200 = vst [vmem:[%s1147 + $0x50] sm:$0xf] %v1199
        %v1201 = vld [vmem:[%s1147 + $0x54] sm:$0x1]
        %v1202 = vsel %vm584, %v898, %v1201
        %1203 = vst [vmem:[%s1147 + $0x54] sm:$0x1] %v1202
        %v1204 = vld [vmem:[%s1147 + $0x58] sm:$0xf]
        %v1205 = vsel %vm1149, %v905, %v1204
        %1206 = vst [vmem:[%s1147 + $0x58] sm:$0xf] %v1205
        %v1207 = vld [vmem:[%s1147 + $0x5c] sm:$0x1]
        %v1208 = vsel %vm584, %v906, %v1207
        %1209 = vst [vmem:[%s1147 + $0x5c] sm:$0x1] %v1208
        %v1210 = vld [vmem:[%s1147 + $0x60] sm:$0xf]
        %v1211 = vsel %vm1149, %v913, %v1210
        %1212 = vst [vmem:[%s1147 + $0x60] sm:$0xf] %v1211
        %v1213 = vld [vmem:[%s1147 + $0x64] sm:$0x1]
        %v1214 = vsel %vm584, %v914, %v1213
        %1215 = vst [vmem:[%s1147 + $0x64] sm:$0x1] %v1214
        %v1216 = vld [vmem:[%s1147 + $0x68] sm:$0xf]
        %v1217 = vsel %vm1149, %v921, %v1216
        %1218 = vst [vmem:[%s1147 + $0x68] sm:$0xf] %v1217
        %v1219 = vld [vmem:[%s1147 + $0x6c] sm:$0x1]
        %v1220 = vsel %vm584, %v922, %v1219
        %1221 = vst [vmem:[%s1147 + $0x6c] sm:$0x1] %v1220
        %v1222 = vld [vmem:[%s1147 + $0x70] sm:$0xf]
        %v1223 = vsel %vm1149, %v929, %v1222
        %1224 = vst [vmem:[%s1147 + $0x70] sm:$0xf] %v1223
        %v1225 = vld [vmem:[%s1147 + $0x74] sm:$0x1]
        %v1226 = vsel %vm584, %v930, %v1225
        %1227 = vst [vmem:[%s1147 + $0x74] sm:$0x1] %v1226
        %v1228 = vld [vmem:[%s1147 + $0x78] sm:$0xf]
        %v1229 = vsel %vm1149, %v937, %v1228
        %1230 = vst [vmem:[%s1147 + $0x78] sm:$0xf] %v1229
        %v1231 = vld [vmem:[%s1147 + $0x7c] sm:$0x1]
        %v1232 = vsel %vm584, %v938, %v1231
        %1233 = vst [vmem:[%s1147 + $0x7c] sm:$0x1] %v1232
        %v1234 = vld [vmem:[%s1147 + $0x80] sm:$0xf]
        %v1235 = vsel %vm1149, %v945, %v1234
        %1236 = vst [vmem:[%s1147 + $0x80] sm:$0xf] %v1235
        %v1237 = vld [vmem:[%s1147 + $0x84] sm:$0x1]
        %v1238 = vsel %vm584, %v946, %v1237
        %1239 = vst [vmem:[%s1147 + $0x84] sm:$0x1] %v1238
        %v1240 = vld [vmem:[%s1147 + $0x88] sm:$0xf]
        %v1241 = vsel %vm1149, %v953, %v1240
        %1242 = vst [vmem:[%s1147 + $0x88] sm:$0xf] %v1241
        %v1243 = vld [vmem:[%s1147 + $0x8c] sm:$0x1]
        %v1244 = vsel %vm584, %v954, %v1243
        %1245 = vst [vmem:[%s1147 + $0x8c] sm:$0x1] %v1244
        %v1246 = vld [vmem:[%s1147 + $0xa0] sm:$0xf]
        %v1247 = vsel %vm1149, %v961, %v1246
        %1248 = vst [vmem:[%s1147 + $0xa0] sm:$0xf] %v1247
        %v1249 = vld [vmem:[%s1147 + $0xa4] sm:$0x1]
        %v1250 = vsel %vm584, %v962, %v1249
        %1251 = vst [vmem:[%s1147 + $0xa4] sm:$0x1] %v1250
        %v1252 = vld [vmem:[%s1147 + $0xa8] sm:$0xf]
        %v1253 = vsel %vm1149, %v969, %v1252
        %1254 = vst [vmem:[%s1147 + $0xa8] sm:$0xf] %v1253
        %v1255 = vld [vmem:[%s1147 + $0xac] sm:$0x1]
        %v1256 = vsel %vm584, %v970, %v1255
        %1257 = vst [vmem:[%s1147 + $0xac] sm:$0x1] %v1256
        %v1258 = vld [vmem:[%s1147 + $0xb0] sm:$0xf]
        %v1259 = vsel %vm1149, %v977, %v1258
        %1260 = vst [vmem:[%s1147 + $0xb0] sm:$0xf] %v1259
        %v1261 = vld [vmem:[%s1147 + $0xb4] sm:$0x1]
        %v1262 = vsel %vm584, %v978, %v1261
        %1263 = vst [vmem:[%s1147 + $0xb4] sm:$0x1] %v1262
        %v1264 = vld [vmem:[%s1147 + $0xb8] sm:$0xf]
        %v1265 = vsel %vm1149, %v985, %v1264
        %1266 = vst [vmem:[%s1147 + $0xb8] sm:$0xf] %v1265
        %v1267 = vld [vmem:[%s1147 + $0xbc] sm:$0x1]
        %v1268 = vsel %vm584, %v986, %v1267
        %1269 = vst [vmem:[%s1147 + $0xbc] sm:$0x1] %v1268
        %v1270 = vld [vmem:[%s1147 + $0xc0] sm:$0xf]
        %v1271 = vsel %vm1149, %v993, %v1270
        %1272 = vst [vmem:[%s1147 + $0xc0] sm:$0xf] %v1271
        %v1273 = vld [vmem:[%s1147 + $0xc4] sm:$0x1]
        %v1274 = vsel %vm584, %v994, %v1273
        %1275 = vst [vmem:[%s1147 + $0xc4] sm:$0x1] %v1274
        %v1276 = vld [vmem:[%s1147 + $0xc8] sm:$0xf]
        %v1277 = vsel %vm1149, %v1001, %v1276
        %1278 = vst [vmem:[%s1147 + $0xc8] sm:$0xf] %v1277
        %v1279 = vld [vmem:[%s1147 + $0xcc] sm:$0x1]
        %v1280 = vsel %vm584, %v1002, %v1279
        %1281 = vst [vmem:[%s1147 + $0xcc] sm:$0x1] %v1280
        %v1282 = vld [vmem:[%s1147 + $0xd0] sm:$0xf]
        %v1283 = vsel %vm1149, %v1009, %v1282
        %1284 = vst [vmem:[%s1147 + $0xd0] sm:$0xf] %v1283
        %v1285 = vld [vmem:[%s1147 + $0xd4] sm:$0x1]
        %v1286 = vsel %vm584, %v1010, %v1285
        %1287 = vst [vmem:[%s1147 + $0xd4] sm:$0x1] %v1286
        %v1288 = vld [vmem:[%s1147 + $0xd8] sm:$0xf]
        %v1289 = vsel %vm1149, %v1017, %v1288
        %1290 = vst [vmem:[%s1147 + $0xd8] sm:$0xf] %v1289
        %v1291 = vld [vmem:[%s1147 + $0xdc] sm:$0x1]
        %v1292 = vsel %vm584, %v1018, %v1291
        %1293 = vst [vmem:[%s1147 + $0xdc] sm:$0x1] %v1292
        %v1294 = vld [vmem:[%s1147 + $0xf0] sm:$0xf]
        %v1295 = vsel %vm1149, %v1025, %v1294
        %1296 = vst [vmem:[%s1147 + $0xf0] sm:$0xf] %v1295
        %v1297 = vld [vmem:[%s1147 + $0xf4] sm:$0x1]
        %v1298 = vsel %vm584, %v1026, %v1297
        %1299 = vst [vmem:[%s1147 + $0xf4] sm:$0x1] %v1298
        %v1300 = vld [vmem:[%s1147 + $0xf8] sm:$0xf]
        %v1301 = vsel %vm1149, %v1033, %v1300
        %1302 = vst [vmem:[%s1147 + $0xf8] sm:$0xf] %v1301
        %v1303 = vld [vmem:[%s1147 + $0xfc] sm:$0x1]
        %v1304 = vsel %vm584, %v1034, %v1303
        %1305 = vst [vmem:[%s1147 + $0xfc] sm:$0x1] %v1304
        %v1306 = vld [vmem:[%s1147 + $0x100] sm:$0xf]
        %v1307 = vsel %vm1149, %v1041, %v1306
        %1308 = vst [vmem:[%s1147 + $0x100] sm:$0xf] %v1307
        %v1309 = vld [vmem:[%s1147 + $0x104] sm:$0x1]
        %v1310 = vsel %vm584, %v1042, %v1309
        %1311 = vst [vmem:[%s1147 + $0x104] sm:$0x1] %v1310
        %v1312 = vld [vmem:[%s1147 + $0x108] sm:$0xf]
        %v1313 = vsel %vm1149, %v1049, %v1312
        %1314 = vst [vmem:[%s1147 + $0x108] sm:$0xf] %v1313
        %v1315 = vld [vmem:[%s1147 + $0x10c] sm:$0x1]
        %v1316 = vsel %vm584, %v1050, %v1315
        %1317 = vst [vmem:[%s1147 + $0x10c] sm:$0x1] %v1316
        %v1318 = vld [vmem:[%s1147 + $0x110] sm:$0xf]
        %v1319 = vsel %vm1149, %v1057, %v1318
        %1320 = vst [vmem:[%s1147 + $0x110] sm:$0xf] %v1319
        %v1321 = vld [vmem:[%s1147 + $0x114] sm:$0x1]
        %v1322 = vsel %vm584, %v1058, %v1321
        %1323 = vst [vmem:[%s1147 + $0x114] sm:$0x1] %v1322
        %v1324 = vld [vmem:[%s1147 + $0x118] sm:$0xf]
        %v1325 = vsel %vm1149, %v1065, %v1324
        %1326 = vst [vmem:[%s1147 + $0x118] sm:$0xf] %v1325
        %v1327 = vld [vmem:[%s1147 + $0x11c] sm:$0x1]
        %v1328 = vsel %vm584, %v1066, %v1327
        %1329 = vst [vmem:[%s1147 + $0x11c] sm:$0x1] %v1328
        %v1330 = vld [vmem:[%s1147 + $0x120] sm:$0xf]
        %v1331 = vsel %vm1149, %v1073, %v1330
        %1332 = vst [vmem:[%s1147 + $0x120] sm:$0xf] %v1331
        %v1333 = vld [vmem:[%s1147 + $0x124] sm:$0x1]
        %v1334 = vsel %vm584, %v1074, %v1333
        %1335 = vst [vmem:[%s1147 + $0x124] sm:$0x1] %v1334
        %v1336 = vld [vmem:[%s1147 + $0x128] sm:$0xf]
        %v1337 = vsel %vm1149, %v1081, %v1336
        %1338 = vst [vmem:[%s1147 + $0x128] sm:$0xf] %v1337
        %v1339 = vld [vmem:[%s1147 + $0x12c] sm:$0x1]
        %v1340 = vsel %vm584, %v1082, %v1339
        %1341 = vst [vmem:[%s1147 + $0x12c] sm:$0x1] %v1340
        %v1342 = vld [vmem:[#allocation2] sm:$0xf]
        %v1343 = vld [vmem:[#allocation2 + $0x8] sm:$0xf]
        %v1344 = vld [vmem:[#allocation2 + $0x10] sm:$0xf]
        %v1345 = vld [vmem:[#allocation2 + $0x18] sm:$0xf]
        %v1346 = vld [vmem:[#allocation2 + $0x20] sm:$0xf]
        %v1347 = vld [vmem:[#allocation2 + $0x28] sm:$0xf]
        %v1348 = vld [vmem:[#allocation2 + $0x30] sm:$0xf]
        %v1349 = vld [vmem:[#allocation2 + $0x38] sm:$0xf]
        %v1350 = vld [vmem:[#allocation2 + $0x50] sm:$0xf]
        %v1351 = vld [vmem:[#allocation2 + $0x58] sm:$0xf]
        %v1352 = vld [vmem:[#allocation2 + $0x60] sm:$0xf]
        %v1353 = vld [vmem:[#allocation2 + $0x68] sm:$0xf]
        %v1354 = vld [vmem:[#allocation2 + $0x70] sm:$0xf]
        %v1355 = vld [vmem:[#allocation2 + $0x78] sm:$0xf]
        %v1356 = vld [vmem:[#allocation2 + $0x80] sm:$0xf]
        %v1357 = vld [vmem:[#allocation2 + $0x88] sm:$0xf]
        %v1358 = vld [vmem:[#allocation2 + $0xa0] sm:$0xf]
        %v1359 = vld [vmem:[#allocation2 + $0xa8] sm:$0xf]
        %v1360 = vld [vmem:[#allocation2 + $0xb0] sm:$0xf]
        %v1361 = vld [vmem:[#allocation2 + $0xb8] sm:$0xf]
        %v1362 = vld [vmem:[#allocation2 + $0xc0] sm:$0xf]
        %v1363 = vld [vmem:[#allocation2 + $0xc8] sm:$0xf]
        %v1364 = vld [vmem:[#allocation2 + $0xd0] sm:$0xf]
        %v1365 = vld [vmem:[#allocation2 + $0xd8] sm:$0xf]
        %v1366 = vld [vmem:[#allocation2 + $0xf0] sm:$0xf]
        %v1367 = vld [vmem:[#allocation2 + $0xf8] sm:$0xf]
        %v1368 = vld [vmem:[#allocation2 + $0x100] sm:$0xf]
        %v1369 = vld [vmem:[#allocation2 + $0x108] sm:$0xf]
        %v1370 = vld [vmem:[#allocation2 + $0x110] sm:$0xf]
        %v1371 = vld [vmem:[#allocation2 + $0x118] sm:$0xf]
        %v1372 = vld [vmem:[#allocation2 + $0x120] sm:$0xf]
        %v1373 = vld [vmem:[#allocation2 + $0x128] sm:$0xf]
        %v1374 = vld [vmem:[#allocation6] sm:$0xf]
        %v1375 = vld [vmem:[#allocation6 + $0x4] sm:$0xf]
        %v1376 = vld [vmem:[#allocation6 + $0x8] sm:$0xf]
        %v1377 = vld [vmem:[#allocation6 + $0xc] sm:$0xf]
        %v1378 = vld [vmem:[#allocation6 + $0x10] sm:$0xf]
        %v1379 = vld [vmem:[#allocation6 + $0x14] sm:$0xf]
        %v1380 = vld [vmem:[#allocation6 + $0x18] sm:$0xf]
        %v1381 = vld [vmem:[#allocation6 + $0x1c] sm:$0xf]
        %v1382 = vld [vmem:[#allocation6 + $0x20] sm:$0xf]
        %v1383 = vld [vmem:[#allocation6 + $0x24] sm:$0xf]
        %v1384 = vld [vmem:[#allocation6 + $0x28] sm:$0xf]
        %v1385 = vld [vmem:[#allocation6 + $0x2c] sm:$0xf]
        %v1386 = vld [vmem:[#allocation6 + $0x30] sm:$0xf]
        %v1387 = vld [vmem:[#allocation6 + $0x34] sm:$0xf]
        %v1388 = vld [vmem:[#allocation6 + $0x38] sm:$0xf]
        %v1389 = vld [vmem:[#allocation6 + $0x3c] sm:$0xf]
        %v1390 = vld [vmem:[#allocation2 + $0x4] sm:$0x1]
        %v1391 = vld [vmem:[#allocation2 + $0xc] sm:$0x1]
        %v1392 = vld [vmem:[#allocation2 + $0x14] sm:$0x1]
        %v1393 = vld [vmem:[#allocation2 + $0x1c] sm:$0x1]
        %v1394 = vld [vmem:[#allocation2 + $0x24] sm:$0x1]
        %v1395 = vld [vmem:[#allocation2 + $0x2c] sm:$0x1]
        %v1396 = vld [vmem:[#allocation2 + $0x34] sm:$0x1]
        %v1397 = vld [vmem:[#allocation2 + $0x3c] sm:$0x1]
        %v1398 = vld [vmem:[#allocation2 + $0x54] sm:$0x1]
        %v1399 = vld [vmem:[#allocation2 + $0x5c] sm:$0x1]
        %v1400 = vld [vmem:[#allocation2 + $0x64] sm:$0x1]
        %v1401 = vld [vmem:[#allocation2 + $0x6c] sm:$0x1]
        %v1402 = vld [vmem:[#allocation2 + $0x74] sm:$0x1]
        %v1403 = vld [vmem:[#allocation2 + $0x7c] sm:$0x1]
        %v1404 = vld [vmem:[#allocation2 + $0x84] sm:$0x1]
        %v1405 = vld [vmem:[#allocation2 + $0x8c] sm:$0x1]
        %v1406 = vld [vmem:[#allocation2 + $0xa4] sm:$0x1]
        %v1407 = vld [vmem:[#allocation2 + $0xac] sm:$0x1]
        %v1408 = vld [vmem:[#allocation2 + $0xb4] sm:$0x1]
        %v1409 = vld [vmem:[#allocation2 + $0xbc] sm:$0x1]
        %v1410 = vld [vmem:[#allocation2 + $0xc4] sm:$0x1]
        %v1411 = vld [vmem:[#allocation2 + $0xcc] sm:$0x1]
        %v1412 = vld [vmem:[#allocation2 + $0xd4] sm:$0x1]
        %v1413 = vld [vmem:[#allocation2 + $0xdc] sm:$0x1]
        %v1414 = vld [vmem:[#allocation2 + $0xf4] sm:$0x1]
        %v1415 = vld [vmem:[#allocation2 + $0xfc] sm:$0x1]
        %v1416 = vld [vmem:[#allocation2 + $0x104] sm:$0x1]
        %v1417 = vld [vmem:[#allocation2 + $0x10c] sm:$0x1]
        %v1418 = vld [vmem:[#allocation2 + $0x114] sm:$0x1]
        %v1419 = vld [vmem:[#allocation2 + $0x11c] sm:$0x1]
        %v1420 = vld [vmem:[#allocation2 + $0x124] sm:$0x1]
        %v1421 = vld [vmem:[#allocation2 + $0x12c] sm:$0x1]
        %vm1422 = vsmask.f32 3328
        %vm1423 = vsmask.f32 7440
        %vm1424 = vmor %vm1422, %vm1423
        %v1426 = vshrl.u32 %v1342, 16
        %v1428 = vrot.slane %v1426, 4
        %v1429 = vshll.u32 %v1342, 16
        %v1431 = vrot.slane %v1429, 5
        %v1432 = vor.u32 %v1428, %v1431
        %v1433 = vrot.slane %v1432, 4
        %v1435 = vshll.u32 %v1390, 16
        %v1437 = vrot.slane %v1435, 5
        %v1438 = vsel %vm1424, %v1433, %v1437
        %v1440 = vshrl.u32 %v1343, 16
        %v1442 = vrot.slane %v1440, 4
        %v1443 = vshll.u32 %v1343, 16
        %v1445 = vrot.slane %v1443, 5
        %v1446 = vor.u32 %v1442, %v1445
        %v1447 = vrot.slane %v1446, 4
        %v1449 = vshll.u32 %v1391, 16
        %v1451 = vrot.slane %v1449, 5
        %v1452 = vsel %vm1424, %v1447, %v1451
        %v1454 = vshrl.u32 %v1344, 16
        %v1456 = vrot.slane %v1454, 4
        %v1457 = vshll.u32 %v1344, 16
        %v1459 = vrot.slane %v1457, 5
        %v1460 = vor.u32 %v1456, %v1459
        %v1461 = vrot.slane %v1460, 4
        %v1463 = vshll.u32 %v1392, 16
        %v1465 = vrot.slane %v1463, 5
        %v1466 = vsel %vm1424, %v1461, %v1465
        %v1468 = vshrl.u32 %v1345, 16
        %v1470 = vrot.slane %v1468, 4
        %v1471 = vshll.u32 %v1345, 16
        %v1473 = vrot.slane %v1471, 5
        %v1474 = vor.u32 %v1470, %v1473
        %v1475 = vrot.slane %v1474, 4
        %v1477 = vshll.u32 %v1393, 16
        %v1479 = vrot.slane %v1477, 5
        %v1480 = vsel %vm1424, %v1475, %v1479
        %v1482 = vshrl.u32 %v1346, 16
        %v1484 = vrot.slane %v1482, 4
        %v1485 = vshll.u32 %v1346, 16
        %v1487 = vrot.slane %v1485, 5
        %v1488 = vor.u32 %v1484, %v1487
        %v1489 = vrot.slane %v1488, 4
        %v1491 = vshll.u32 %v1394, 16
        %v1493 = vrot.slane %v1491, 5
        %v1494 = vsel %vm1424, %v1489, %v1493
        %v1496 = vshrl.u32 %v1347, 16
        %v1498 = vrot.slane %v1496, 4
        %v1499 = vshll.u32 %v1347, 16
        %v1501 = vrot.slane %v1499, 5
        %v1502 = vor.u32 %v1498, %v1501
        %v1503 = vrot.slane %v1502, 4
        %v1505 = vshll.u32 %v1395, 16
        %v1507 = vrot.slane %v1505, 5
        %v1508 = vsel %vm1424, %v1503, %v1507
        %v1510 = vshrl.u32 %v1348, 16
        %v1512 = vrot.slane %v1510, 4
        %v1513 = vshll.u32 %v1348, 16
        %v1515 = vrot.slane %v1513, 5
        %v1516 = vor.u32 %v1512, %v1515
        %v1517 = vrot.slane %v1516, 4
        %v1519 = vshll.u32 %v1396, 16
        %v1521 = vrot.slane %v1519, 5
        %v1522 = vsel %vm1424, %v1517, %v1521
        %v1524 = vshrl.u32 %v1349, 16
        %v1526 = vrot.slane %v1524, 4
        %v1527 = vshll.u32 %v1349, 16
        %v1529 = vrot.slane %v1527, 5
        %v1530 = vor.u32 %v1526, %v1529
        %v1531 = vrot.slane %v1530, 4
        %v1533 = vshll.u32 %v1397, 16
        %v1535 = vrot.slane %v1533, 5
        %v1536 = vsel %vm1424, %v1531, %v1535
        %v1538 = vshrl.u32 %v1350, 16
        %v1540 = vrot.slane %v1538, 4
        %v1541 = vshll.u32 %v1350, 16
        %v1543 = vrot.slane %v1541, 5
        %v1544 = vor.u32 %v1540, %v1543
        %v1545 = vrot.slane %v1544, 4
        %v1547 = vshll.u32 %v1398, 16
        %v1549 = vrot.slane %v1547, 5
        %v1550 = vsel %vm1424, %v1545, %v1549
        %v1552 = vshrl.u32 %v1351, 16
        %v1554 = vrot.slane %v1552, 4
        %v1555 = vshll.u32 %v1351, 16
        %v1557 = vrot.slane %v1555, 5
        %v1558 = vor.u32 %v1554, %v1557
        %v1559 = vrot.slane %v1558, 4
        %v1561 = vshll.u32 %v1399, 16
        %v1563 = vrot.slane %v1561, 5
        %v1564 = vsel %vm1424, %v1559, %v1563
        %v1566 = vshrl.u32 %v1352, 16
        %v1568 = vrot.slane %v1566, 4
        %v1569 = vshll.u32 %v1352, 16
        %v1571 = vrot.slane %v1569, 5
        %v1572 = vor.u32 %v1568, %v1571
        %v1573 = vrot.slane %v1572, 4
        %v1575 = vshll.u32 %v1400, 16
        %v1577 = vrot.slane %v1575, 5
        %v1578 = vsel %vm1424, %v1573, %v1577
        %v1580 = vshrl.u32 %v1353, 16
        %v1582 = vrot.slane %v1580, 4
        %v1583 = vshll.u32 %v1353, 16
        %v1585 = vrot.slane %v1583, 5
        %v1586 = vor.u32 %v1582, %v1585
        %v1587 = vrot.slane %v1586, 4
        %v1589 = vshll.u32 %v1401, 16
        %v1591 = vrot.slane %v1589, 5
        %v1592 = vsel %vm1424, %v1587, %v1591
        %v1594 = vshrl.u32 %v1354, 16
        %v1596 = vrot.slane %v1594, 4
        %v1597 = vshll.u32 %v1354, 16
        %v1599 = vrot.slane %v1597, 5
        %v1600 = vor.u32 %v1596, %v1599
        %v1601 = vrot.slane %v1600, 4
        %v1603 = vshll.u32 %v1402, 16
        %v1605 = vrot.slane %v1603, 5
        %v1606 = vsel %vm1424, %v1601, %v1605
        %v1608 = vshrl.u32 %v1355, 16
        %v1610 = vrot.slane %v1608, 4
        %v1611 = vshll.u32 %v1355, 16
        %v1613 = vrot.slane %v1611, 5
        %v1614 = vor.u32 %v1610, %v1613
        %v1615 = vrot.slane %v1614, 4
        %v1617 = vshll.u32 %v1403, 16
        %v1619 = vrot.slane %v1617, 5
        %v1620 = vsel %vm1424, %v1615, %v1619
        %v1622 = vshrl.u32 %v1356, 16
        %v1624 = vrot.slane %v1622, 4
        %v1625 = vshll.u32 %v1356, 16
        %v1627 = vrot.slane %v1625, 5
        %v1628 = vor.u32 %v1624, %v1627
        %v1629 = vrot.slane %v1628, 4
        %v1631 = vshll.u32 %v1404, 16
        %v1633 = vrot.slane %v1631, 5
        %v1634 = vsel %vm1424, %v1629, %v1633
        %v1636 = vshrl.u32 %v1357, 16
        %v1638 = vrot.slane %v1636, 4
        %v1639 = vshll.u32 %v1357, 16
        %v1641 = vrot.slane %v1639, 5
        %v1642 = vor.u32 %v1638, %v1641
        %v1643 = vrot.slane %v1642, 4
        %v1645 = vshll.u32 %v1405, 16
        %v1647 = vrot.slane %v1645, 5
        %v1648 = vsel %vm1424, %v1643, %v1647
        %v1650 = vshrl.u32 %v1358, 16
        %v1652 = vrot.slane %v1650, 4
        %v1653 = vshll.u32 %v1358, 16
        %v1655 = vrot.slane %v1653, 5
        %v1656 = vor.u32 %v1652, %v1655
        %v1657 = vrot.slane %v1656, 4
        %v1659 = vshll.u32 %v1406, 16
        %v1661 = vrot.slane %v1659, 5
        %v1662 = vsel %vm1424, %v1657, %v1661
        %v1664 = vshrl.u32 %v1359, 16
        %v1666 = vrot.slane %v1664, 4
        %v1667 = vshll.u32 %v1359, 16
        %v1669 = vrot.slane %v1667, 5
        %v1670 = vor.u32 %v1666, %v1669
        %v1671 = vrot.slane %v1670, 4
        %v1673 = vshll.u32 %v1407, 16
        %v1675 = vrot.slane %v1673, 5
        %v1676 = vsel %vm1424, %v1671, %v1675
        %v1678 = vshrl.u32 %v1360, 16
        %v1680 = vrot.slane %v1678, 4
        %v1681 = vshll.u32 %v1360, 16
        %v1683 = vrot.slane %v1681, 5
        %v1684 = vor.u32 %v1680, %v1683
        %v1685 = vrot.slane %v1684, 4
        %v1687 = vshll.u32 %v1408, 16
        %v1689 = vrot.slane %v1687, 5
        %v1690 = vsel %vm1424, %v1685, %v1689
        %v1692 = vshrl.u32 %v1361, 16
        %v1694 = vrot.slane %v1692, 4
        %v1695 = vshll.u32 %v1361, 16
        %v1697 = vrot.slane %v1695, 5
        %v1698 = vor.u32 %v1694, %v1697
        %v1699 = vrot.slane %v1698, 4
        %v1701 = vshll.u32 %v1409, 16
        %v1703 = vrot.slane %v1701, 5
        %v1704 = vsel %vm1424, %v1699, %v1703
        %v1706 = vshrl.u32 %v1362, 16
        %v1708 = vrot.slane %v1706, 4
        %v1709 = vshll.u32 %v1362, 16
        %v1711 = vrot.slane %v1709, 5
        %v1712 = vor.u32 %v1708, %v1711
        %v1713 = vrot.slane %v1712, 4
        %v1715 = vshll.u32 %v1410, 16
        %v1717 = vrot.slane %v1715, 5
        %v1718 = vsel %vm1424, %v1713, %v1717
        %v1720 = vshrl.u32 %v1363, 16
        %v1722 = vrot.slane %v1720, 4
        %v1723 = vshll.u32 %v1363, 16
        %v1725 = vrot.slane %v1723, 5
        %v1726 = vor.u32 %v1722, %v1725
        %v1727 = vrot.slane %v1726, 4
        %v1729 = vshll.u32 %v1411, 16
        %v1731 = vrot.slane %v1729, 5
        %v1732 = vsel %vm1424, %v1727, %v1731
        %v1734 = vshrl.u32 %v1364, 16
        %v1736 = vrot.slane %v1734, 4
        %v1737 = vshll.u32 %v1364, 16
        %v1739 = vrot.slane %v1737, 5
        %v1740 = vor.u32 %v1736, %v1739
        %v1741 = vrot.slane %v1740, 4
        %v1743 = vshll.u32 %v1412, 16
        %v1745 = vrot.slane %v1743, 5
        %v1746 = vsel %vm1424, %v1741, %v1745
        %v1748 = vshrl.u32 %v1365, 16
        %v1750 = vrot.slane %v1748, 4
        %v1751 = vshll.u32 %v1365, 16
        %v1753 = vrot.slane %v1751, 5
        %v1754 = vor.u32 %v1750, %v1753
        %v1755 = vrot.slane %v1754, 4
        %v1757 = vshll.u32 %v1413, 16
        %v1759 = vrot.slane %v1757, 5
        %v1760 = vsel %vm1424, %v1755, %v1759
        %v1762 = vshrl.u32 %v1366, 16
        %v1764 = vrot.slane %v1762, 4
        %v1765 = vshll.u32 %v1366, 16
        %v1767 = vrot.slane %v1765, 5
        %v1768 = vor.u32 %v1764, %v1767
        %v1769 = vrot.slane %v1768, 4
        %v1771 = vshll.u32 %v1414, 16
        %v1773 = vrot.slane %v1771, 5
        %v1774 = vsel %vm1424, %v1769, %v1773
        %v1776 = vshrl.u32 %v1367, 16
        %v1778 = vrot.slane %v1776, 4
        %v1779 = vshll.u32 %v1367, 16
        %v1781 = vrot.slane %v1779, 5
        %v1782 = vor.u32 %v1778, %v1781
        %v1783 = vrot.slane %v1782, 4
        %v1785 = vshll.u32 %v1415, 16
        %v1787 = vrot.slane %v1785, 5
        %v1788 = vsel %vm1424, %v1783, %v1787
        %v1790 = vshrl.u32 %v1368, 16
        %v1792 = vrot.slane %v1790, 4
        %v1793 = vshll.u32 %v1368, 16
        %v1795 = vrot.slane %v1793, 5
        %v1796 = vor.u32 %v1792, %v1795
        %v1797 = vrot.slane %v1796, 4
        %v1799 = vshll.u32 %v1416, 16
        %v1801 = vrot.slane %v1799, 5
        %v1802 = vsel %vm1424, %v1797, %v1801
        %v1804 = vshrl.u32 %v1369, 16
        %v1806 = vrot.slane %v1804, 4
        %v1807 = vshll.u32 %v1369, 16
        %v1809 = vrot.slane %v1807, 5
        %v1810 = vor.u32 %v1806, %v1809
        %v1811 = vrot.slane %v1810, 4
        %v1813 = vshll.u32 %v1417, 16
        %v1815 = vrot.slane %v1813, 5
        %v1816 = vsel %vm1424, %v1811, %v1815
        %v1818 = vshrl.u32 %v1370, 16
        %v1820 = vrot.slane %v1818, 4
        %v1821 = vshll.u32 %v1370, 16
        %v1823 = vrot.slane %v1821, 5
        %v1824 = vor.u32 %v1820, %v1823
        %v1825 = vrot.slane %v1824, 4
        %v1827 = vshll.u32 %v1418, 16
        %v1829 = vrot.slane %v1827, 5
        %v1830 = vsel %vm1424, %v1825, %v1829
        %v1832 = vshrl.u32 %v1371, 16
        %v1834 = vrot.slane %v1832, 4
        %v1835 = vshll.u32 %v1371, 16
        %v1837 = vrot.slane %v1835, 5
        %v1838 = vor.u32 %v1834, %v1837
        %v1839 = vrot.slane %v1838, 4
        %v1841 = vshll.u32 %v1419, 16
        %v1843 = vrot.slane %v1841, 5
        %v1844 = vsel %vm1424, %v1839, %v1843
        %v1846 = vshrl.u32 %v1372, 16
        %v1848 = vrot.slane %v1846, 4
        %v1849 = vshll.u32 %v1372, 16
        %v1851 = vrot.slane %v1849, 5
        %v1852 = vor.u32 %v1848, %v1851
        %v1853 = vrot.slane %v1852, 4
        %v1855 = vshll.u32 %v1420, 16
        %v1857 = vrot.slane %v1855, 5
        %v1858 = vsel %vm1424, %v1853, %v1857
        %v1860 = vshrl.u32 %v1373, 16
        %v1862 = vrot.slane %v1860, 4
        %v1863 = vshll.u32 %v1373, 16
        %v1865 = vrot.slane %v1863, 5
        %v1866 = vor.u32 %v1862, %v1865
        %v1867 = vrot.slane %v1866, 4
        %v1869 = vshll.u32 %v1421, 16
        %v1871 = vrot.slane %v1869, 5
        %v1872 = vsel %vm1424, %v1867, %v1871
        %v1873 = vld [vmem:[#allocation6 + $0x40] sm:$0xf]
        %v1874 = vld [vmem:[#allocation6 + $0x44] sm:$0xf]
        %v1875 = vld [vmem:[#allocation6 + $0x48] sm:$0xf]
        %v1876 = vld [vmem:[#allocation6 + $0x4c] sm:$0xf]
        %v1877 = vld [vmem:[#allocation6 + $0x50] sm:$0xf]
        %v1878 = vld [vmem:[#allocation6 + $0x54] sm:$0xf]
        %v1879 = vld [vmem:[#allocation6 + $0x58] sm:$0xf]
        %v1880 = vld [vmem:[#allocation6 + $0x5c] sm:$0xf]
        %v1881 = vld [vmem:[#allocation6 + $0x60] sm:$0xf]
        %v1882 = vld [vmem:[#allocation6 + $0x64] sm:$0xf]
        %v1883 = vld [vmem:[#allocation6 + $0x68] sm:$0xf]
        %v1884 = vld [vmem:[#allocation6 + $0x6c] sm:$0xf]
        %v1885 = vld [vmem:[#allocation6 + $0x70] sm:$0xf]
        %v1886 = vld [vmem:[#allocation6 + $0x74] sm:$0xf]
        %v1887 = vld [vmem:[#allocation6 + $0x78] sm:$0xf]
        %v1888 = vld [vmem:[#allocation6 + $0x7c] sm:$0xf]
        %v1889 = vunpack.c.l.b16 %v1438
        %v1890 = vunpack.c.l.b16 %v1452
        %v1891 = vunpack.c.l.b16 %v1466
        %v1892 = vunpack.c.l.b16 %v1480
        %v1893 = vunpack.c.l.b16 %v1494
        %v1894 = vunpack.c.l.b16 %v1508
        %v1895 = vunpack.c.l.b16 %v1522
        %v1896 = vunpack.c.l.b16 %v1536
        %v1897 = vunpack.c.l.b16 %v1550
        %v1898 = vunpack.c.l.b16 %v1564
        %v1899 = vunpack.c.l.b16 %v1578
        %v1900 = vunpack.c.l.b16 %v1592
        %v1901 = vunpack.c.l.b16 %v1606
        %v1902 = vunpack.c.l.b16 %v1620
        %v1903 = vunpack.c.l.b16 %v1634
        %v1904 = vunpack.c.l.b16 %v1648
        %v1905 = vunpack.c.l.b16 %v1662
        %v1906 = vunpack.c.l.b16 %v1676
        %v1907 = vunpack.c.l.b16 %v1690
        %v1908 = vunpack.c.l.b16 %v1704
        %v1909 = vunpack.c.l.b16 %v1718
        %v1910 = vunpack.c.l.b16 %v1732
        %v1911 = vunpack.c.l.b16 %v1746
        %v1912 = vunpack.c.l.b16 %v1760
        %v1913 = vunpack.c.l.b16 %v1774
        %v1914 = vunpack.c.l.b16 %v1788
        %v1915 = vunpack.c.l.b16 %v1802
        %v1916 = vunpack.c.l.b16 %v1816
        %v1917 = vunpack.c.l.b16 %v1830
        %v1918 = vunpack.c.l.b16 %v1844
        %v1919 = vunpack.c.l.b16 %v1858
        %v1920 = vunpack.c.l.b16 %v1872
        %v1921 = vpack.c.b16 %v1890, %v1889
        %v1922 = vpack.c.b16 %v1892, %v1891
        %v1923 = vpack.c.b16 %v1894, %v1893
        %v1924 = vpack.c.b16 %v1896, %v1895
        %v1925 = vpack.c.b16 %v1898, %v1897
        %v1926 = vpack.c.b16 %v1900, %v1899
        %v1927 = vpack.c.b16 %v1902, %v1901
        %v1928 = vpack.c.b16 %v1904, %v1903
        %v1929 = vpack.c.b16 %v1906, %v1905
        %v1930 = vpack.c.b16 %v1908, %v1907
        %v1931 = vpack.c.b16 %v1910, %v1909
        %v1932 = vpack.c.b16 %v1912, %v1911
        %v1933 = vpack.c.b16 %v1914, %v1913
        %v1934 = vpack.c.b16 %v1916, %v1915
        %v1935 = vpack.c.b16 %v1918, %v1917
        %v1936 = vpack.c.b16 %v1920, %v1919
        %v1969 = vunpack.c.l.b16 %v1873
        %v1970 = vunpack.c.l.b16 %v1874
        %v1971 = vunpack.c.l.b16 %v1875
        %v1972 = vunpack.c.l.b16 %v1876
        %v1973 = vunpack.c.l.b16 %v1877
        %v1974 = vunpack.c.l.b16 %v1878
        %v1975 = vunpack.c.l.b16 %v1879
        %v1976 = vunpack.c.l.b16 %v1880
        %v1977 = vunpack.c.l.b16 %v1881
        %v1978 = vunpack.c.l.b16 %v1882
        %v1979 = vunpack.c.l.b16 %v1883
        %v1980 = vunpack.c.l.b16 %v1884
        %v1981 = vunpack.c.l.b16 %v1885
        %v1982 = vunpack.c.l.b16 %v1886
        %v1983 = vunpack.c.l.b16 %v1887
        %v1984 = vunpack.c.l.b16 %v1888
        %v1985 = vpack.c.b16 %v1970, %v1969
        %v1986 = vpack.c.b16 %v1972, %v1971
        %v1987 = vpack.c.b16 %v1974, %v1973
        %v1988 = vpack.c.b16 %v1976, %v1975
        %v1989 = vpack.c.b16 %v1978, %v1977
        %v1990 = vpack.c.b16 %v1980, %v1979
        %v1991 = vpack.c.b16 %v1982, %v1981
        %v1992 = vpack.c.b16 %v1984, %v1983
        %2001 = vmatpush.bf16.msra.mxu0 %v1992
        %2002 = vmatpush.bf16.msra.mxu0 %v1991
        %2003 = vmatpush.bf16.msra.mxu0 %v1990
        %2004 = vmatpush.bf16.msra.mxu0 %v1989
        %2005 = vmatpush.bf16.msra.mxu0 %v1988
        %2006 = vmatpush.bf16.msra.mxu0 %v1987
        %2007 = vmatpush.bf16.msra.mxu0 %v1986
        %2008 = vmatpush.bf16.msra.mxu0 %v1985
        %2009 = vmatmul.bf16.gmra.mxu0 %v1921
        %v2010 = vpop.f32.mrf.mxu0
        %v2011 = vadd.f32 0.0, %v2010
        %v2012 = vpop.f32.mrf.mxu0
        %v2013 = vadd.f32 0.0, %v2012
        %2014 = vmatmul.bf16.gmra.mxu0 %v1922
        %v2015 = vpop.f32.mrf.mxu0
        %v2016 = vadd.f32 0.0, %v2015
        %v2017 = vpop.f32.mrf.mxu0
        %v2018 = vadd.f32 0.0, %v2017
        %2019 = vmatmul.bf16.gmra.mxu0 %v1923
        %v2020 = vpop.f32.mrf.mxu0
        %v2021 = vadd.f32 0.0, %v2020
        %v2022 = vpop.f32.mrf.mxu0
        %v2023 = vadd.f32 0.0, %v2022
        %2024 = vmatmul.bf16.gmra.mxu0 %v1924
        %v2025 = vpop.f32.mrf.mxu0
        %v2026 = vadd.f32 0.0, %v2025
        %v2027 = vpop.f32.mrf.mxu0
        %v2028 = vadd.f32 0.0, %v2027
        %2029 = vmatmul.bf16.gmra.mxu0 %v1925
        %v2030 = vpop.f32.mrf.mxu0
        %v2031 = vadd.f32 0.0, %v2030
        %v2032 = vpop.f32.mrf.mxu0
        %v2033 = vadd.f32 0.0, %v2032
        %2034 = vmatmul.bf16.gmra.mxu0 %v1926
        %v2035 = vpop.f32.mrf.mxu0
        %v2036 = vadd.f32 0.0, %v2035
        %v2037 = vpop.f32.mrf.mxu0
        %v2038 = vadd.f32 0.0, %v2037
        %2039 = vmatmul.bf16.gmra.mxu0 %v1927
        %v2040 = vpop.f32.mrf.mxu0
        %v2041 = vadd.f32 0.0, %v2040
        %v2042 = vpop.f32.mrf.mxu0
        %v2043 = vadd.f32 0.0, %v2042
        %2044 = vmatmul.bf16.gmra.mxu0 %v1928
        %v2045 = vpop.f32.mrf.mxu0
        %v2046 = vadd.f32 0.0, %v2045
        %v2047 = vpop.f32.mrf.mxu0
        %v2048 = vadd.f32 0.0, %v2047
        %2049 = vmatmul.bf16.gmra.mxu0 %v1929
        %v2050 = vpop.f32.mrf.mxu0
        %v2051 = vadd.f32 0.0, %v2050
        %v2052 = vpop.f32.mrf.mxu0
        %v2053 = vadd.f32 0.0, %v2052
        %2054 = vmatmul.bf16.gmra.mxu0 %v1930
        %v2055 = vpop.f32.mrf.mxu0
        %v2056 = vadd.f32 0.0, %v2055
        %v2057 = vpop.f32.mrf.mxu0
        %v2058 = vadd.f32 0.0, %v2057
        %2059 = vmatmul.bf16.gmra.mxu0 %v1931
        %v2060 = vpop.f32.mrf.mxu0
        %v2061 = vadd.f32 0.0, %v2060
        %v2062 = vpop.f32.mrf.mxu0
        %v2063 = vadd.f32 0.0, %v2062
        %2064 = vmatmul.bf16.gmra.mxu0 %v1932
        %v2065 = vpop.f32.mrf.mxu0
        %v2066 = vadd.f32 0.0, %v2065
        %v2067 = vpop.f32.mrf.mxu0
        %v2068 = vadd.f32 0.0, %v2067
        %2069 = vmatmul.bf16.gmra.mxu0 %v1933
        %v2070 = vpop.f32.mrf.mxu0
        %v2071 = vadd.f32 0.0, %v2070
        %v2072 = vpop.f32.mrf.mxu0
        %v2073 = vadd.f32 0.0, %v2072
        %2074 = vmatmul.bf16.gmra.mxu0 %v1934
        %v2075 = vpop.f32.mrf.mxu0
        %v2076 = vadd.f32 0.0, %v2075
        %v2077 = vpop.f32.mrf.mxu0
        %v2078 = vadd.f32 0.0, %v2077
        %2079 = vmatmul.bf16.gmra.mxu0 %v1935
        %v2080 = vpop.f32.mrf.mxu0
        %v2081 = vadd.f32 0.0, %v2080
        %v2082 = vpop.f32.mrf.mxu0
        %v2083 = vadd.f32 0.0, %v2082
        %2084 = vmatmul.bf16.gmra.mxu0 %v1936
        %v2085 = vpop.f32.mrf.mxu0
        %v2086 = vadd.f32 0.0, %v2085
        %v2087 = vpop.f32.mrf.mxu0
        %v2088 = vadd.f32 0.0, %v2087
        %2089 = vdwg.mxu0
        %v2122 = vunpack.c.l.b16 %v1342
        %v2123 = vunpack.c.l.b16 %v1343
        %v2124 = vunpack.c.l.b16 %v1344
        %v2125 = vunpack.c.l.b16 %v1345
        %v2126 = vunpack.c.l.b16 %v1346
        %v2127 = vunpack.c.l.b16 %v1347
        %v2128 = vunpack.c.l.b16 %v1348
        %v2129 = vunpack.c.l.b16 %v1349
        %v2130 = vunpack.c.l.b16 %v1350
        %v2131 = vunpack.c.l.b16 %v1351
        %v2132 = vunpack.c.l.b16 %v1352
        %v2133 = vunpack.c.l.b16 %v1353
        %v2134 = vunpack.c.l.b16 %v1354
        %v2135 = vunpack.c.l.b16 %v1355
        %v2136 = vunpack.c.l.b16 %v1356
        %v2137 = vunpack.c.l.b16 %v1357
        %v2138 = vunpack.c.l.b16 %v1358
        %v2139 = vunpack.c.l.b16 %v1359
        %v2140 = vunpack.c.l.b16 %v1360
        %v2141 = vunpack.c.l.b16 %v1361
        %v2142 = vunpack.c.l.b16 %v1362
        %v2143 = vunpack.c.l.b16 %v1363
        %v2144 = vunpack.c.l.b16 %v1364
        %v2145 = vunpack.c.l.b16 %v1365
        %v2146 = vunpack.c.l.b16 %v1366
        %v2147 = vunpack.c.l.b16 %v1367
        %v2148 = vunpack.c.l.b16 %v1368
        %v2149 = vunpack.c.l.b16 %v1369
        %v2150 = vunpack.c.l.b16 %v1370
        %v2151 = vunpack.c.l.b16 %v1371
        %v2152 = vunpack.c.l.b16 %v1372
        %v2153 = vunpack.c.l.b16 %v1373
        %v2154 = vpack.c.b16 %v2123, %v2122
        %v2155 = vpack.c.b16 %v2125, %v2124
        %v2156 = vpack.c.b16 %v2127, %v2126
        %v2157 = vpack.c.b16 %v2129, %v2128
        %v2158 = vpack.c.b16 %v2131, %v2130
        %v2159 = vpack.c.b16 %v2133, %v2132
        %v2160 = vpack.c.b16 %v2135, %v2134
        %v2161 = vpack.c.b16 %v2137, %v2136
        %v2162 = vpack.c.b16 %v2139, %v2138
        %v2163 = vpack.c.b16 %v2141, %v2140
        %v2164 = vpack.c.b16 %v2143, %v2142
        %v2165 = vpack.c.b16 %v2145, %v2144
        %v2166 = vpack.c.b16 %v2147, %v2146
        %v2167 = vpack.c.b16 %v2149, %v2148
        %v2168 = vpack.c.b16 %v2151, %v2150
        %v2169 = vpack.c.b16 %v2153, %v2152
        %v2202 = vunpack.c.l.b16 %v1374
        %v2203 = vunpack.c.l.b16 %v1375
        %v2204 = vunpack.c.l.b16 %v1376
        %v2205 = vunpack.c.l.b16 %v1377
        %v2206 = vunpack.c.l.b16 %v1378
        %v2207 = vunpack.c.l.b16 %v1379
        %v2208 = vunpack.c.l.b16 %v1380
        %v2209 = vunpack.c.l.b16 %v1381
        %v2210 = vunpack.c.l.b16 %v1382
        %v2211 = vunpack.c.l.b16 %v1383
        %v2212 = vunpack.c.l.b16 %v1384
        %v2213 = vunpack.c.l.b16 %v1385
        %v2214 = vunpack.c.l.b16 %v1386
        %v2215 = vunpack.c.l.b16 %v1387
        %v2216 = vunpack.c.l.b16 %v1388
        %v2217 = vunpack.c.l.b16 %v1389
        %v2218 = vpack.c.b16 %v2203, %v2202
        %v2219 = vpack.c.b16 %v2205, %v2204
        %v2220 = vpack.c.b16 %v2207, %v2206
        %v2221 = vpack.c.b16 %v2209, %v2208
        %v2222 = vpack.c.b16 %v2211, %v2210
        %v2223 = vpack.c.b16 %v2213, %v2212
        %v2224 = vpack.c.b16 %v2215, %v2214
        %v2225 = vpack.c.b16 %v2217, %v2216
        %2234 = vmatpush.bf16.msra.mxu0 %v2225
        %2235 = vmatpush.bf16.msra.mxu0 %v2224
        %2236 = vmatpush.bf16.msra.mxu0 %v2223
        %2237 = vmatpush.bf16.msra.mxu0 %v2222
        %2238 = vmatpush.bf16.msra.mxu0 %v2221
        %2239 = vmatpush.bf16.msra.mxu0 %v2220
        %2240 = vmatpush.bf16.msra.mxu0 %v2219
        %2241 = vmatpush.bf16.msra.mxu0 %v2218
        %2242 = vmatmul.bf16.gmra.mxu0 %v2154
        %v2243 = vpop.f32.mrf.mxu0
        %v2244 = vadd.f32 %v2011, %v2243
        %v2245 = vpop.f32.mrf.mxu0
        %v2246 = vadd.f32 %v2013, %v2245
        %2247 = vmatmul.bf16.gmra.mxu0 %v2155
        %v2248 = vpop.f32.mrf.mxu0
        %v2249 = vadd.f32 %v2016, %v2248
        %v2250 = vpop.f32.mrf.mxu0
        %v2251 = vadd.f32 %v2018, %v2250
        %2252 = vmatmul.bf16.gmra.mxu0 %v2156
        %v2253 = vpop.f32.mrf.mxu0
        %v2254 = vadd.f32 %v2021, %v2253
        %v2255 = vpop.f32.mrf.mxu0
        %v2256 = vadd.f32 %v2023, %v2255
        %2257 = vmatmul.bf16.gmra.mxu0 %v2157
        %v2258 = vpop.f32.mrf.mxu0
        %v2259 = vadd.f32 %v2026, %v2258
        %v2260 = vpop.f32.mrf.mxu0
        %v2261 = vadd.f32 %v2028, %v2260
        %2262 = vmatmul.bf16.gmra.mxu0 %v2158
        %v2263 = vpop.f32.mrf.mxu0
        %v2264 = vadd.f32 %v2031, %v2263
        %v2265 = vpop.f32.mrf.mxu0
        %v2266 = vadd.f32 %v2033, %v2265
        %2267 = vmatmul.bf16.gmra.mxu0 %v2159
        %v2268 = vpop.f32.mrf.mxu0
        %v2269 = vadd.f32 %v2036, %v2268
        %v2270 = vpop.f32.mrf.mxu0
        %v2271 = vadd.f32 %v2038, %v2270
        %2272 = vmatmul.bf16.gmra.mxu0 %v2160
        %v2273 = vpop.f32.mrf.mxu0
        %v2274 = vadd.f32 %v2041, %v2273
        %v2275 = vpop.f32.mrf.mxu0
        %v2276 = vadd.f32 %v2043, %v2275
        %2277 = vmatmul.bf16.gmra.mxu0 %v2161
        %v2278 = vpop.f32.mrf.mxu0
        %v2279 = vadd.f32 %v2046, %v2278
        %v2280 = vpop.f32.mrf.mxu0
        %v2281 = vadd.f32 %v2048, %v2280
        %2282 = vmatmul.bf16.gmra.mxu0 %v2162
        %v2283 = vpop.f32.mrf.mxu0
        %v2284 = vadd.f32 %v2051, %v2283
        %v2285 = vpop.f32.mrf.mxu0
        %v2286 = vadd.f32 %v2053, %v2285
        %2287 = vmatmul.bf16.gmra.mxu0 %v2163
        %v2288 = vpop.f32.mrf.mxu0
        %v2289 = vadd.f32 %v2056, %v2288
        %v2290 = vpop.f32.mrf.mxu0
        %v2291 = vadd.f32 %v2058, %v2290
        %2292 = vmatmul.bf16.gmra.mxu0 %v2164
        %v2293 = vpop.f32.mrf.mxu0
        %v2294 = vadd.f32 %v2061, %v2293
        %v2295 = vpop.f32.mrf.mxu0
        %v2296 = vadd.f32 %v2063, %v2295
        %2297 = vmatmul.bf16.gmra.mxu0 %v2165
        %v2298 = vpop.f32.mrf.mxu0
        %v2299 = vadd.f32 %v2066, %v2298
        %v2300 = vpop.f32.mrf.mxu0
        %v2301 = vadd.f32 %v2068, %v2300
        %2302 = vmatmul.bf16.gmra.mxu0 %v2166
        %v2303 = vpop.f32.mrf.mxu0
        %v2304 = vadd.f32 %v2071, %v2303
        %v2305 = vpop.f32.mrf.mxu0
        %v2306 = vadd.f32 %v2073, %v2305
        %2307 = vmatmul.bf16.gmra.mxu0 %v2167
        %v2308 = vpop.f32.mrf.mxu0
        %v2309 = vadd.f32 %v2076, %v2308
        %v2310 = vpop.f32.mrf.mxu0
        %v2311 = vadd.f32 %v2078, %v2310
        %2312 = vmatmul.bf16.gmra.mxu0 %v2168
        %v2313 = vpop.f32.mrf.mxu0
        %v2314 = vadd.f32 %v2081, %v2313
        %v2315 = vpop.f32.mrf.mxu0
        %v2316 = vadd.f32 %v2083, %v2315
        %2317 = vmatmul.bf16.gmra.mxu0 %v2169
        %v2318 = vpop.f32.mrf.mxu0
        %v2319 = vadd.f32 %v2086, %v2318
        %v2320 = vpop.f32.mrf.mxu0
        %v2321 = vadd.f32 %v2088, %v2320
        %2322 = vdwg.mxu0
        %v2323 = vld [vmem:[#allocation2] sm:$0xe]
        %v2324 = vld [vmem:[#allocation2 + $0x8] sm:$0xe]
        %v2325 = vld [vmem:[#allocation2 + $0x10] sm:$0xe]
        %v2326 = vld [vmem:[#allocation2 + $0x18] sm:$0xe]
        %v2327 = vld [vmem:[#allocation2 + $0x20] sm:$0xe]
        %v2328 = vld [vmem:[#allocation2 + $0x28] sm:$0xe]
        %v2329 = vld [vmem:[#allocation2 + $0x30] sm:$0xe]
        %v2330 = vld [vmem:[#allocation2 + $0x38] sm:$0xe]
        %v2331 = vld [vmem:[#allocation2 + $0x50] sm:$0xe]
        %v2332 = vld [vmem:[#allocation2 + $0x58] sm:$0xe]
        %v2333 = vld [vmem:[#allocation2 + $0x60] sm:$0xe]
        %v2334 = vld [vmem:[#allocation2 + $0x68] sm:$0xe]
        %v2335 = vld [vmem:[#allocation2 + $0x70] sm:$0xe]
        %v2336 = vld [vmem:[#allocation2 + $0x78] sm:$0xe]
        %v2337 = vld [vmem:[#allocation2 + $0x80] sm:$0xe]
        %v2338 = vld [vmem:[#allocation2 + $0x88] sm:$0xe]
        %v2339 = vld [vmem:[#allocation2 + $0xa0] sm:$0xe]
        %v2340 = vld [vmem:[#allocation2 + $0xa8] sm:$0xe]
        %v2341 = vld [vmem:[#allocation2 + $0xb0] sm:$0xe]
        %v2342 = vld [vmem:[#allocation2 + $0xb8] sm:$0xe]
        %v2343 = vld [vmem:[#allocation2 + $0xc0] sm:$0xe]
        %v2344 = vld [vmem:[#allocation2 + $0xc8] sm:$0xe]
        %v2345 = vld [vmem:[#allocation2 + $0xd0] sm:$0xe]
        %v2346 = vld [vmem:[#allocation2 + $0xd8] sm:$0xe]
        %v2347 = vld [vmem:[#allocation2 + $0xf0] sm:$0xe]
        %v2348 = vld [vmem:[#allocation2 + $0xf8] sm:$0xe]
        %v2349 = vld [vmem:[#allocation2 + $0x100] sm:$0xe]
        %v2350 = vld [vmem:[#allocation2 + $0x108] sm:$0xe]
        %v2351 = vld [vmem:[#allocation2 + $0x110] sm:$0xe]
        %v2352 = vld [vmem:[#allocation2 + $0x118] sm:$0xe]
        %v2353 = vld [vmem:[#allocation2 + $0x120] sm:$0xe]
        %v2354 = vld [vmem:[#allocation2 + $0x128] sm:$0xe]
        %vm2419 = vcmask 1042432
        %vm2420 = vcmask 1046532
        %vm2421 = vmor %vm2419, %vm2420
        %v2422 = vrot.slane %v2323, 5
        %v2423 = vrot.slane %v2422, 4
        %v2424 = vrot.slane %v1390, 5
        %v2425 = vsel %vm2421, %v2423, %v2424
        %v2426 = vrot.slane %v2324, 5
        %v2427 = vrot.slane %v2426, 4
        %v2428 = vrot.slane %v1391, 5
        %v2429 = vsel %vm2421, %v2427, %v2428
        %v2430 = vrot.slane %v2325, 5
        %v2431 = vrot.slane %v2430, 4
        %v2432 = vrot.slane %v1392, 5
        %v2433 = vsel %vm2421, %v2431, %v2432
        %v2434 = vrot.slane %v2326, 5
        %v2435 = vrot.slane %v2434, 4
        %v2436 = vrot.slane %v1393, 5
        %v2437 = vsel %vm2421, %v2435, %v2436
        %v2438 = vrot.slane %v2327, 5
        %v2439 = vrot.slane %v2438, 4
        %v2440 = vrot.slane %v1394, 5
        %v2441 = vsel %vm2421, %v2439, %v2440
        %v2442 = vrot.slane %v2328, 5
        %v2443 = vrot.slane %v2442, 4
        %v2444 = vrot.slane %v1395, 5
        %v2445 = vsel %vm2421, %v2443, %v2444
        %v2446 = vrot.slane %v2329, 5
        %v2447 = vrot.slane %v2446, 4
        %v2448 = vrot.slane %v1396, 5
        %v2449 = vsel %vm2421, %v2447, %v2448
        %v2450 = vrot.slane %v2330, 5
        %v2451 = vrot.slane %v2450, 4
        %v2452 = vrot.slane %v1397, 5
        %v2453 = vsel %vm2421, %v2451, %v2452
        %v2454 = vrot.slane %v2331, 5
        %v2455 = vrot.slane %v2454, 4
        %v2456 = vrot.slane %v1398, 5
        %v2457 = vsel %vm2421, %v2455, %v2456
        %v2458 = vrot.slane %v2332, 5
        %v2459 = vrot.slane %v2458, 4
        %v2460 = vrot.slane %v1399, 5
        %v2461 = vsel %vm2421, %v2459, %v2460
        %v2462 = vrot.slane %v2333, 5
        %v2463 = vrot.slane %v2462, 4
        %v2464 = vrot.slane %v1400, 5
        %v2465 = vsel %vm2421, %v2463, %v2464
        %v2466 = vrot.slane %v2334, 5
        %v2467 = vrot.slane %v2466, 4
        %v2468 = vrot.slane %v1401, 5
        %v2469 = vsel %vm2421, %v2467, %v2468
        %v2470 = vrot.slane %v2335, 5
        %v2471 = vrot.slane %v2470, 4
        %v2472 = vrot.slane %v1402, 5
        %v2473 = vsel %vm2421, %v2471, %v2472
        %v2474 = vrot.slane %v2336, 5
        %v2475 = vrot.slane %v2474, 4
        %v2476 = vrot.slane %v1403, 5
        %v2477 = vsel %vm2421, %v2475, %v2476
        %v2478 = vrot.slane %v2337, 5
        %v2479 = vrot.slane %v2478, 4
        %v2480 = vrot.slane %v1404, 5
        %v2481 = vsel %vm2421, %v2479, %v2480
        %v2482 = vrot.slane %v2338, 5
        %v2483 = vrot.slane %v2482, 4
        %v2484 = vrot.slane %v1405, 5
        %v2485 = vsel %vm2421, %v2483, %v2484
        %v2486 = vrot.slane %v2339, 5
        %v2487 = vrot.slane %v2486, 4
        %v2488 = vrot.slane %v1406, 5
        %v2489 = vsel %vm2421, %v2487, %v2488
        %v2490 = vrot.slane %v2340, 5
        %v2491 = vrot.slane %v2490, 4
        %v2492 = vrot.slane %v1407, 5
        %v2493 = vsel %vm2421, %v2491, %v2492
        %v2494 = vrot.slane %v2341, 5
        %v2495 = vrot.slane %v2494, 4
        %v2496 = vrot.slane %v1408, 5
        %v2497 = vsel %vm2421, %v2495, %v2496
        %v2498 = vrot.slane %v2342, 5
        %v2499 = vrot.slane %v2498, 4
        %v2500 = vrot.slane %v1409, 5
        %v2501 = vsel %vm2421, %v2499, %v2500
        %v2502 = vrot.slane %v2343, 5
        %v2503 = vrot.slane %v2502, 4
        %v2504 = vrot.slane %v1410, 5
        %v2505 = vsel %vm2421, %v2503, %v2504
        %v2506 = vrot.slane %v2344, 5
        %v2507 = vrot.slane %v2506, 4
        %v2508 = vrot.slane %v1411, 5
        %v2509 = vsel %vm2421, %v2507, %v2508
        %v2510 = vrot.slane %v2345, 5
        %v2511 = vrot.slane %v2510, 4
        %v2512 = vrot.slane %v1412, 5
        %v2513 = vsel %vm2421, %v2511, %v2512
        %v2514 = vrot.slane %v2346, 5
        %v2515 = vrot.slane %v2514, 4
        %v2516 = vrot.slane %v1413, 5
        %v2517 = vsel %vm2421, %v2515, %v2516
        %v2518 = vrot.slane %v2347, 5
        %v2519 = vrot.slane %v2518, 4
        %v2520 = vrot.slane %v1414, 5
        %v2521 = vsel %vm2421, %v2519, %v2520
        %v2522 = vrot.slane %v2348, 5
        %v2523 = vrot.slane %v2522, 4
        %v2524 = vrot.slane %v1415, 5
        %v2525 = vsel %vm2421, %v2523, %v2524
        %v2526 = vrot.slane %v2349, 5
        %v2527 = vrot.slane %v2526, 4
        %v2528 = vrot.slane %v1416, 5
        %v2529 = vsel %vm2421, %v2527, %v2528
        %v2530 = vrot.slane %v2350, 5
        %v2531 = vrot.slane %v2530, 4
        %v2532 = vrot.slane %v1417, 5
        %v2533 = vsel %vm2421, %v2531, %v2532
        %v2534 = vrot.slane %v2351, 5
        %v2535 = vrot.slane %v2534, 4
        %v2536 = vrot.slane %v1418, 5
        %v2537 = vsel %vm2421, %v2535, %v2536
        %v2538 = vrot.slane %v2352, 5
        %v2539 = vrot.slane %v2538, 4
        %v2540 = vrot.slane %v1419, 5
        %v2541 = vsel %vm2421, %v2539, %v2540
        %v2542 = vrot.slane %v2353, 5
        %v2543 = vrot.slane %v2542, 4
        %v2544 = vrot.slane %v1420, 5
        %v2545 = vsel %vm2421, %v2543, %v2544
        %v2546 = vrot.slane %v2354, 5
        %v2547 = vrot.slane %v2546, 4
        %v2548 = vrot.slane %v1421, 5
        %v2549 = vsel %vm2421, %v2547, %v2548
        %v2550 = vld [vmem:[#allocation6 + $0x80] sm:$0xf]
        %v2551 = vld [vmem:[#allocation6 + $0x84] sm:$0xf]
        %v2552 = vld [vmem:[#allocation6 + $0x88] sm:$0xf]
        %v2553 = vld [vmem:[#allocation6 + $0x8c] sm:$0xf]
        %v2554 = vld [vmem:[#allocation6 + $0x90] sm:$0xf]
        %v2555 = vld [vmem:[#allocation6 + $0x94] sm:$0xf]
        %v2556 = vld [vmem:[#allocation6 + $0x98] sm:$0xf]
        %v2557 = vld [vmem:[#allocation6 + $0x9c] sm:$0xf]
        %v2558 = vld [vmem:[#allocation6 + $0xa0] sm:$0xf]
        %v2559 = vld [vmem:[#allocation6 + $0xa4] sm:$0xf]
        %v2560 = vld [vmem:[#allocation6 + $0xa8] sm:$0xf]
        %v2561 = vld [vmem:[#allocation6 + $0xac] sm:$0xf]
        %v2562 = vld [vmem:[#allocation6 + $0xb0] sm:$0xf]
        %v2563 = vld [vmem:[#allocation6 + $0xb4] sm:$0xf]
        %v2564 = vld [vmem:[#allocation6 + $0xb8] sm:$0xf]
        %v2565 = vld [vmem:[#allocation6 + $0xbc] sm:$0xf]
        %v2566 = vunpack.c.l.b16 %v2425
        %v2567 = vunpack.c.l.b16 %v2429
        %v2568 = vunpack.c.l.b16 %v2433
        %v2569 = vunpack.c.l.b16 %v2437
        %v2570 = vunpack.c.l.b16 %v2441
        %v2571 = vunpack.c.l.b16 %v2445
        %v2572 = vunpack.c.l.b16 %v2449
        %v2573 = vunpack.c.l.b16 %v2453
        %v2574 = vunpack.c.l.b16 %v2457
        %v2575 = vunpack.c.l.b16 %v2461
        %v2576 = vunpack.c.l.b16 %v2465
        %v2577 = vunpack.c.l.b16 %v2469
        %v2578 = vunpack.c.l.b16 %v2473
        %v2579 = vunpack.c.l.b16 %v2477
        %v2580 = vunpack.c.l.b16 %v2481
        %v2581 = vunpack.c.l.b16 %v2485
        %v2582 = vunpack.c.l.b16 %v2489
        %v2583 = vunpack.c.l.b16 %v2493
        %v2584 = vunpack.c.l.b16 %v2497
        %v2585 = vunpack.c.l.b16 %v2501
        %v2586 = vunpack.c.l.b16 %v2505
        %v2587 = vunpack.c.l.b16 %v2509
        %v2588 = vunpack.c.l.b16 %v2513
        %v2589 = vunpack.c.l.b16 %v2517
        %v2590 = vunpack.c.l.b16 %v2521
        %v2591 = vunpack.c.l.b16 %v2525
        %v2592 = vunpack.c.l.b16 %v2529
        %v2593 = vunpack.c.l.b16 %v2533
        %v2594 = vunpack.c.l.b16 %v2537
        %v2595 = vunpack.c.l.b16 %v2541
        %v2596 = vunpack.c.l.b16 %v2545
        %v2597 = vunpack.c.l.b16 %v2549
        %v2598 = vpack.c.b16 %v2567, %v2566
        %v2599 = vpack.c.b16 %v2569, %v2568
        %v2600 = vpack.c.b16 %v2571, %v2570
        %v2601 = vpack.c.b16 %v2573, %v2572
        %v2602 = vpack.c.b16 %v2575, %v2574
        %v2603 = vpack.c.b16 %v2577, %v2576
        %v2604 = vpack.c.b16 %v2579, %v2578
        %v2605 = vpack.c.b16 %v2581, %v2580
        %v2606 = vpack.c.b16 %v2583, %v2582
        %v2607 = vpack.c.b16 %v2585, %v2584
        %v2608 = vpack.c.b16 %v2587, %v2586
        %v2609 = vpack.c.b16 %v2589, %v2588
        %v2610 = vpack.c.b16 %v2591, %v2590
        %v2611 = vpack.c.b16 %v2593, %v2592
        %v2612 = vpack.c.b16 %v2595, %v2594
        %v2613 = vpack.c.b16 %v2597, %v2596
        %v2646 = vunpack.c.l.b16 %v2550
        %v2647 = vunpack.c.l.b16 %v2551
        %v2648 = vunpack.c.l.b16 %v2552
        %v2649 = vunpack.c.l.b16 %v2553
        %v2650 = vunpack.c.l.b16 %v2554
        %v2651 = vunpack.c.l.b16 %v2555
        %v2652 = vunpack.c.l.b16 %v2556
        %v2653 = vunpack.c.l.b16 %v2557
        %v2654 = vunpack.c.l.b16 %v2558
        %v2655 = vunpack.c.l.b16 %v2559
        %v2656 = vunpack.c.l.b16 %v2560
        %v2657 = vunpack.c.l.b16 %v2561
        %v2658 = vunpack.c.l.b16 %v2562
        %v2659 = vunpack.c.l.b16 %v2563
        %v2660 = vunpack.c.l.b16 %v2564
        %v2661 = vunpack.c.l.b16 %v2565
        %v2662 = vpack.c.b16 %v2647, %v2646
        %v2663 = vpack.c.b16 %v2649, %v2648
        %v2664 = vpack.c.b16 %v2651, %v2650
        %v2665 = vpack.c.b16 %v2653, %v2652
        %v2666 = vpack.c.b16 %v2655, %v2654
        %v2667 = vpack.c.b16 %v2657, %v2656
        %v2668 = vpack.c.b16 %v2659, %v2658
        %v2669 = vpack.c.b16 %v2661, %v2660
        %2678 = vmatpush.bf16.msra.mxu0 %v2669
        %2679 = vmatpush.bf16.msra.mxu0 %v2668
        %2680 = vmatpush.bf16.msra.mxu0 %v2667
        %2681 = vmatpush.bf16.msra.mxu0 %v2666
        %2682 = vmatpush.bf16.msra.mxu0 %v2665
        %2683 = vmatpush.bf16.msra.mxu0 %v2664
        %2684 = vmatpush.bf16.msra.mxu0 %v2663
        %2685 = vmatpush.bf16.msra.mxu0 %v2662
        %2686 = vmatmul.bf16.gmra.mxu0 %v2598
        %v2687 = vpop.f32.mrf.mxu0
        %v2688 = vadd.f32 0.0, %v2687
        %v2689 = vpop.f32.mrf.mxu0
        %v2690 = vadd.f32 0.0, %v2689
        %2691 = vmatmul.bf16.gmra.mxu0 %v2599
        %v2692 = vpop.f32.mrf.mxu0
        %v2693 = vadd.f32 0.0, %v2692
        %v2694 = vpop.f32.mrf.mxu0
        %v2695 = vadd.f32 0.0, %v2694
        %2696 = vmatmul.bf16.gmra.mxu0 %v2600
        %v2697 = vpop.f32.mrf.mxu0
        %v2698 = vadd.f32 0.0, %v2697
        %v2699 = vpop.f32.mrf.mxu0
        %v2700 = vadd.f32 0.0, %v2699
        %2701 = vmatmul.bf16.gmra.mxu0 %v2601
        %v2702 = vpop.f32.mrf.mxu0
        %v2703 = vadd.f32 0.0, %v2702
        %v2704 = vpop.f32.mrf.mxu0
        %v2705 = vadd.f32 0.0, %v2704
        %2706 = vmatmul.bf16.gmra.mxu0 %v2602
        %v2707 = vpop.f32.mrf.mxu0
        %v2708 = vadd.f32 0.0, %v2707
        %v2709 = vpop.f32.mrf.mxu0
        %v2710 = vadd.f32 0.0, %v2709
        %2711 = vmatmul.bf16.gmra.mxu0 %v2603
        %v2712 = vpop.f32.mrf.mxu0
        %v2713 = vadd.f32 0.0, %v2712
        %v2714 = vpop.f32.mrf.mxu0
        %v2715 = vadd.f32 0.0, %v2714
        %2716 = vmatmul.bf16.gmra.mxu0 %v2604
        %v2717 = vpop.f32.mrf.mxu0
        %v2718 = vadd.f32 0.0, %v2717
        %v2719 = vpop.f32.mrf.mxu0
        %v2720 = vadd.f32 0.0, %v2719
        %2721 = vmatmul.bf16.gmra.mxu0 %v2605
        %v2722 = vpop.f32.mrf.mxu0
        %v2723 = vadd.f32 0.0, %v2722
        %v2724 = vpop.f32.mrf.mxu0
        %v2725 = vadd.f32 0.0, %v2724
        %2726 = vmatmul.bf16.gmra.mxu0 %v2606
        %v2727 = vpop.f32.mrf.mxu0
        %v2728 = vadd.f32 0.0, %v2727
        %v2729 = vpop.f32.mrf.mxu0
        %v2730 = vadd.f32 0.0, %v2729
        %2731 = vmatmul.bf16.gmra.mxu0 %v2607
        %v2732 = vpop.f32.mrf.mxu0
        %v2733 = vadd.f32 0.0, %v2732
        %v2734 = vpop.f32.mrf.mxu0
        %v2735 = vadd.f32 0.0, %v2734
        %2736 = vmatmul.bf16.gmra.mxu0 %v2608
        %v2737 = vpop.f32.mrf.mxu0
        %v2738 = vadd.f32 0.0, %v2737
        %v2739 = vpop.f32.mrf.mxu0
        %v2740 = vadd.f32 0.0, %v2739
        %2741 = vmatmul.bf16.gmra.mxu0 %v2609
        %v2742 = vpop.f32.mrf.mxu0
        %v2743 = vadd.f32 0.0, %v2742
        %v2744 = vpop.f32.mrf.mxu0
        %v2745 = vadd.f32 0.0, %v2744
        %2746 = vmatmul.bf16.gmra.mxu0 %v2610
        %v2747 = vpop.f32.mrf.mxu0
        %v2748 = vadd.f32 0.0, %v2747
        %v2749 = vpop.f32.mrf.mxu0
        %v2750 = vadd.f32 0.0, %v2749
        %2751 = vmatmul.bf16.gmra.mxu0 %v2611
        %v2752 = vpop.f32.mrf.mxu0
        %v2753 = vadd.f32 0.0, %v2752
        %v2754 = vpop.f32.mrf.mxu0
        %v2755 = vadd.f32 0.0, %v2754
        %2756 = vmatmul.bf16.gmra.mxu0 %v2612
        %v2757 = vpop.f32.mrf.mxu0
        %v2758 = vadd.f32 0.0, %v2757
        %v2759 = vpop.f32.mrf.mxu0
        %v2760 = vadd.f32 0.0, %v2759
        %2761 = vmatmul.bf16.gmra.mxu0 %v2613
        %v2762 = vpop.f32.mrf.mxu0
        %v2763 = vadd.f32 0.0, %v2762
        %v2764 = vpop.f32.mrf.mxu0
        %v2765 = vadd.f32 0.0, %v2764
        %2766 = vdwg.mxu0
        %v2767 = vadd.f32 %v2244, %v2688
        %v2768 = vadd.f32 %v2246, %v2690
        %v2769 = vadd.f32 %v2249, %v2693
        %v2770 = vadd.f32 %v2251, %v2695
        %v2771 = vadd.f32 %v2254, %v2698
        %v2772 = vadd.f32 %v2256, %v2700
        %v2773 = vadd.f32 %v2259, %v2703
        %v2774 = vadd.f32 %v2261, %v2705
        %v2775 = vadd.f32 %v2264, %v2708
        %v2776 = vadd.f32 %v2266, %v2710
        %v2777 = vadd.f32 %v2269, %v2713
        %v2778 = vadd.f32 %v2271, %v2715
        %v2779 = vadd.f32 %v2274, %v2718
        %v2780 = vadd.f32 %v2276, %v2720
        %v2781 = vadd.f32 %v2279, %v2723
        %v2782 = vadd.f32 %v2281, %v2725
        %v2783 = vadd.f32 %v2284, %v2728
        %v2784 = vadd.f32 %v2286, %v2730
        %v2785 = vadd.f32 %v2289, %v2733
        %v2786 = vadd.f32 %v2291, %v2735
        %v2787 = vadd.f32 %v2294, %v2738
        %v2788 = vadd.f32 %v2296, %v2740
        %v2789 = vadd.f32 %v2299, %v2743
        %v2790 = vadd.f32 %v2301, %v2745
        %v2791 = vadd.f32 %v2304, %v2748
        %v2792 = vadd.f32 %v2306, %v2750
        %v2793 = vadd.f32 %v2309, %v2753
        %v2794 = vadd.f32 %v2311, %v2755
        %v2795 = vadd.f32 %v2314, %v2758
        %v2796 = vadd.f32 %v2316, %v2760
        %v2797 = vadd.f32 %v2319, %v2763
        %v2798 = vadd.f32 %v2321, %v2765
        %v2799 = vld [vmem:[%s1147] sm:$0xf]
        %v2800 = vld [vmem:[%s1147 + $0x8] sm:$0xf]
        %v2801 = vld [vmem:[%s1147 + $0x10] sm:$0xf]
        %v2802 = vld [vmem:[%s1147 + $0x18] sm:$0xf]
        %v2803 = vld [vmem:[%s1147 + $0x20] sm:$0xf]
        %v2804 = vld [vmem:[%s1147 + $0x28] sm:$0xf]
        %v2805 = vld [vmem:[%s1147 + $0x30] sm:$0xf]
        %v2806 = vld [vmem:[%s1147 + $0x38] sm:$0xf]
        %v2807 = vld [vmem:[%s1147 + $0x50] sm:$0xf]
        %v2808 = vld [vmem:[%s1147 + $0x58] sm:$0xf]
        %v2809 = vld [vmem:[%s1147 + $0x60] sm:$0xf]
        %v2810 = vld [vmem:[%s1147 + $0x68] sm:$0xf]
        %v2811 = vld [vmem:[%s1147 + $0x70] sm:$0xf]
        %v2812 = vld [vmem:[%s1147 + $0x78] sm:$0xf]
        %v2813 = vld [vmem:[%s1147 + $0x80] sm:$0xf]
        %v2814 = vld [vmem:[%s1147 + $0x88] sm:$0xf]
        %v2815 = vld [vmem:[%s1147 + $0xa0] sm:$0xf]
        %v2816 = vld [vmem:[%s1147 + $0xa8] sm:$0xf]
        %v2817 = vld [vmem:[%s1147 + $0xb0] sm:$0xf]
        %v2818 = vld [vmem:[%s1147 + $0xb8] sm:$0xf]
        %v2819 = vld [vmem:[%s1147 + $0xc0] sm:$0xf]
        %v2820 = vld [vmem:[%s1147 + $0xc8] sm:$0xf]
        %v2821 = vld [vmem:[%s1147 + $0xd0] sm:$0xf]
        %v2822 = vld [vmem:[%s1147 + $0xd8] sm:$0xf]
        %v2823 = vld [vmem:[%s1147 + $0xf0] sm:$0xf]
        %v2824 = vld [vmem:[%s1147 + $0xf8] sm:$0xf]
        %v2825 = vld [vmem:[%s1147 + $0x100] sm:$0xf]
        %v2826 = vld [vmem:[%s1147 + $0x108] sm:$0xf]
        %v2827 = vld [vmem:[%s1147 + $0x110] sm:$0xf]
        %v2828 = vld [vmem:[%s1147 + $0x118] sm:$0xf]
        %v2829 = vld [vmem:[%s1147 + $0x120] sm:$0xf]
        %v2830 = vld [vmem:[%s1147 + $0x128] sm:$0xf]
        %v2831 = vld [vmem:[#allocation6 + $0xc0] sm:$0xf]
        %v2832 = vld [vmem:[#allocation6 + $0xc4] sm:$0xf]
        %v2833 = vld [vmem:[#allocation6 + $0xc8] sm:$0xf]
        %v2834 = vld [vmem:[#allocation6 + $0xcc] sm:$0xf]
        %v2835 = vld [vmem:[#allocation6 + $0xd0] sm:$0xf]
        %v2836 = vld [vmem:[#allocation6 + $0xd4] sm:$0xf]
        %v2837 = vld [vmem:[#allocation6 + $0xd8] sm:$0xf]
        %v2838 = vld [vmem:[#allocation6 + $0xdc] sm:$0xf]
        %v2839 = vld [vmem:[#allocation6 + $0xe0] sm:$0xf]
        %v2840 = vld [vmem:[#allocation6 + $0xe4] sm:$0xf]
        %v2841 = vld [vmem:[#allocation6 + $0xe8] sm:$0xf]
        %v2842 = vld [vmem:[#allocation6 + $0xec] sm:$0xf]
        %v2843 = vld [vmem:[#allocation6 + $0xf0] sm:$0xf]
        %v2844 = vld [vmem:[#allocation6 + $0xf4] sm:$0xf]
        %v2845 = vld [vmem:[#allocation6 + $0xf8] sm:$0xf]
        %v2846 = vld [vmem:[#allocation6 + $0xfc] sm:$0xf]
        %v2879 = vunpack.c.l.b16 %v2799
        %v2880 = vunpack.c.l.b16 %v2800
        %v2881 = vunpack.c.l.b16 %v2801
        %v2882 = vunpack.c.l.b16 %v2802
        %v2883 = vunpack.c.l.b16 %v2803
        %v2884 = vunpack.c.l.b16 %v2804
        %v2885 = vunpack.c.l.b16 %v2805
        %v2886 = vunpack.c.l.b16 %v2806
        %v2887 = vunpack.c.l.b16 %v2807
        %v2888 = vunpack.c.l.b16 %v2808
        %v2889 = vunpack.c.l.b16 %v2809
        %v2890 = vunpack.c.l.b16 %v2810
        %v2891 = vunpack.c.l.b16 %v2811
        %v2892 = vunpack.c.l.b16 %v2812
        %v2893 = vunpack.c.l.b16 %v2813
        %v2894 = vunpack.c.l.b16 %v2814
        %v2895 = vunpack.c.l.b16 %v2815
        %v2896 = vunpack.c.l.b16 %v2816
        %v2897 = vunpack.c.l.b16 %v2817
        %v2898 = vunpack.c.l.b16 %v2818
        %v2899 = vunpack.c.l.b16 %v2819
        %v2900 = vunpack.c.l.b16 %v2820
        %v2901 = vunpack.c.l.b16 %v2821
        %v2902 = vunpack.c.l.b16 %v2822
        %v2903 = vunpack.c.l.b16 %v2823
        %v2904 = vunpack.c.l.b16 %v2824
        %v2905 = vunpack.c.l.b16 %v2825
        %v2906 = vunpack.c.l.b16 %v2826
        %v2907 = vunpack.c.l.b16 %v2827
        %v2908 = vunpack.c.l.b16 %v2828
        %v2909 = vunpack.c.l.b16 %v2829
        %v2910 = vunpack.c.l.b16 %v2830
        %v2911 = vpack.c.b16 %v2880, %v2879
        %v2912 = vpack.c.b16 %v2882, %v2881
        %v2913 = vpack.c.b16 %v2884, %v2883
        %v2914 = vpack.c.b16 %v2886, %v2885
        %v2915 = vpack.c.b16 %v2888, %v2887
        %v2916 = vpack.c.b16 %v2890, %v2889
        %v2917 = vpack.c.b16 %v2892, %v2891
        %v2918 = vpack.c.b16 %v2894, %v2893
        %v2919 = vpack.c.b16 %v2896, %v2895
        %v2920 = vpack.c.b16 %v2898, %v2897
        %v2921 = vpack.c.b16 %v2900, %v2899
        %v2922 = vpack.c.b16 %v2902, %v2901
        %v2923 = vpack.c.b16 %v2904, %v2903
        %v2924 = vpack.c.b16 %v2906, %v2905
        %v2925 = vpack.c.b16 %v2908, %v2907
        %v2926 = vpack.c.b16 %v2910, %v2909
        %v2959 = vunpack.c.l.b16 %v2831
        %v2960 = vunpack.c.l.b16 %v2832
        %v2961 = vunpack.c.l.b16 %v2833
        %v2962 = vunpack.c.l.b16 %v2834
        %v2963 = vunpack.c.l.b16 %v2835
        %v2964 = vunpack.c.l.b16 %v2836
        %v2965 = vunpack.c.l.b16 %v2837
        %v2966 = vunpack.c.l.b16 %v2838
        %v2967 = vunpack.c.l.b16 %v2839
        %v2968 = vunpack.c.l.b16 %v2840
        %v2969 = vunpack.c.l.b16 %v2841
        %v2970 = vunpack.c.l.b16 %v2842
        %v2971 = vunpack.c.l.b16 %v2843
        %v2972 = vunpack.c.l.b16 %v2844
        %v2973 = vunpack.c.l.b16 %v2845
        %v2974 = vunpack.c.l.b16 %v2846
        %v2975 = vpack.c.b16 %v2960, %v2959
        %v2976 = vpack.c.b16 %v2962, %v2961
        %v2977 = vpack.c.b16 %v2964, %v2963
        %v2978 = vpack.c.b16 %v2966, %v2965
        %v2979 = vpack.c.b16 %v2968, %v2967
        %v2980 = vpack.c.b16 %v2970, %v2969
        %v2981 = vpack.c.b16 %v2972, %v2971
        %v2982 = vpack.c.b16 %v2974, %v2973
        %2991 = vmatpush.bf16.msra.mxu0 %v2982
        %2992 = vmatpush.bf16.msra.mxu0 %v2981
        %2993 = vmatpush.bf16.msra.mxu0 %v2980
        %2994 = vmatpush.bf16.msra.mxu0 %v2979
        %2995 = vmatpush.bf16.msra.mxu0 %v2978
        %2996 = vmatpush.bf16.msra.mxu0 %v2977
        %2997 = vmatpush.bf16.msra.mxu0 %v2976
        %2998 = vmatpush.bf16.msra.mxu0 %v2975
        %2999 = vmatmul.bf16.gmra.mxu0 %v2911
        %v3000 = vpop.f32.mrf.mxu0
        %v3001 = vadd.f32 0.0, %v3000
        %v3002 = vpop.f32.mrf.mxu0
        %v3003 = vadd.f32 0.0, %v3002
        %3004 = vmatmul.bf16.gmra.mxu0 %v2912
        %v3005 = vpop.f32.mrf.mxu0
        %v3006 = vadd.f32 0.0, %v3005
        %v3007 = vpop.f32.mrf.mxu0
        %v3008 = vadd.f32 0.0, %v3007
        %3009 = vmatmul.bf16.gmra.mxu0 %v2913
        %v3010 = vpop.f32.mrf.mxu0
        %v3011 = vadd.f32 0.0, %v3010
        %v3012 = vpop.f32.mrf.mxu0
        %v3013 = vadd.f32 0.0, %v3012
        %3014 = vmatmul.bf16.gmra.mxu0 %v2914
        %v3015 = vpop.f32.mrf.mxu0
        %v3016 = vadd.f32 0.0, %v3015
        %v3017 = vpop.f32.mrf.mxu0
        %v3018 = vadd.f32 0.0, %v3017
        %3019 = vmatmul.bf16.gmra.mxu0 %v2915
        %v3020 = vpop.f32.mrf.mxu0
        %v3021 = vadd.f32 0.0, %v3020
        %v3022 = vpop.f32.mrf.mxu0
        %v3023 = vadd.f32 0.0, %v3022
        %3024 = vmatmul.bf16.gmra.mxu0 %v2916
        %v3025 = vpop.f32.mrf.mxu0
        %v3026 = vadd.f32 0.0, %v3025
        %v3027 = vpop.f32.mrf.mxu0
        %v3028 = vadd.f32 0.0, %v3027
        %3029 = vmatmul.bf16.gmra.mxu0 %v2917
        %v3030 = vpop.f32.mrf.mxu0
        %v3031 = vadd.f32 0.0, %v3030
        %v3032 = vpop.f32.mrf.mxu0
        %v3033 = vadd.f32 0.0, %v3032
        %3034 = vmatmul.bf16.gmra.mxu0 %v2918
        %v3035 = vpop.f32.mrf.mxu0
        %v3036 = vadd.f32 0.0, %v3035
        %v3037 = vpop.f32.mrf.mxu0
        %v3038 = vadd.f32 0.0, %v3037
        %3039 = vmatmul.bf16.gmra.mxu0 %v2919
        %v3040 = vpop.f32.mrf.mxu0
        %v3041 = vadd.f32 0.0, %v3040
        %v3042 = vpop.f32.mrf.mxu0
        %v3043 = vadd.f32 0.0, %v3042
        %3044 = vmatmul.bf16.gmra.mxu0 %v2920
        %v3045 = vpop.f32.mrf.mxu0
        %v3046 = vadd.f32 0.0, %v3045
        %v3047 = vpop.f32.mrf.mxu0
        %v3048 = vadd.f32 0.0, %v3047
        %3049 = vmatmul.bf16.gmra.mxu0 %v2921
        %v3050 = vpop.f32.mrf.mxu0
        %v3051 = vadd.f32 0.0, %v3050
        %v3052 = vpop.f32.mrf.mxu0
        %v3053 = vadd.f32 0.0, %v3052
        %3054 = vmatmul.bf16.gmra.mxu0 %v2922
        %v3055 = vpop.f32.mrf.mxu0
        %v3056 = vadd.f32 0.0, %v3055
        %v3057 = vpop.f32.mrf.mxu0
        %v3058 = vadd.f32 0.0, %v3057
        %3059 = vmatmul.bf16.gmra.mxu0 %v2923
        %v3060 = vpop.f32.mrf.mxu0
        %v3061 = vadd.f32 0.0, %v3060
        %v3062 = vpop.f32.mrf.mxu0
        %v3063 = vadd.f32 0.0, %v3062
        %3064 = vmatmul.bf16.gmra.mxu0 %v2924
        %v3065 = vpop.f32.mrf.mxu0
        %v3066 = vadd.f32 0.0, %v3065
        %v3067 = vpop.f32.mrf.mxu0
        %v3068 = vadd.f32 0.0, %v3067
        %3069 = vmatmul.bf16.gmra.mxu0 %v2925
        %v3070 = vpop.f32.mrf.mxu0
        %v3071 = vadd.f32 0.0, %v3070
        %v3072 = vpop.f32.mrf.mxu0
        %v3073 = vadd.f32 0.0, %v3072
        %3074 = vmatmul.bf16.gmra.mxu0 %v2926
        %v3075 = vpop.f32.mrf.mxu0
        %v3076 = vadd.f32 0.0, %v3075
        %v3077 = vpop.f32.mrf.mxu0
        %v3078 = vadd.f32 0.0, %v3077
        %3079 = vdwg.mxu0
        %v3080 = vadd.f32 %v2767, %v3001
        %v3081 = vadd.f32 %v2768, %v3003
        %v3082 = vadd.f32 %v2769, %v3006
        %v3083 = vadd.f32 %v2770, %v3008
        %v3084 = vadd.f32 %v2771, %v3011
        %v3085 = vadd.f32 %v2772, %v3013
        %v3086 = vadd.f32 %v2773, %v3016
        %v3087 = vadd.f32 %v2774, %v3018
        %v3088 = vadd.f32 %v2775, %v3021
        %v3089 = vadd.f32 %v2776, %v3023
        %v3090 = vadd.f32 %v2777, %v3026
        %v3091 = vadd.f32 %v2778, %v3028
        %v3092 = vadd.f32 %v2779, %v3031
        %v3093 = vadd.f32 %v2780, %v3033
        %v3094 = vadd.f32 %v2781, %v3036
        %v3095 = vadd.f32 %v2782, %v3038
        %v3096 = vadd.f32 %v2783, %v3041
        %v3097 = vadd.f32 %v2784, %v3043
        %v3098 = vadd.f32 %v2785, %v3046
        %v3099 = vadd.f32 %v2786, %v3048
        %v3100 = vadd.f32 %v2787, %v3051
        %v3101 = vadd.f32 %v2788, %v3053
        %v3102 = vadd.f32 %v2789, %v3056
        %v3103 = vadd.f32 %v2790, %v3058
        %v3104 = vadd.f32 %v2791, %v3061
        %v3105 = vadd.f32 %v2792, %v3063
        %v3106 = vadd.f32 %v2793, %v3066
        %v3107 = vadd.f32 %v2794, %v3068
        %v3108 = vadd.f32 %v2795, %v3071
        %v3109 = vadd.f32 %v2796, %v3073
        %v3110 = vadd.f32 %v2797, %v3076
        %v3111 = vadd.f32 %v2798, %v3078
        %v3112 = vld [vmem:[%s1147] sm:$0xf]
        %v3113 = vld [vmem:[%s1147 + $0x4] sm:$0x1]
        %v3114 = vld [vmem:[%s1147 + $0x8] sm:$0xf]
        %v3115 = vld [vmem:[%s1147 + $0xc] sm:$0x1]
        %v3116 = vld [vmem:[%s1147 + $0x10] sm:$0xf]
        %v3117 = vld [vmem:[%s1147 + $0x14] sm:$0x1]
        %v3118 = vld [vmem:[%s1147 + $0x18] sm:$0xf]
        %v3119 = vld [vmem:[%s1147 + $0x1c] sm:$0x1]
        %v3120 = vld [vmem:[%s1147 + $0x20] sm:$0xf]
        %v3121 = vld [vmem:[%s1147 + $0x24] sm:$0x1]
        %v3122 = vld [vmem:[%s1147 + $0x28] sm:$0xf]
        %v3123 = vld [vmem:[%s1147 + $0x2c] sm:$0x1]
        %v3124 = vld [vmem:[%s1147 + $0x30] sm:$0xf]
        %v3125 = vld [vmem:[%s1147 + $0x34] sm:$0x1]
        %v3126 = vld [vmem:[%s1147 + $0x38] sm:$0xf]
        %v3127 = vld [vmem:[%s1147 + $0x3c] sm:$0x1]
        %v3128 = vld [vmem:[%s1147 + $0x50] sm:$0xf]
        %v3129 = vld [vmem:[%s1147 + $0x54] sm:$0x1]
        %v3130 = vld [vmem:[%s1147 + $0x58] sm:$0xf]
        %v3131 = vld [vmem:[%s1147 + $0x5c] sm:$0x1]
        %v3132 = vld [vmem:[%s1147 + $0x60] sm:$0xf]
        %v3133 = vld [vmem:[%s1147 + $0x64] sm:$0x1]
        %v3134 = vld [vmem:[%s1147 + $0x68] sm:$0xf]
        %v3135 = vld [vmem:[%s1147 + $0x6c] sm:$0x1]
        %v3136 = vld [vmem:[%s1147 + $0x70] sm:$0xf]
        %v3137 = vld [vmem:[%s1147 + $0x74] sm:$0x1]
        %v3138 = vld [vmem:[%s1147 + $0x78] sm:$0xf]
        %v3139 = vld [vmem:[%s1147 + $0x7c] sm:$0x1]
        %v3140 = vld [vmem:[%s1147 + $0x80] sm:$0xf]
        %v3141 = vld [vmem:[%s1147 + $0x84] sm:$0x1]
        %v3142 = vld [vmem:[%s1147 + $0x88] sm:$0xf]
        %v3143 = vld [vmem:[%s1147 + $0x8c] sm:$0x1]
        %v3144 = vld [vmem:[%s1147 + $0xa0] sm:$0xf]
        %v3145 = vld [vmem:[%s1147 + $0xa4] sm:$0x1]
        %v3146 = vld [vmem:[%s1147 + $0xa8] sm:$0xf]
        %v3147 = vld [vmem:[%s1147 + $0xac] sm:$0x1]
        %v3148 = vld [vmem:[%s1147 + $0xb0] sm:$0xf]
        %v3149 = vld [vmem:[%s1147 + $0xb4] sm:$0x1]
        %v3150 = vld [vmem:[%s1147 + $0xb8] sm:$0xf]
        %v3151 = vld [vmem:[%s1147 + $0xbc] sm:$0x1]
        %v3152 = vld [vmem:[%s1147 + $0xc0] sm:$0xf]
        %v3153 = vld [vmem:[%s1147 + $0xc4] sm:$0x1]
        %v3154 = vld [vmem:[%s1147 + $0xc8] sm:$0xf]
        %v3155 = vld [vmem:[%s1147 + $0xcc] sm:$0x1]
        %v3156 = vld [vmem:[%s1147 + $0xd0] sm:$0xf]
        %v3157 = vld [vmem:[%s1147 + $0xd4] sm:$0x1]
        %v3158 = vld [vmem:[%s1147 + $0xd8] sm:$0xf]
        %v3159 = vld [vmem:[%s1147 + $0xdc] sm:$0x1]
        %v3160 = vld [vmem:[%s1147 + $0xf0] sm:$0xf]
        %v3161 = vld [vmem:[%s1147 + $0xf4] sm:$0x1]
        %v3162 = vld [vmem:[%s1147 + $0xf8] sm:$0xf]
        %v3163 = vld [vmem:[%s1147 + $0xfc] sm:$0x1]
        %v3164 = vld [vmem:[%s1147 + $0x100] sm:$0xf]
        %v3165 = vld [vmem:[%s1147 + $0x104] sm:$0x1]
        %v3166 = vld [vmem:[%s1147 + $0x108] sm:$0xf]
        %v3167 = vld [vmem:[%s1147 + $0x10c] sm:$0x1]
        %v3168 = vld [vmem:[%s1147 + $0x110] sm:$0xf]
        %v3169 = vld [vmem:[%s1147 + $0x114] sm:$0x1]
        %v3170 = vld [vmem:[%s1147 + $0x118] sm:$0xf]
        %v3171 = vld [vmem:[%s1147 + $0x11c] sm:$0x1]
        %v3172 = vld [vmem:[%s1147 + $0x120] sm:$0xf]
        %v3173 = vld [vmem:[%s1147 + $0x124] sm:$0x1]
        %v3174 = vld [vmem:[%s1147 + $0x128] sm:$0xf]
        %v3175 = vld [vmem:[%s1147 + $0x12c] sm:$0x1]
        %v3177 = vshrl.u32 %v3112, 16
        %v3179 = vrot.slane %v3177, 4
        %v3180 = vshll.u32 %v3112, 16
        %v3182 = vrot.slane %v3180, 5
        %v3183 = vor.u32 %v3179, %v3182
        %v3184 = vrot.slane %v3183, 4
        %v3186 = vshll.u32 %v3113, 16
        %v3188 = vrot.slane %v3186, 5
        %v3189 = vsel %vm1424, %v3184, %v3188
        %v3191 = vshrl.u32 %v3114, 16
        %v3193 = vrot.slane %v3191, 4
        %v3194 = vshll.u32 %v3114, 16
        %v3196 = vrot.slane %v3194, 5
        %v3197 = vor.u32 %v3193, %v3196
        %v3198 = vrot.slane %v3197, 4
        %v3200 = vshll.u32 %v3115, 16
        %v3202 = vrot.slane %v3200, 5
        %v3203 = vsel %vm1424, %v3198, %v3202
        %v3205 = vshrl.u32 %v3116, 16
        %v3207 = vrot.slane %v3205, 4
        %v3208 = vshll.u32 %v3116, 16
        %v3210 = vrot.slane %v3208, 5
        %v3211 = vor.u32 %v3207, %v3210
        %v3212 = vrot.slane %v3211, 4
        %v3214 = vshll.u32 %v3117, 16
        %v3216 = vrot.slane %v3214, 5
        %v3217 = vsel %vm1424, %v3212, %v3216
        %v3219 = vshrl.u32 %v3118, 16
        %v3221 = vrot.slane %v3219, 4
        %v3222 = vshll.u32 %v3118, 16
        %v3224 = vrot.slane %v3222, 5
        %v3225 = vor.u32 %v3221, %v3224
        %v3226 = vrot.slane %v3225, 4
        %v3228 = vshll.u32 %v3119, 16
        %v3230 = vrot.slane %v3228, 5
        %v3231 = vsel %vm1424, %v3226, %v3230
        %v3233 = vshrl.u32 %v3120, 16
        %v3235 = vrot.slane %v3233, 4
        %v3236 = vshll.u32 %v3120, 16
        %v3238 = vrot.slane %v3236, 5
        %v3239 = vor.u32 %v3235, %v3238
        %v3240 = vrot.slane %v3239, 4
        %v3242 = vshll.u32 %v3121, 16
        %v3244 = vrot.slane %v3242, 5
        %v3245 = vsel %vm1424, %v3240, %v3244
        %v3247 = vshrl.u32 %v3122, 16
        %v3249 = vrot.slane %v3247, 4
        %v3250 = vshll.u32 %v3122, 16
        %v3252 = vrot.slane %v3250, 5
        %v3253 = vor.u32 %v3249, %v3252
        %v3254 = vrot.slane %v3253, 4
        %v3256 = vshll.u32 %v3123, 16
        %v3258 = vrot.slane %v3256, 5
        %v3259 = vsel %vm1424, %v3254, %v3258
        %v3261 = vshrl.u32 %v3124, 16
        %v3263 = vrot.slane %v3261, 4
        %v3264 = vshll.u32 %v3124, 16
        %v3266 = vrot.slane %v3264, 5
        %v3267 = vor.u32 %v3263, %v3266
        %v3268 = vrot.slane %v3267, 4
        %v3270 = vshll.u32 %v3125, 16
        %v3272 = vrot.slane %v3270, 5
        %v3273 = vsel %vm1424, %v3268, %v3272
        %v3275 = vshrl.u32 %v3126, 16
        %v3277 = vrot.slane %v3275, 4
        %v3278 = vshll.u32 %v3126, 16
        %v3280 = vrot.slane %v3278, 5
        %v3281 = vor.u32 %v3277, %v3280
        %v3282 = vrot.slane %v3281, 4
        %v3284 = vshll.u32 %v3127, 16
        %v3286 = vrot.slane %v3284, 5
        %v3287 = vsel %vm1424, %v3282, %v3286
        %v3289 = vshrl.u32 %v3128, 16
        %v3291 = vrot.slane %v3289, 4
        %v3292 = vshll.u32 %v3128, 16
        %v3294 = vrot.slane %v3292, 5
        %v3295 = vor.u32 %v3291, %v3294
        %v3296 = vrot.slane %v3295, 4
        %v3298 = vshll.u32 %v3129, 16
        %v3300 = vrot.slane %v3298, 5
        %v3301 = vsel %vm1424, %v3296, %v3300
        %v3303 = vshrl.u32 %v3130, 16
        %v3305 = vrot.slane %v3303, 4
        %v3306 = vshll.u32 %v3130, 16
        %v3308 = vrot.slane %v3306, 5
        %v3309 = vor.u32 %v3305, %v3308
        %v3310 = vrot.slane %v3309, 4
        %v3312 = vshll.u32 %v3131, 16
        %v3314 = vrot.slane %v3312, 5
        %v3315 = vsel %vm1424, %v3310, %v3314
        %v3317 = vshrl.u32 %v3132, 16
        %v3319 = vrot.slane %v3317, 4
        %v3320 = vshll.u32 %v3132, 16
        %v3322 = vrot.slane %v3320, 5
        %v3323 = vor.u32 %v3319, %v3322
        %v3324 = vrot.slane %v3323, 4
        %v3326 = vshll.u32 %v3133, 16
        %v3328 = vrot.slane %v3326, 5
        %v3329 = vsel %vm1424, %v3324, %v3328
        %v3331 = vshrl.u32 %v3134, 16
        %v3333 = vrot.slane %v3331, 4
        %v3334 = vshll.u32 %v3134, 16
        %v3336 = vrot.slane %v3334, 5
        %v3337 = vor.u32 %v3333, %v3336
        %v3338 = vrot.slane %v3337, 4
        %v3340 = vshll.u32 %v3135, 16
        %v3342 = vrot.slane %v3340, 5
        %v3343 = vsel %vm1424, %v3338, %v3342
        %v3345 = vshrl.u32 %v3136, 16
        %v3347 = vrot.slane %v3345, 4
        %v3348 = vshll.u32 %v3136, 16
        %v3350 = vrot.slane %v3348, 5
        %v3351 = vor.u32 %v3347, %v3350
        %v3352 = vrot.slane %v3351, 4
        %v3354 = vshll.u32 %v3137, 16
        %v3356 = vrot.slane %v3354, 5
        %v3357 = vsel %vm1424, %v3352, %v3356
        %v3359 = vshrl.u32 %v3138, 16
        %v3361 = vrot.slane %v3359, 4
        %v3362 = vshll.u32 %v3138, 16
        %v3364 = vrot.slane %v3362, 5
        %v3365 = vor.u32 %v3361, %v3364
        %v3366 = vrot.slane %v3365, 4
        %v3368 = vshll.u32 %v3139, 16
        %v3370 = vrot.slane %v3368, 5
        %v3371 = vsel %vm1424, %v3366, %v3370
        %v3373 = vshrl.u32 %v3140, 16
        %v3375 = vrot.slane %v3373, 4
        %v3376 = vshll.u32 %v3140, 16
        %v3378 = vrot.slane %v3376, 5
        %v3379 = vor.u32 %v3375, %v3378
        %v3380 = vrot.slane %v3379, 4
        %v3382 = vshll.u32 %v3141, 16
        %v3384 = vrot.slane %v3382, 5
        %v3385 = vsel %vm1424, %v3380, %v3384
        %v3387 = vshrl.u32 %v3142, 16
        %v3389 = vrot.slane %v3387, 4
        %v3390 = vshll.u32 %v3142, 16
        %v3392 = vrot.slane %v3390, 5
        %v3393 = vor.u32 %v3389, %v3392
        %v3394 = vrot.slane %v3393, 4
        %v3396 = vshll.u32 %v3143, 16
        %v3398 = vrot.slane %v3396, 5
        %v3399 = vsel %vm1424, %v3394, %v3398
        %v3401 = vshrl.u32 %v3144, 16
        %v3403 = vrot.slane %v3401, 4
        %v3404 = vshll.u32 %v3144, 16
        %v3406 = vrot.slane %v3404, 5
        %v3407 = vor.u32 %v3403, %v3406
        %v3408 = vrot.slane %v3407, 4
        %v3410 = vshll.u32 %v3145, 16
        %v3412 = vrot.slane %v3410, 5
        %v3413 = vsel %vm1424, %v3408, %v3412
        %v3415 = vshrl.u32 %v3146, 16
        %v3417 = vrot.slane %v3415, 4
        %v3418 = vshll.u32 %v3146, 16
        %v3420 = vrot.slane %v3418, 5
        %v3421 = vor.u32 %v3417, %v3420
        %v3422 = vrot.slane %v3421, 4
        %v3424 = vshll.u32 %v3147, 16
        %v3426 = vrot.slane %v3424, 5
        %v3427 = vsel %vm1424, %v3422, %v3426
        %v3429 = vshrl.u32 %v3148, 16
        %v3431 = vrot.slane %v3429, 4
        %v3432 = vshll.u32 %v3148, 16
        %v3434 = vrot.slane %v3432, 5
        %v3435 = vor.u32 %v3431, %v3434
        %v3436 = vrot.slane %v3435, 4
        %v3438 = vshll.u32 %v3149, 16
        %v3440 = vrot.slane %v3438, 5
        %v3441 = vsel %vm1424, %v3436, %v3440
        %v3443 = vshrl.u32 %v3150, 16
        %v3445 = vrot.slane %v3443, 4
        %v3446 = vshll.u32 %v3150, 16
        %v3448 = vrot.slane %v3446, 5
        %v3449 = vor.u32 %v3445, %v3448
        %v3450 = vrot.slane %v3449, 4
        %v3452 = vshll.u32 %v3151, 16
        %v3454 = vrot.slane %v3452, 5
        %v3455 = vsel %vm1424, %v3450, %v3454
        %v3457 = vshrl.u32 %v3152, 16
        %v3459 = vrot.slane %v3457, 4
        %v3460 = vshll.u32 %v3152, 16
        %v3462 = vrot.slane %v3460, 5
        %v3463 = vor.u32 %v3459, %v3462
        %v3464 = vrot.slane %v3463, 4
        %v3466 = vshll.u32 %v3153, 16
        %v3468 = vrot.slane %v3466, 5
        %v3469 = vsel %vm1424, %v3464, %v3468
        %v3471 = vshrl.u32 %v3154, 16
        %v3473 = vrot.slane %v3471, 4
        %v3474 = vshll.u32 %v3154, 16
        %v3476 = vrot.slane %v3474, 5
        %v3477 = vor.u32 %v3473, %v3476
        %v3478 = vrot.slane %v3477, 4
        %v3480 = vshll.u32 %v3155, 16
        %v3482 = vrot.slane %v3480, 5
        %v3483 = vsel %vm1424, %v3478, %v3482
        %v3485 = vshrl.u32 %v3156, 16
        %v3487 = vrot.slane %v3485, 4
        %v3488 = vshll.u32 %v3156, 16
        %v3490 = vrot.slane %v3488, 5
        %v3491 = vor.u32 %v3487, %v3490
        %v3492 = vrot.slane %v3491, 4
        %v3494 = vshll.u32 %v3157, 16
        %v3496 = vrot.slane %v3494, 5
        %v3497 = vsel %vm1424, %v3492, %v3496
        %v3499 = vshrl.u32 %v3158, 16
        %v3501 = vrot.slane %v3499, 4
        %v3502 = vshll.u32 %v3158, 16
        %v3504 = vrot.slane %v3502, 5
        %v3505 = vor.u32 %v3501, %v3504
        %v3506 = vrot.slane %v3505, 4
        %v3508 = vshll.u32 %v3159, 16
        %v3510 = vrot.slane %v3508, 5
        %v3511 = vsel %vm1424, %v3506, %v3510
        %v3513 = vshrl.u32 %v3160, 16
        %v3515 = vrot.slane %v3513, 4
        %v3516 = vshll.u32 %v3160, 16
        %v3518 = vrot.slane %v3516, 5
        %v3519 = vor.u32 %v3515, %v3518
        %v3520 = vrot.slane %v3519, 4
        %v3522 = vshll.u32 %v3161, 16
        %v3524 = vrot.slane %v3522, 5
        %v3525 = vsel %vm1424, %v3520, %v3524
        %v3527 = vshrl.u32 %v3162, 16
        %v3529 = vrot.slane %v3527, 4
        %v3530 = vshll.u32 %v3162, 16
        %v3532 = vrot.slane %v3530, 5
        %v3533 = vor.u32 %v3529, %v3532
        %v3534 = vrot.slane %v3533, 4
        %v3536 = vshll.u32 %v3163, 16
        %v3538 = vrot.slane %v3536, 5
        %v3539 = vsel %vm1424, %v3534, %v3538
        %v3541 = vshrl.u32 %v3164, 16
        %v3543 = vrot.slane %v3541, 4
        %v3544 = vshll.u32 %v3164, 16
        %v3546 = vrot.slane %v3544, 5
        %v3547 = vor.u32 %v3543, %v3546
        %v3548 = vrot.slane %v3547, 4
        %v3550 = vshll.u32 %v3165, 16
        %v3552 = vrot.slane %v3550, 5
        %v3553 = vsel %vm1424, %v3548, %v3552
        %v3555 = vshrl.u32 %v3166, 16
        %v3557 = vrot.slane %v3555, 4
        %v3558 = vshll.u32 %v3166, 16
        %v3560 = vrot.slane %v3558, 5
        %v3561 = vor.u32 %v3557, %v3560
        %v3562 = vrot.slane %v3561, 4
        %v3564 = vshll.u32 %v3167, 16
        %v3566 = vrot.slane %v3564, 5
        %v3567 = vsel %vm1424, %v3562, %v3566
        %v3569 = vshrl.u32 %v3168, 16
        %v3571 = vrot.slane %v3569, 4
        %v3572 = vshll.u32 %v3168, 16
        %v3574 = vrot.slane %v3572, 5
        %v3575 = vor.u32 %v3571, %v3574
        %v3576 = vrot.slane %v3575, 4
        %v3578 = vshll.u32 %v3169, 16
        %v3580 = vrot.slane %v3578, 5
        %v3581 = vsel %vm1424, %v3576, %v3580
        %v3583 = vshrl.u32 %v3170, 16
        %v3585 = vrot.slane %v3583, 4
        %v3586 = vshll.u32 %v3170, 16
        %v3588 = vrot.slane %v3586, 5
        %v3589 = vor.u32 %v3585, %v3588
        %v3590 = vrot.slane %v3589, 4
        %v3592 = vshll.u32 %v3171, 16
        %v3594 = vrot.slane %v3592, 5
        %v3595 = vsel %vm1424, %v3590, %v3594
        %v3597 = vshrl.u32 %v3172, 16
        %v3599 = vrot.slane %v3597, 4
        %v3600 = vshll.u32 %v3172, 16
        %v3602 = vrot.slane %v3600, 5
        %v3603 = vor.u32 %v3599, %v3602
        %v3604 = vrot.slane %v3603, 4
        %v3606 = vshll.u32 %v3173, 16
        %v3608 = vrot.slane %v3606, 5
        %v3609 = vsel %vm1424, %v3604, %v3608
        %v3611 = vshrl.u32 %v3174, 16
        %v3613 = vrot.slane %v3611, 4
        %v3614 = vshll.u32 %v3174, 16
        %v3616 = vrot.slane %v3614, 5
        %v3617 = vor.u32 %v3613, %v3616
        %v3618 = vrot.slane %v3617, 4
        %v3620 = vshll.u32 %v3175, 16
        %v3622 = vrot.slane %v3620, 5
        %v3623 = vsel %vm1424, %v3618, %v3622
        %v3624 = vld [vmem:[#allocation6 + $0x100] sm:$0xf]
        %v3625 = vld [vmem:[#allocation6 + $0x104] sm:$0xf]
        %v3626 = vld [vmem:[#allocation6 + $0x108] sm:$0xf]
        %v3627 = vld [vmem:[#allocation6 + $0x10c] sm:$0xf]
        %v3628 = vld [vmem:[#allocation6 + $0x110] sm:$0xf]
        %v3629 = vld [vmem:[#allocation6 + $0x114] sm:$0xf]
        %v3630 = vld [vmem:[#allocation6 + $0x118] sm:$0xf]
        %v3631 = vld [vmem:[#allocation6 + $0x11c] sm:$0xf]
        %v3632 = vld [vmem:[#allocation6 + $0x120] sm:$0xf]
        %v3633 = vld [vmem:[#allocation6 + $0x124] sm:$0xf]
        %v3634 = vld [vmem:[#allocation6 + $0x128] sm:$0xf]
        %v3635 = vld [vmem:[#allocation6 + $0x12c] sm:$0xf]
        %v3636 = vld [vmem:[#allocation6 + $0x130] sm:$0xf]
        %v3637 = vld [vmem:[#allocation6 + $0x134] sm:$0xf]
        %v3638 = vld [vmem:[#allocation6 + $0x138] sm:$0xf]
        %v3639 = vld [vmem:[#allocation6 + $0x13c] sm:$0xf]
        %v3640 = vunpack.c.l.b16 %v3189
        %v3641 = vunpack.c.l.b16 %v3203
        %v3642 = vunpack.c.l.b16 %v3217
        %v3643 = vunpack.c.l.b16 %v3231
        %v3644 = vunpack.c.l.b16 %v3245
        %v3645 = vunpack.c.l.b16 %v3259
        %v3646 = vunpack.c.l.b16 %v3273
        %v3647 = vunpack.c.l.b16 %v3287
        %v3648 = vunpack.c.l.b16 %v3301
        %v3649 = vunpack.c.l.b16 %v3315
        %v3650 = vunpack.c.l.b16 %v3329
        %v3651 = vunpack.c.l.b16 %v3343
        %v3652 = vunpack.c.l.b16 %v3357
        %v3653 = vunpack.c.l.b16 %v3371
        %v3654 = vunpack.c.l.b16 %v3385
        %v3655 = vunpack.c.l.b16 %v3399
        %v3656 = vunpack.c.l.b16 %v3413
        %v3657 = vunpack.c.l.b16 %v3427
        %v3658 = vunpack.c.l.b16 %v3441
        %v3659 = vunpack.c.l.b16 %v3455
        %v3660 = vunpack.c.l.b16 %v3469
        %v3661 = vunpack.c.l.b16 %v3483
        %v3662 = vunpack.c.l.b16 %v3497
        %v3663 = vunpack.c.l.b16 %v3511
        %v3664 = vunpack.c.l.b16 %v3525
        %v3665 = vunpack.c.l.b16 %v3539
        %v3666 = vunpack.c.l.b16 %v3553
        %v3667 = vunpack.c.l.b16 %v3567
        %v3668 = vunpack.c.l.b16 %v3581
        %v3669 = vunpack.c.l.b16 %v3595
        %v3670 = vunpack.c.l.b16 %v3609
        %v3671 = vunpack.c.l.b16 %v3623
        %v3672 = vpack.c.b16 %v3641, %v3640
        %v3673 = vpack.c.b16 %v3643, %v3642
        %v3674 = vpack.c.b16 %v3645, %v3644
        %v3675 = vpack.c.b16 %v3647, %v3646
        %v3676 = vpack.c.b16 %v3649, %v3648
        %v3677 = vpack.c.b16 %v3651, %v3650
        %v3678 = vpack.c.b16 %v3653, %v3652
        %v3679 = vpack.c.b16 %v3655, %v3654
        %v3680 = vpack.c.b16 %v3657, %v3656
        %v3681 = vpack.c.b16 %v3659, %v3658
        %v3682 = vpack.c.b16 %v3661, %v3660
        %v3683 = vpack.c.b16 %v3663, %v3662
        %v3684 = vpack.c.b16 %v3665, %v3664
        %v3685 = vpack.c.b16 %v3667, %v3666
        %v3686 = vpack.c.b16 %v3669, %v3668
        %v3687 = vpack.c.b16 %v3671, %v3670
        %v3720 = vunpack.c.l.b16 %v3624
        %v3721 = vunpack.c.l.b16 %v3625
        %v3722 = vunpack.c.l.b16 %v3626
        %v3723 = vunpack.c.l.b16 %v3627
        %v3724 = vunpack.c.l.b16 %v3628
        %v3725 = vunpack.c.l.b16 %v3629
        %v3726 = vunpack.c.l.b16 %v3630
        %v3727 = vunpack.c.l.b16 %v3631
        %v3728 = vunpack.c.l.b16 %v3632
        %v3729 = vunpack.c.l.b16 %v3633
        %v3730 = vunpack.c.l.b16 %v3634
        %v3731 = vunpack.c.l.b16 %v3635
        %v3732 = vunpack.c.l.b16 %v3636
        %v3733 = vunpack.c.l.b16 %v3637
        %v3734 = vunpack.c.l.b16 %v3638
        %v3735 = vunpack.c.l.b16 %v3639
        %v3736 = vpack.c.b16 %v3721, %v3720
        %v3737 = vpack.c.b16 %v3723, %v3722
        %v3738 = vpack.c.b16 %v3725, %v3724
        %v3739 = vpack.c.b16 %v3727, %v3726
        %v3740 = vpack.c.b16 %v3729, %v3728
        %v3741 = vpack.c.b16 %v3731, %v3730
        %v3742 = vpack.c.b16 %v3733, %v3732
        %v3743 = vpack.c.b16 %v3735, %v3734
        %3752 = vmatpush.bf16.msra.mxu0 %v3743
        %3753 = vmatpush.bf16.msra.mxu0 %v3742
        %3754 = vmatpush.bf16.msra.mxu0 %v3741
        %3755 = vmatpush.bf16.msra.mxu0 %v3740
        %3756 = vmatpush.bf16.msra.mxu0 %v3739
        %3757 = vmatpush.bf16.msra.mxu0 %v3738
        %3758 = vmatpush.bf16.msra.mxu0 %v3737
        %3759 = vmatpush.bf16.msra.mxu0 %v3736
        %3760 = vmatmul.bf16.gmra.mxu0 %v3672
        %v3761 = vpop.f32.mrf.mxu0
        %v3762 = vadd.f32 0.0, %v3761
        %v3763 = vpop.f32.mrf.mxu0
        %v3764 = vadd.f32 0.0, %v3763
        %3765 = vmatmul.bf16.gmra.mxu0 %v3673
        %v3766 = vpop.f32.mrf.mxu0
        %v3767 = vadd.f32 0.0, %v3766
        %v3768 = vpop.f32.mrf.mxu0
        %v3769 = vadd.f32 0.0, %v3768
        %3770 = vmatmul.bf16.gmra.mxu0 %v3674
        %v3771 = vpop.f32.mrf.mxu0
        %v3772 = vadd.f32 0.0, %v3771
        %v3773 = vpop.f32.mrf.mxu0
        %v3774 = vadd.f32 0.0, %v3773
        %3775 = vmatmul.bf16.gmra.mxu0 %v3675
        %v3776 = vpop.f32.mrf.mxu0
        %v3777 = vadd.f32 0.0, %v3776
        %v3778 = vpop.f32.mrf.mxu0
        %v3779 = vadd.f32 0.0, %v3778
        %3780 = vmatmul.bf16.gmra.mxu0 %v3676
        %v3781 = vpop.f32.mrf.mxu0
        %v3782 = vadd.f32 0.0, %v3781
        %v3783 = vpop.f32.mrf.mxu0
        %v3784 = vadd.f32 0.0, %v3783
        %3785 = vmatmul.bf16.gmra.mxu0 %v3677
        %v3786 = vpop.f32.mrf.mxu0
        %v3787 = vadd.f32 0.0, %v3786
        %v3788 = vpop.f32.mrf.mxu0
        %v3789 = vadd.f32 0.0, %v3788
        %3790 = vmatmul.bf16.gmra.mxu0 %v3678
        %v3791 = vpop.f32.mrf.mxu0
        %v3792 = vadd.f32 0.0, %v3791
        %v3793 = vpop.f32.mrf.mxu0
        %v3794 = vadd.f32 0.0, %v3793
        %3795 = vmatmul.bf16.gmra.mxu0 %v3679
        %v3796 = vpop.f32.mrf.mxu0
        %v3797 = vadd.f32 0.0, %v3796
        %v3798 = vpop.f32.mrf.mxu0
        %v3799 = vadd.f32 0.0, %v3798
        %3800 = vmatmul.bf16.gmra.mxu0 %v3680
        %v3801 = vpop.f32.mrf.mxu0
        %v3802 = vadd.f32 0.0, %v3801
        %v3803 = vpop.f32.mrf.mxu0
        %v3804 = vadd.f32 0.0, %v3803
        %3805 = vmatmul.bf16.gmra.mxu0 %v3681
        %v3806 = vpop.f32.mrf.mxu0
        %v3807 = vadd.f32 0.0, %v3806
        %v3808 = vpop.f32.mrf.mxu0
        %v3809 = vadd.f32 0.0, %v3808
        %3810 = vmatmul.bf16.gmra.mxu0 %v3682
        %v3811 = vpop.f32.mrf.mxu0
        %v3812 = vadd.f32 0.0, %v3811
        %v3813 = vpop.f32.mrf.mxu0
        %v3814 = vadd.f32 0.0, %v3813
        %3815 = vmatmul.bf16.gmra.mxu0 %v3683
        %v3816 = vpop.f32.mrf.mxu0
        %v3817 = vadd.f32 0.0, %v3816
        %v3818 = vpop.f32.mrf.mxu0
        %v3819 = vadd.f32 0.0, %v3818
        %3820 = vmatmul.bf16.gmra.mxu0 %v3684
        %v3821 = vpop.f32.mrf.mxu0
        %v3822 = vadd.f32 0.0, %v3821
        %v3823 = vpop.f32.mrf.mxu0
        %v3824 = vadd.f32 0.0, %v3823
        %3825 = vmatmul.bf16.gmra.mxu0 %v3685
        %v3826 = vpop.f32.mrf.mxu0
        %v3827 = vadd.f32 0.0, %v3826
        %v3828 = vpop.f32.mrf.mxu0
        %v3829 = vadd.f32 0.0, %v3828
        %3830 = vmatmul.bf16.gmra.mxu0 %v3686
        %v3831 = vpop.f32.mrf.mxu0
        %v3832 = vadd.f32 0.0, %v3831
        %v3833 = vpop.f32.mrf.mxu0
        %v3834 = vadd.f32 0.0, %v3833
        %3835 = vmatmul.bf16.gmra.mxu0 %v3687
        %v3836 = vpop.f32.mrf.mxu0
        %v3837 = vadd.f32 0.0, %v3836
        %v3838 = vpop.f32.mrf.mxu0
        %v3839 = vadd.f32 0.0, %v3838
        %3840 = vdwg.mxu0
        %v3841 = vadd.f32 %v3080, %v3762
        %v3842 = vadd.f32 %v3081, %v3764
        %v3843 = vadd.f32 %v3082, %v3767
        %v3844 = vadd.f32 %v3083, %v3769
        %v3845 = vadd.f32 %v3084, %v3772
        %v3846 = vadd.f32 %v3085, %v3774
        %v3847 = vadd.f32 %v3086, %v3777
        %v3848 = vadd.f32 %v3087, %v3779
        %v3849 = vadd.f32 %v3088, %v3782
        %v3850 = vadd.f32 %v3089, %v3784
        %v3851 = vadd.f32 %v3090, %v3787
        %v3852 = vadd.f32 %v3091, %v3789
        %v3853 = vadd.f32 %v3092, %v3792
        %v3854 = vadd.f32 %v3093, %v3794
        %v3855 = vadd.f32 %v3094, %v3797
        %v3856 = vadd.f32 %v3095, %v3799
        %v3857 = vadd.f32 %v3096, %v3802
        %v3858 = vadd.f32 %v3097, %v3804
        %v3859 = vadd.f32 %v3098, %v3807
        %v3860 = vadd.f32 %v3099, %v3809
        %v3861 = vadd.f32 %v3100, %v3812
        %v3862 = vadd.f32 %v3101, %v3814
        %v3863 = vadd.f32 %v3102, %v3817
        %v3864 = vadd.f32 %v3103, %v3819
        %v3865 = vadd.f32 %v3104, %v3822
        %v3866 = vadd.f32 %v3105, %v3824
        %v3867 = vadd.f32 %v3106, %v3827
        %v3868 = vadd.f32 %v3107, %v3829
        %v3869 = vadd.f32 %v3108, %v3832
        %v3870 = vadd.f32 %v3109, %v3834
        %v3871 = vadd.f32 %v3110, %v3837
        %v3872 = vadd.f32 %v3111, %v3839
        %v3873 = vld [vmem:[%s1147] sm:$0xe]
        %v3874 = vld [vmem:[%s1147 + $0x8] sm:$0xe]
        %v3875 = vld [vmem:[%s1147 + $0x10] sm:$0xe]
        %v3876 = vld [vmem:[%s1147 + $0x18] sm:$0xe]
        %v3877 = vld [vmem:[%s1147 + $0x20] sm:$0xe]
        %v3878 = vld [vmem:[%s1147 + $0x28] sm:$0xe]
        %v3879 = vld [vmem:[%s1147 + $0x30] sm:$0xe]
        %v3880 = vld [vmem:[%s1147 + $0x38] sm:$0xe]
        %v3881 = vld [vmem:[%s1147 + $0x50] sm:$0xe]
        %v3882 = vld [vmem:[%s1147 + $0x58] sm:$0xe]
        %v3883 = vld [vmem:[%s1147 + $0x60] sm:$0xe]
        %v3884 = vld [vmem:[%s1147 + $0x68] sm:$0xe]
        %v3885 = vld [vmem:[%s1147 + $0x70] sm:$0xe]
        %v3886 = vld [vmem:[%s1147 + $0x78] sm:$0xe]
        %v3887 = vld [vmem:[%s1147 + $0x80] sm:$0xe]
        %v3888 = vld [vmem:[%s1147 + $0x88] sm:$0xe]
        %v3889 = vld [vmem:[%s1147 + $0xa0] sm:$0xe]
        %v3890 = vld [vmem:[%s1147 + $0xa8] sm:$0xe]
        %v3891 = vld [vmem:[%s1147 + $0xb0] sm:$0xe]
        %v3892 = vld [vmem:[%s1147 + $0xb8] sm:$0xe]
        %v3893 = vld [vmem:[%s1147 + $0xc0] sm:$0xe]
        %v3894 = vld [vmem:[%s1147 + $0xc8] sm:$0xe]
        %v3895 = vld [vmem:[%s1147 + $0xd0] sm:$0xe]
        %v3896 = vld [vmem:[%s1147 + $0xd8] sm:$0xe]
        %v3897 = vld [vmem:[%s1147 + $0xf0] sm:$0xe]
        %v3898 = vld [vmem:[%s1147 + $0xf8] sm:$0xe]
        %v3899 = vld [vmem:[%s1147 + $0x100] sm:$0xe]
        %v3900 = vld [vmem:[%s1147 + $0x108] sm:$0xe]
        %v3901 = vld [vmem:[%s1147 + $0x110] sm:$0xe]
        %v3902 = vld [vmem:[%s1147 + $0x118] sm:$0xe]
        %v3903 = vld [vmem:[%s1147 + $0x120] sm:$0xe]
        %v3904 = vld [vmem:[%s1147 + $0x128] sm:$0xe]
        %v3969 = vrot.slane %v3873, 5
        %v3970 = vrot.slane %v3969, 4
        %v3971 = vrot.slane %v3113, 5
        %v3972 = vsel %vm2421, %v3970, %v3971
        %v3973 = vrot.slane %v3874, 5
        %v3974 = vrot.slane %v3973, 4
        %v3975 = vrot.slane %v3115, 5
        %v3976 = vsel %vm2421, %v3974, %v3975
        %v3977 = vrot.slane %v3875, 5
        %v3978 = vrot.slane %v3977, 4
        %v3979 = vrot.slane %v3117, 5
        %v3980 = vsel %vm2421, %v3978, %v3979
        %v3981 = vrot.slane %v3876, 5
        %v3982 = vrot.slane %v3981, 4
        %v3983 = vrot.slane %v3119, 5
        %v3984 = vsel %vm2421, %v3982, %v3983
        %v3985 = vrot.slane %v3877, 5
        %v3986 = vrot.slane %v3985, 4
        %v3987 = vrot.slane %v3121, 5
        %v3988 = vsel %vm2421, %v3986, %v3987
        %v3989 = vrot.slane %v3878, 5
        %v3990 = vrot.slane %v3989, 4
        %v3991 = vrot.slane %v3123, 5
        %v3992 = vsel %vm2421, %v3990, %v3991
        %v3993 = vrot.slane %v3879, 5
        %v3994 = vrot.slane %v3993, 4
        %v3995 = vrot.slane %v3125, 5
        %v3996 = vsel %vm2421, %v3994, %v3995
        %v3997 = vrot.slane %v3880, 5
        %v3998 = vrot.slane %v3997, 4
        %v3999 = vrot.slane %v3127, 5
        %v4000 = vsel %vm2421, %v3998, %v3999
        %v4001 = vrot.slane %v3881, 5
        %v4002 = vrot.slane %v4001, 4
        %v4003 = vrot.slane %v3129, 5
        %v4004 = vsel %vm2421, %v4002, %v4003
        %v4005 = vrot.slane %v3882, 5
        %v4006 = vrot.slane %v4005, 4
        %v4007 = vrot.slane %v3131, 5
        %v4008 = vsel %vm2421, %v4006, %v4007
        %v4009 = vrot.slane %v3883, 5
        %v4010 = vrot.slane %v4009, 4
        %v4011 = vrot.slane %v3133, 5
        %v4012 = vsel %vm2421, %v4010, %v4011
        %v4013 = vrot.slane %v3884, 5
        %v4014 = vrot.slane %v4013, 4
        %v4015 = vrot.slane %v3135, 5
        %v4016 = vsel %vm2421, %v4014, %v4015
        %v4017 = vrot.slane %v3885, 5
        %v4018 = vrot.slane %v4017, 4
        %v4019 = vrot.slane %v3137, 5
        %v4020 = vsel %vm2421, %v4018, %v4019
        %v4021 = vrot.slane %v3886, 5
        %v4022 = vrot.slane %v4021, 4
        %v4023 = vrot.slane %v3139, 5
        %v4024 = vsel %vm2421, %v4022, %v4023
        %v4025 = vrot.slane %v3887, 5
        %v4026 = vrot.slane %v4025, 4
        %v4027 = vrot.slane %v3141, 5
        %v4028 = vsel %vm2421, %v4026, %v4027
        %v4029 = vrot.slane %v3888, 5
        %v4030 = vrot.slane %v4029, 4
        %v4031 = vrot.slane %v3143, 5
        %v4032 = vsel %vm2421, %v4030, %v4031
        %v4033 = vrot.slane %v3889, 5
        %v4034 = vrot.slane %v4033, 4
        %v4035 = vrot.slane %v3145, 5
        %v4036 = vsel %vm2421, %v4034, %v4035
        %v4037 = vrot.slane %v3890, 5
        %v4038 = vrot.slane %v4037, 4
        %v4039 = vrot.slane %v3147, 5
        %v4040 = vsel %vm2421, %v4038, %v4039
        %v4041 = vrot.slane %v3891, 5
        %v4042 = vrot.slane %v4041, 4
        %v4043 = vrot.slane %v3149, 5
        %v4044 = vsel %vm2421, %v4042, %v4043
        %v4045 = vrot.slane %v3892, 5
        %v4046 = vrot.slane %v4045, 4
        %v4047 = vrot.slane %v3151, 5
        %v4048 = vsel %vm2421, %v4046, %v4047
        %v4049 = vrot.slane %v3893, 5
        %v4050 = vrot.slane %v4049, 4
        %v4051 = vrot.slane %v3153, 5
        %v4052 = vsel %vm2421, %v4050, %v4051
        %v4053 = vrot.slane %v3894, 5
        %v4054 = vrot.slane %v4053, 4
        %v4055 = vrot.slane %v3155, 5
        %v4056 = vsel %vm2421, %v4054, %v4055
        %v4057 = vrot.slane %v3895, 5
        %v4058 = vrot.slane %v4057, 4
        %v4059 = vrot.slane %v3157, 5
        %v4060 = vsel %vm2421, %v4058, %v4059
        %v4061 = vrot.slane %v3896, 5
        %v4062 = vrot.slane %v4061, 4
        %v4063 = vrot.slane %v3159, 5
        %v4064 = vsel %vm2421, %v4062, %v4063
        %v4065 = vrot.slane %v3897, 5
        %v4066 = vrot.slane %v4065, 4
        %v4067 = vrot.slane %v3161, 5
        %v4068 = vsel %vm2421, %v4066, %v4067
        %v4069 = vrot.slane %v3898, 5
        %v4070 = vrot.slane %v4069, 4
        %v4071 = vrot.slane %v3163, 5
        %v4072 = vsel %vm2421, %v4070, %v4071
        %v4073 = vrot.slane %v3899, 5
        %v4074 = vrot.slane %v4073, 4
        %v4075 = vrot.slane %v3165, 5
        %v4076 = vsel %vm2421, %v4074, %v4075
        %v4077 = vrot.slane %v3900, 5
        %v4078 = vrot.slane %v4077, 4
        %v4079 = vrot.slane %v3167, 5
        %v4080 = vsel %vm2421, %v4078, %v4079
        %v4081 = vrot.slane %v3901, 5
        %v4082 = vrot.slane %v4081, 4
        %v4083 = vrot.slane %v3169, 5
        %v4084 = vsel %vm2421, %v4082, %v4083
        %v4085 = vrot.slane %v3902, 5
        %v4086 = vrot.slane %v4085, 4
        %v4087 = vrot.slane %v3171, 5
        %v4088 = vsel %vm2421, %v4086, %v4087
        %v4089 = vrot.slane %v3903, 5
        %v4090 = vrot.slane %v4089, 4
        %v4091 = vrot.slane %v3173, 5
        %v4092 = vsel %vm2421, %v4090, %v4091
        %v4093 = vrot.slane %v3904, 5
        %v4094 = vrot.slane %v4093, 4
        %v4095 = vrot.slane %v3175, 5
        %v4096 = vsel %vm2421, %v4094, %v4095
        %v4097 = vld [vmem:[#allocation6 + $0x140] sm:$0xf]
        %v4098 = vld [vmem:[#allocation6 + $0x144] sm:$0xf]
        %v4099 = vld [vmem:[#allocation6 + $0x148] sm:$0xf]
        %v4100 = vld [vmem:[#allocation6 + $0x14c] sm:$0xf]
        %v4101 = vld [vmem:[#allocation6 + $0x150] sm:$0xf]
        %v4102 = vld [vmem:[#allocation6 + $0x154] sm:$0xf]
        %v4103 = vld [vmem:[#allocation6 + $0x158] sm:$0xf]
        %v4104 = vld [vmem:[#allocation6 + $0x15c] sm:$0xf]
        %v4105 = vld [vmem:[#allocation6 + $0x160] sm:$0xf]
        %v4106 = vld [vmem:[#allocation6 + $0x164] sm:$0xf]
        %v4107 = vld [vmem:[#allocation6 + $0x168] sm:$0xf]
        %v4108 = vld [vmem:[#allocation6 + $0x16c] sm:$0xf]
        %v4109 = vld [vmem:[#allocation6 + $0x170] sm:$0xf]
        %v4110 = vld [vmem:[#allocation6 + $0x174] sm:$0xf]
        %v4111 = vld [vmem:[#allocation6 + $0x178] sm:$0xf]
        %v4112 = vld [vmem:[#allocation6 + $0x17c] sm:$0xf]
        %v4113 = vunpack.c.l.b16 %v3972
        %v4114 = vunpack.c.l.b16 %v3976
        %v4115 = vunpack.c.l.b16 %v3980
        %v4116 = vunpack.c.l.b16 %v3984
        %v4117 = vunpack.c.l.b16 %v3988
        %v4118 = vunpack.c.l.b16 %v3992
        %v4119 = vunpack.c.l.b16 %v3996
        %v4120 = vunpack.c.l.b16 %v4000
        %v4121 = vunpack.c.l.b16 %v4004
        %v4122 = vunpack.c.l.b16 %v4008
        %v4123 = vunpack.c.l.b16 %v4012
        %v4124 = vunpack.c.l.b16 %v4016
        %v4125 = vunpack.c.l.b16 %v4020
        %v4126 = vunpack.c.l.b16 %v4024
        %v4127 = vunpack.c.l.b16 %v4028
        %v4128 = vunpack.c.l.b16 %v4032
        %v4129 = vunpack.c.l.b16 %v4036
        %v4130 = vunpack.c.l.b16 %v4040
        %v4131 = vunpack.c.l.b16 %v4044
        %v4132 = vunpack.c.l.b16 %v4048
        %v4133 = vunpack.c.l.b16 %v4052
        %v4134 = vunpack.c.l.b16 %v4056
        %v4135 = vunpack.c.l.b16 %v4060
        %v4136 = vunpack.c.l.b16 %v4064
        %v4137 = vunpack.c.l.b16 %v4068
        %v4138 = vunpack.c.l.b16 %v4072
        %v4139 = vunpack.c.l.b16 %v4076
        %v4140 = vunpack.c.l.b16 %v4080
        %v4141 = vunpack.c.l.b16 %v4084
        %v4142 = vunpack.c.l.b16 %v4088
        %v4143 = vunpack.c.l.b16 %v4092
        %v4144 = vunpack.c.l.b16 %v4096
        %v4145 = vpack.c.b16 %v4114, %v4113
        %v4146 = vpack.c.b16 %v4116, %v4115
        %v4147 = vpack.c.b16 %v4118, %v4117
        %v4148 = vpack.c.b16 %v4120, %v4119
        %v4149 = vpack.c.b16 %v4122, %v4121
        %v4150 = vpack.c.b16 %v4124, %v4123
        %v4151 = vpack.c.b16 %v4126, %v4125
        %v4152 = vpack.c.b16 %v4128, %v4127
        %v4153 = vpack.c.b16 %v4130, %v4129
        %v4154 = vpack.c.b16 %v4132, %v4131
        %v4155 = vpack.c.b16 %v4134, %v4133
        %v4156 = vpack.c.b16 %v4136, %v4135
        %v4157 = vpack.c.b16 %v4138, %v4137
        %v4158 = vpack.c.b16 %v4140, %v4139
        %v4159 = vpack.c.b16 %v4142, %v4141
        %v4160 = vpack.c.b16 %v4144, %v4143
        %v4193 = vunpack.c.l.b16 %v4097
        %v4194 = vunpack.c.l.b16 %v4098
        %v4195 = vunpack.c.l.b16 %v4099
        %v4196 = vunpack.c.l.b16 %v4100
        %v4197 = vunpack.c.l.b16 %v4101
        %v4198 = vunpack.c.l.b16 %v4102
        %v4199 = vunpack.c.l.b16 %v4103
        %v4200 = vunpack.c.l.b16 %v4104
        %v4201 = vunpack.c.l.b16 %v4105
        %v4202 = vunpack.c.l.b16 %v4106
        %v4203 = vunpack.c.l.b16 %v4107
        %v4204 = vunpack.c.l.b16 %v4108
        %v4205 = vunpack.c.l.b16 %v4109
        %v4206 = vunpack.c.l.b16 %v4110
        %v4207 = vunpack.c.l.b16 %v4111
        %v4208 = vunpack.c.l.b16 %v4112
        %v4209 = vpack.c.b16 %v4194, %v4193
        %v4210 = vpack.c.b16 %v4196, %v4195
        %v4211 = vpack.c.b16 %v4198, %v4197
        %v4212 = vpack.c.b16 %v4200, %v4199
        %v4213 = vpack.c.b16 %v4202, %v4201
        %v4214 = vpack.c.b16 %v4204, %v4203
        %v4215 = vpack.c.b16 %v4206, %v4205
        %v4216 = vpack.c.b16 %v4208, %v4207
        %4225 = vmatpush.bf16.msra.mxu0 %v4216
        %4226 = vmatpush.bf16.msra.mxu0 %v4215
        %4227 = vmatpush.bf16.msra.mxu0 %v4214
        %4228 = vmatpush.bf16.msra.mxu0 %v4213
        %4229 = vmatpush.bf16.msra.mxu0 %v4212
        %4230 = vmatpush.bf16.msra.mxu0 %v4211
        %4231 = vmatpush.bf16.msra.mxu0 %v4210
        %4232 = vmatpush.bf16.msra.mxu0 %v4209
        %4233 = vmatmul.bf16.gmra.mxu0 %v4145
        %v4234 = vpop.f32.mrf.mxu0
        %v4235 = vadd.f32 0.0, %v4234
        %v4236 = vpop.f32.mrf.mxu0
        %v4237 = vadd.f32 0.0, %v4236
        %4238 = vmatmul.bf16.gmra.mxu0 %v4146
        %v4239 = vpop.f32.mrf.mxu0
        %v4240 = vadd.f32 0.0, %v4239
        %v4241 = vpop.f32.mrf.mxu0
        %v4242 = vadd.f32 0.0, %v4241
        %4243 = vmatmul.bf16.gmra.mxu0 %v4147
        %v4244 = vpop.f32.mrf.mxu0
        %v4245 = vadd.f32 0.0, %v4244
        %v4246 = vpop.f32.mrf.mxu0
        %v4247 = vadd.f32 0.0, %v4246
        %4248 = vmatmul.bf16.gmra.mxu0 %v4148
        %v4249 = vpop.f32.mrf.mxu0
        %v4250 = vadd.f32 0.0, %v4249
        %v4251 = vpop.f32.mrf.mxu0
        %v4252 = vadd.f32 0.0, %v4251
        %4253 = vmatmul.bf16.gmra.mxu0 %v4149
        %v4254 = vpop.f32.mrf.mxu0
        %v4255 = vadd.f32 0.0, %v4254
        %v4256 = vpop.f32.mrf.mxu0
        %v4257 = vadd.f32 0.0, %v4256
        %4258 = vmatmul.bf16.gmra.mxu0 %v4150
        %v4259 = vpop.f32.mrf.mxu0
        %v4260 = vadd.f32 0.0, %v4259
        %v4261 = vpop.f32.mrf.mxu0
        %v4262 = vadd.f32 0.0, %v4261
        %4263 = vmatmul.bf16.gmra.mxu0 %v4151
        %v4264 = vpop.f32.mrf.mxu0
        %v4265 = vadd.f32 0.0, %v4264
        %v4266 = vpop.f32.mrf.mxu0
        %v4267 = vadd.f32 0.0, %v4266
        %4268 = vmatmul.bf16.gmra.mxu0 %v4152
        %v4269 = vpop.f32.mrf.mxu0
        %v4270 = vadd.f32 0.0, %v4269
        %v4271 = vpop.f32.mrf.mxu0
        %v4272 = vadd.f32 0.0, %v4271
        %4273 = vmatmul.bf16.gmra.mxu0 %v4153
        %v4274 = vpop.f32.mrf.mxu0
        %v4275 = vadd.f32 0.0, %v4274
        %v4276 = vpop.f32.mrf.mxu0
        %v4277 = vadd.f32 0.0, %v4276
        %4278 = vmatmul.bf16.gmra.mxu0 %v4154
        %v4279 = vpop.f32.mrf.mxu0
        %v4280 = vadd.f32 0.0, %v4279
        %v4281 = vpop.f32.mrf.mxu0
        %v4282 = vadd.f32 0.0, %v4281
        %4283 = vmatmul.bf16.gmra.mxu0 %v4155
        %v4284 = vpop.f32.mrf.mxu0
        %v4285 = vadd.f32 0.0, %v4284
        %v4286 = vpop.f32.mrf.mxu0
        %v4287 = vadd.f32 0.0, %v4286
        %4288 = vmatmul.bf16.gmra.mxu0 %v4156
        %v4289 = vpop.f32.mrf.mxu0
        %v4290 = vadd.f32 0.0, %v4289
        %v4291 = vpop.f32.mrf.mxu0
        %v4292 = vadd.f32 0.0, %v4291
        %4293 = vmatmul.bf16.gmra.mxu0 %v4157
        %v4294 = vpop.f32.mrf.mxu0
        %v4295 = vadd.f32 0.0, %v4294
        %v4296 = vpop.f32.mrf.mxu0
        %v4297 = vadd.f32 0.0, %v4296
        %4298 = vmatmul.bf16.gmra.mxu0 %v4158
        %v4299 = vpop.f32.mrf.mxu0
        %v4300 = vadd.f32 0.0, %v4299
        %v4301 = vpop.f32.mrf.mxu0
        %v4302 = vadd.f32 0.0, %v4301
        %4303 = vmatmul.bf16.gmra.mxu0 %v4159
        %v4304 = vpop.f32.mrf.mxu0
        %v4305 = vadd.f32 0.0, %v4304
        %v4306 = vpop.f32.mrf.mxu0
        %v4307 = vadd.f32 0.0, %v4306
        %4308 = vmatmul.bf16.gmra.mxu0 %v4160
        %v4309 = vpop.f32.mrf.mxu0
        %v4310 = vadd.f32 0.0, %v4309
        %v4311 = vpop.f32.mrf.mxu0
        %v4312 = vadd.f32 0.0, %v4311
        %4313 = vdwg.mxu0
        %v4314 = vadd.f32 %v3841, %v4235
        %v4315 = vadd.f32 %v3842, %v4237
        %v4316 = vadd.f32 %v3843, %v4240
        %v4317 = vadd.f32 %v3844, %v4242
        %v4318 = vadd.f32 %v3845, %v4245
        %v4319 = vadd.f32 %v3846, %v4247
        %v4320 = vadd.f32 %v3847, %v4250
        %v4321 = vadd.f32 %v3848, %v4252
        %v4322 = vadd.f32 %v3849, %v4255
        %v4323 = vadd.f32 %v3850, %v4257
        %v4324 = vadd.f32 %v3851, %v4260
        %v4325 = vadd.f32 %v3852, %v4262
        %v4326 = vadd.f32 %v3853, %v4265
        %v4327 = vadd.f32 %v3854, %v4267
        %v4328 = vadd.f32 %v3855, %v4270
        %v4329 = vadd.f32 %v3856, %v4272
        %v4330 = vadd.f32 %v3857, %v4275
        %v4331 = vadd.f32 %v3858, %v4277
        %v4332 = vadd.f32 %v3859, %v4280
        %v4333 = vadd.f32 %v3860, %v4282
        %v4334 = vadd.f32 %v3861, %v4285
        %v4335 = vadd.f32 %v3862, %v4287
        %v4336 = vadd.f32 %v3863, %v4290
        %v4337 = vadd.f32 %v3864, %v4292
        %v4338 = vadd.f32 %v3865, %v4295
        %v4339 = vadd.f32 %v3866, %v4297
        %v4340 = vadd.f32 %v3867, %v4300
        %v4341 = vadd.f32 %v3868, %v4302
        %v4342 = vadd.f32 %v3869, %v4305
        %v4343 = vadd.f32 %v3870, %v4307
        %v4344 = vadd.f32 %v3871, %v4310
        %v4345 = vadd.f32 %v3872, %v4312
        %s4346 = scalar_lea.vmem [#allocation2], 16
        %v4347 = vld [vmem:[%s4346] sm:$0xf]
        %v4348 = vld [vmem:[%s4346 + $0x8] sm:$0xf]
        %v4349 = vld [vmem:[%s4346 + $0x10] sm:$0xf]
        %v4350 = vld [vmem:[%s4346 + $0x18] sm:$0xf]
        %v4351 = vld [vmem:[%s4346 + $0x20] sm:$0xf]
        %v4352 = vld [vmem:[%s4346 + $0x28] sm:$0xf]
        %v4353 = vld [vmem:[%s4346 + $0x30] sm:$0xf]
        %v4354 = vld [vmem:[%s4346 + $0x38] sm:$0xf]
        %v4355 = vld [vmem:[%s4346 + $0x50] sm:$0xf]
        %v4356 = vld [vmem:[%s4346 + $0x58] sm:$0xf]
        %v4357 = vld [vmem:[%s4346 + $0x60] sm:$0xf]
        %v4358 = vld [vmem:[%s4346 + $0x68] sm:$0xf]
        %v4359 = vld [vmem:[%s4346 + $0x70] sm:$0xf]
        %v4360 = vld [vmem:[%s4346 + $0x78] sm:$0xf]
        %v4361 = vld [vmem:[%s4346 + $0x80] sm:$0xf]
        %v4362 = vld [vmem:[%s4346 + $0x88] sm:$0xf]
        %v4363 = vld [vmem:[%s4346 + $0xa0] sm:$0xf]
        %v4364 = vld [vmem:[%s4346 + $0xa8] sm:$0xf]
        %v4365 = vld [vmem:[%s4346 + $0xb0] sm:$0xf]
        %v4366 = vld [vmem:[%s4346 + $0xb8] sm:$0xf]
        %v4367 = vld [vmem:[%s4346 + $0xc0] sm:$0xf]
        %v4368 = vld [vmem:[%s4346 + $0xc8] sm:$0xf]
        %v4369 = vld [vmem:[%s4346 + $0xd0] sm:$0xf]
        %v4370 = vld [vmem:[%s4346 + $0xd8] sm:$0xf]
        %v4371 = vld [vmem:[%s4346 + $0xf0] sm:$0xf]
        %v4372 = vld [vmem:[%s4346 + $0xf8] sm:$0xf]
        %v4373 = vld [vmem:[%s4346 + $0x100] sm:$0xf]
        %v4374 = vld [vmem:[%s4346 + $0x108] sm:$0xf]
        %v4375 = vld [vmem:[%s4346 + $0x110] sm:$0xf]
        %v4376 = vld [vmem:[%s4346 + $0x118] sm:$0xf]
        %v4377 = vld [vmem:[%s4346 + $0x120] sm:$0xf]
        %v4378 = vld [vmem:[%s4346 + $0x128] sm:$0xf]
        %v4379 = vld [vmem:[#allocation6 + $0x180] sm:$0xf]
        %v4380 = vld [vmem:[#allocation6 + $0x184] sm:$0xf]
        %v4381 = vld [vmem:[#allocation6 + $0x188] sm:$0xf]
        %v4382 = vld [vmem:[#allocation6 + $0x18c] sm:$0xf]
        %v4383 = vld [vmem:[#allocation6 + $0x190] sm:$0xf]
        %v4384 = vld [vmem:[#allocation6 + $0x194] sm:$0xf]
        %v4385 = vld [vmem:[#allocation6 + $0x198] sm:$0xf]
        %v4386 = vld [vmem:[#allocation6 + $0x19c] sm:$0xf]
        %v4387 = vld [vmem:[#allocation6 + $0x1a0] sm:$0xf]
        %v4388 = vld [vmem:[#allocation6 + $0x1a4] sm:$0xf]
        %v4389 = vld [vmem:[#allocation6 + $0x1a8] sm:$0xf]
        %v4390 = vld [vmem:[#allocation6 + $0x1ac] sm:$0xf]
        %v4391 = vld [vmem:[#allocation6 + $0x1b0] sm:$0xf]
        %v4392 = vld [vmem:[#allocation6 + $0x1b4] sm:$0xf]
        %v4393 = vld [vmem:[#allocation6 + $0x1b8] sm:$0xf]
        %v4394 = vld [vmem:[#allocation6 + $0x1bc] sm:$0xf]
        %v4427 = vunpack.c.l.b16 %v4347
        %v4428 = vunpack.c.l.b16 %v4348
        %v4429 = vunpack.c.l.b16 %v4349
        %v4430 = vunpack.c.l.b16 %v4350
        %v4431 = vunpack.c.l.b16 %v4351
        %v4432 = vunpack.c.l.b16 %v4352
        %v4433 = vunpack.c.l.b16 %v4353
        %v4434 = vunpack.c.l.b16 %v4354
        %v4435 = vunpack.c.l.b16 %v4355
        %v4436 = vunpack.c.l.b16 %v4356
        %v4437 = vunpack.c.l.b16 %v4357
        %v4438 = vunpack.c.l.b16 %v4358
        %v4439 = vunpack.c.l.b16 %v4359
        %v4440 = vunpack.c.l.b16 %v4360
        %v4441 = vunpack.c.l.b16 %v4361
        %v4442 = vunpack.c.l.b16 %v4362
        %v4443 = vunpack.c.l.b16 %v4363
        %v4444 = vunpack.c.l.b16 %v4364
        %v4445 = vunpack.c.l.b16 %v4365
        %v4446 = vunpack.c.l.b16 %v4366
        %v4447 = vunpack.c.l.b16 %v4367
        %v4448 = vunpack.c.l.b16 %v4368
        %v4449 = vunpack.c.l.b16 %v4369
        %v4450 = vunpack.c.l.b16 %v4370
        %v4451 = vunpack.c.l.b16 %v4371
        %v4452 = vunpack.c.l.b16 %v4372
        %v4453 = vunpack.c.l.b16 %v4373
        %v4454 = vunpack.c.l.b16 %v4374
        %v4455 = vunpack.c.l.b16 %v4375
        %v4456 = vunpack.c.l.b16 %v4376
        %v4457 = vunpack.c.l.b16 %v4377
        %v4458 = vunpack.c.l.b16 %v4378
        %v4459 = vpack.c.b16 %v4428, %v4427
        %v4460 = vpack.c.b16 %v4430, %v4429
        %v4461 = vpack.c.b16 %v4432, %v4431
        %v4462 = vpack.c.b16 %v4434, %v4433
        %v4463 = vpack.c.b16 %v4436, %v4435
        %v4464 = vpack.c.b16 %v4438, %v4437
        %v4465 = vpack.c.b16 %v4440, %v4439
        %v4466 = vpack.c.b16 %v4442, %v4441
        %v4467 = vpack.c.b16 %v4444, %v4443
        %v4468 = vpack.c.b16 %v4446, %v4445
        %v4469 = vpack.c.b16 %v4448, %v4447
        %v4470 = vpack.c.b16 %v4450, %v4449
        %v4471 = vpack.c.b16 %v4452, %v4451
        %v4472 = vpack.c.b16 %v4454, %v4453
        %v4473 = vpack.c.b16 %v4456, %v4455
        %v4474 = vpack.c.b16 %v4458, %v4457
        %v4507 = vunpack.c.l.b16 %v4379
        %v4508 = vunpack.c.l.b16 %v4380
        %v4509 = vunpack.c.l.b16 %v4381
        %v4510 = vunpack.c.l.b16 %v4382
        %v4511 = vunpack.c.l.b16 %v4383
        %v4512 = vunpack.c.l.b16 %v4384
        %v4513 = vunpack.c.l.b16 %v4385
        %v4514 = vunpack.c.l.b16 %v4386
        %v4515 = vunpack.c.l.b16 %v4387
        %v4516 = vunpack.c.l.b16 %v4388
        %v4517 = vunpack.c.l.b16 %v4389
        %v4518 = vunpack.c.l.b16 %v4390
        %v4519 = vunpack.c.l.b16 %v4391
        %v4520 = vunpack.c.l.b16 %v4392
        %v4521 = vunpack.c.l.b16 %v4393
        %v4522 = vunpack.c.l.b16 %v4394
        %v4523 = vpack.c.b16 %v4508, %v4507
        %v4524 = vpack.c.b16 %v4510, %v4509
        %v4525 = vpack.c.b16 %v4512, %v4511
        %v4526 = vpack.c.b16 %v4514, %v4513
        %v4527 = vpack.c.b16 %v4516, %v4515
        %v4528 = vpack.c.b16 %v4518, %v4517
        %v4529 = vpack.c.b16 %v4520, %v4519
        %v4530 = vpack.c.b16 %v4522, %v4521
        %4539 = vmatpush.bf16.msra.mxu0 %v4530
        %4540 = vmatpush.bf16.msra.mxu0 %v4529
        %4541 = vmatpush.bf16.msra.mxu0 %v4528
        %4542 = vmatpush.bf16.msra.mxu0 %v4527
        %4543 = vmatpush.bf16.msra.mxu0 %v4526
        %4544 = vmatpush.bf16.msra.mxu0 %v4525
        %4545 = vmatpush.bf16.msra.mxu0 %v4524
        %4546 = vmatpush.bf16.msra.mxu0 %v4523
        %4547 = vmatmul.bf16.gmra.mxu0 %v4459
        %v4548 = vpop.f32.mrf.mxu0
        %v4549 = vadd.f32 0.0, %v4548
        %v4550 = vpop.f32.mrf.mxu0
        %v4551 = vadd.f32 0.0, %v4550
        %4552 = vmatmul.bf16.gmra.mxu0 %v4460
        %v4553 = vpop.f32.mrf.mxu0
        %v4554 = vadd.f32 0.0, %v4553
        %v4555 = vpop.f32.mrf.mxu0
        %v4556 = vadd.f32 0.0, %v4555
        %4557 = vmatmul.bf16.gmra.mxu0 %v4461
        %v4558 = vpop.f32.mrf.mxu0
        %v4559 = vadd.f32 0.0, %v4558
        %v4560 = vpop.f32.mrf.mxu0
        %v4561 = vadd.f32 0.0, %v4560
        %4562 = vmatmul.bf16.gmra.mxu0 %v4462
        %v4563 = vpop.f32.mrf.mxu0
        %v4564 = vadd.f32 0.0, %v4563
        %v4565 = vpop.f32.mrf.mxu0
        %v4566 = vadd.f32 0.0, %v4565
        %4567 = vmatmul.bf16.gmra.mxu0 %v4463
        %v4568 = vpop.f32.mrf.mxu0
        %v4569 = vadd.f32 0.0, %v4568
        %v4570 = vpop.f32.mrf.mxu0
        %v4571 = vadd.f32 0.0, %v4570
        %4572 = vmatmul.bf16.gmra.mxu0 %v4464
        %v4573 = vpop.f32.mrf.mxu0
        %v4574 = vadd.f32 0.0, %v4573
        %v4575 = vpop.f32.mrf.mxu0
        %v4576 = vadd.f32 0.0, %v4575
        %4577 = vmatmul.bf16.gmra.mxu0 %v4465
        %v4578 = vpop.f32.mrf.mxu0
        %v4579 = vadd.f32 0.0, %v4578
        %v4580 = vpop.f32.mrf.mxu0
        %v4581 = vadd.f32 0.0, %v4580
        %4582 = vmatmul.bf16.gmra.mxu0 %v4466
        %v4583 = vpop.f32.mrf.mxu0
        %v4584 = vadd.f32 0.0, %v4583
        %v4585 = vpop.f32.mrf.mxu0
        %v4586 = vadd.f32 0.0, %v4585
        %4587 = vmatmul.bf16.gmra.mxu0 %v4467
        %v4588 = vpop.f32.mrf.mxu0
        %v4589 = vadd.f32 0.0, %v4588
        %v4590 = vpop.f32.mrf.mxu0
        %v4591 = vadd.f32 0.0, %v4590
        %4592 = vmatmul.bf16.gmra.mxu0 %v4468
        %v4593 = vpop.f32.mrf.mxu0
        %v4594 = vadd.f32 0.0, %v4593
        %v4595 = vpop.f32.mrf.mxu0
        %v4596 = vadd.f32 0.0, %v4595
        %4597 = vmatmul.bf16.gmra.mxu0 %v4469
        %v4598 = vpop.f32.mrf.mxu0
        %v4599 = vadd.f32 0.0, %v4598
        %v4600 = vpop.f32.mrf.mxu0
        %v4601 = vadd.f32 0.0, %v4600
        %4602 = vmatmul.bf16.gmra.mxu0 %v4470
        %v4603 = vpop.f32.mrf.mxu0
        %v4604 = vadd.f32 0.0, %v4603
        %v4605 = vpop.f32.mrf.mxu0
        %v4606 = vadd.f32 0.0, %v4605
        %4607 = vmatmul.bf16.gmra.mxu0 %v4471
        %v4608 = vpop.f32.mrf.mxu0
        %v4609 = vadd.f32 0.0, %v4608
        %v4610 = vpop.f32.mrf.mxu0
        %v4611 = vadd.f32 0.0, %v4610
        %4612 = vmatmul.bf16.gmra.mxu0 %v4472
        %v4613 = vpop.f32.mrf.mxu0
        %v4614 = vadd.f32 0.0, %v4613
        %v4615 = vpop.f32.mrf.mxu0
        %v4616 = vadd.f32 0.0, %v4615
        %4617 = vmatmul.bf16.gmra.mxu0 %v4473
        %v4618 = vpop.f32.mrf.mxu0
        %v4619 = vadd.f32 0.0, %v4618
        %v4620 = vpop.f32.mrf.mxu0
        %v4621 = vadd.f32 0.0, %v4620
        %4622 = vmatmul.bf16.gmra.mxu0 %v4474
        %v4623 = vpop.f32.mrf.mxu0
        %v4624 = vadd.f32 0.0, %v4623
        %v4625 = vpop.f32.mrf.mxu0
        %v4626 = vadd.f32 0.0, %v4625
        %4627 = vdwg.mxu0
        %v4628 = vadd.f32 %v4314, %v4549
        %v4629 = vadd.f32 %v4315, %v4551
        %v4630 = vadd.f32 %v4316, %v4554
        %v4631 = vadd.f32 %v4317, %v4556
        %v4632 = vadd.f32 %v4318, %v4559
        %v4633 = vadd.f32 %v4319, %v4561
        %v4634 = vadd.f32 %v4320, %v4564
        %v4635 = vadd.f32 %v4321, %v4566
        %v4636 = vadd.f32 %v4322, %v4569
        %v4637 = vadd.f32 %v4323, %v4571
        %v4638 = vadd.f32 %v4324, %v4574
        %v4639 = vadd.f32 %v4325, %v4576
        %v4640 = vadd.f32 %v4326, %v4579
        %v4641 = vadd.f32 %v4327, %v4581
        %v4642 = vadd.f32 %v4328, %v4584
        %v4643 = vadd.f32 %v4329, %v4586
        %v4644 = vadd.f32 %v4330, %v4589
        %v4645 = vadd.f32 %v4331, %v4591
        %v4646 = vadd.f32 %v4332, %v4594
        %v4647 = vadd.f32 %v4333, %v4596
        %v4648 = vadd.f32 %v4334, %v4599
        %v4649 = vadd.f32 %v4335, %v4601
        %v4650 = vadd.f32 %v4336, %v4604
        %v4651 = vadd.f32 %v4337, %v4606
        %v4652 = vadd.f32 %v4338, %v4609
        %v4653 = vadd.f32 %v4339, %v4611
        %v4654 = vadd.f32 %v4340, %v4614
        %v4655 = vadd.f32 %v4341, %v4616
        %v4656 = vadd.f32 %v4342, %v4619
        %v4657 = vadd.f32 %v4343, %v4621
        %v4658 = vadd.f32 %v4344, %v4624
        %v4659 = vadd.f32 %v4345, %v4626
        %v4660 = vld [vmem:[%s4346] sm:$0xf]
        %v4661 = vld [vmem:[%s4346 + $0x4] sm:$0x1]
        %v4662 = vld [vmem:[%s4346 + $0x8] sm:$0xf]
        %v4663 = vld [vmem:[%s4346 + $0xc] sm:$0x1]
        %v4664 = vld [vmem:[%s4346 + $0x10] sm:$0xf]
        %v4665 = vld [vmem:[%s4346 + $0x14] sm:$0x1]
        %v4666 = vld [vmem:[%s4346 + $0x18] sm:$0xf]
        %v4667 = vld [vmem:[%s4346 + $0x1c] sm:$0x1]
        %v4668 = vld [vmem:[%s4346 + $0x20] sm:$0xf]
        %v4669 = vld [vmem:[%s4346 + $0x24] sm:$0x1]
        %v4670 = vld [vmem:[%s4346 + $0x28] sm:$0xf]
        %v4671 = vld [vmem:[%s4346 + $0x2c] sm:$0x1]
        %v4672 = vld [vmem:[%s4346 + $0x30] sm:$0xf]
        %v4673 = vld [vmem:[%s4346 + $0x34] sm:$0x1]
        %v4674 = vld [vmem:[%s4346 + $0x38] sm:$0xf]
        %v4675 = vld [vmem:[%s4346 + $0x3c] sm:$0x1]
        %v4676 = vld [vmem:[%s4346 + $0x50] sm:$0xf]
        %v4677 = vld [vmem:[%s4346 + $0x54] sm:$0x1]
        %v4678 = vld [vmem:[%s4346 + $0x58] sm:$0xf]
        %v4679 = vld [vmem:[%s4346 + $0x5c] sm:$0x1]
        %v4680 = vld [vmem:[%s4346 + $0x60] sm:$0xf]
        %v4681 = vld [vmem:[%s4346 + $0x64] sm:$0x1]
        %v4682 = vld [vmem:[%s4346 + $0x68] sm:$0xf]
        %v4683 = vld [vmem:[%s4346 + $0x6c] sm:$0x1]
        %v4684 = vld [vmem:[%s4346 + $0x70] sm:$0xf]
        %v4685 = vld [vmem:[%s4346 + $0x74] sm:$0x1]
        %v4686 = vld [vmem:[%s4346 + $0x78] sm:$0xf]
        %v4687 = vld [vmem:[%s4346 + $0x7c] sm:$0x1]
        %v4688 = vld [vmem:[%s4346 + $0x80] sm:$0xf]
        %v4689 = vld [vmem:[%s4346 + $0x84] sm:$0x1]
        %v4690 = vld [vmem:[%s4346 + $0x88] sm:$0xf]
        %v4691 = vld [vmem:[%s4346 + $0x8c] sm:$0x1]
        %v4692 = vld [vmem:[%s4346 + $0xa0] sm:$0xf]
        %v4693 = vld [vmem:[%s4346 + $0xa4] sm:$0x1]
        %v4694 = vld [vmem:[%s4346 + $0xa8] sm:$0xf]
        %v4695 = vld [vmem:[%s4346 + $0xac] sm:$0x1]
        %v4696 = vld [vmem:[%s4346 + $0xb0] sm:$0xf]
        %v4697 = vld [vmem:[%s4346 + $0xb4] sm:$0x1]
        %v4698 = vld [vmem:[%s4346 + $0xb8] sm:$0xf]
        %v4699 = vld [vmem:[%s4346 + $0xbc] sm:$0x1]
        %v4700 = vld [vmem:[%s4346 + $0xc0] sm:$0xf]
        %v4701 = vld [vmem:[%s4346 + $0xc4] sm:$0x1]
        %v4702 = vld [vmem:[%s4346 + $0xc8] sm:$0xf]
        %v4703 = vld [vmem:[%s4346 + $0xcc] sm:$0x1]
        %v4704 = vld [vmem:[%s4346 + $0xd0] sm:$0xf]
        %v4705 = vld [vmem:[%s4346 + $0xd4] sm:$0x1]
        %v4706 = vld [vmem:[%s4346 + $0xd8] sm:$0xf]
        %v4707 = vld [vmem:[%s4346 + $0xdc] sm:$0x1]
        %v4708 = vld [vmem:[%s4346 + $0xf0] sm:$0xf]
        %v4709 = vld [vmem:[%s4346 + $0xf4] sm:$0x1]
        %v4710 = vld [vmem:[%s4346 + $0xf8] sm:$0xf]
        %v4711 = vld [vmem:[%s4346 + $0xfc] sm:$0x1]
        %v4712 = vld [vmem:[%s4346 + $0x100] sm:$0xf]
        %v4713 = vld [vmem:[%s4346 + $0x104] sm:$0x1]
        %v4714 = vld [vmem:[%s4346 + $0x108] sm:$0xf]
        %v4715 = vld [vmem:[%s4346 + $0x10c] sm:$0x1]
        %v4716 = vld [vmem:[%s4346 + $0x110] sm:$0xf]
        %v4717 = vld [vmem:[%s4346 + $0x114] sm:$0x1]
        %v4718 = vld [vmem:[%s4346 + $0x118] sm:$0xf]
        %v4719 = vld [vmem:[%s4346 + $0x11c] sm:$0x1]
        %v4720 = vld [vmem:[%s4346 + $0x120] sm:$0xf]
        %v4721 = vld [vmem:[%s4346 + $0x124] sm:$0x1]
        %v4722 = vld [vmem:[%s4346 + $0x128] sm:$0xf]
        %v4723 = vld [vmem:[%s4346 + $0x12c] sm:$0x1]
        %v4725 = vshrl.u32 %v4660, 16
        %v4727 = vrot.slane %v4725, 4
        %v4728 = vshll.u32 %v4660, 16
        %v4730 = vrot.slane %v4728, 5
        %v4731 = vor.u32 %v4727, %v4730
        %v4732 = vrot.slane %v4731, 4
        %v4734 = vshll.u32 %v4661, 16
        %v4736 = vrot.slane %v4734, 5
        %v4737 = vsel %vm1424, %v4732, %v4736
        %v4739 = vshrl.u32 %v4662, 16
        %v4741 = vrot.slane %v4739, 4
        %v4742 = vshll.u32 %v4662, 16
        %v4744 = vrot.slane %v4742, 5
        %v4745 = vor.u32 %v4741, %v4744
        %v4746 = vrot.slane %v4745, 4
        %v4748 = vshll.u32 %v4663, 16
        %v4750 = vrot.slane %v4748, 5
        %v4751 = vsel %vm1424, %v4746, %v4750
        %v4753 = vshrl.u32 %v4664, 16
        %v4755 = vrot.slane %v4753, 4
        %v4756 = vshll.u32 %v4664, 16
        %v4758 = vrot.slane %v4756, 5
        %v4759 = vor.u32 %v4755, %v4758
        %v4760 = vrot.slane %v4759, 4
        %v4762 = vshll.u32 %v4665, 16
        %v4764 = vrot.slane %v4762, 5
        %v4765 = vsel %vm1424, %v4760, %v4764
        %v4767 = vshrl.u32 %v4666, 16
        %v4769 = vrot.slane %v4767, 4
        %v4770 = vshll.u32 %v4666, 16
        %v4772 = vrot.slane %v4770, 5
        %v4773 = vor.u32 %v4769, %v4772
        %v4774 = vrot.slane %v4773, 4
        %v4776 = vshll.u32 %v4667, 16
        %v4778 = vrot.slane %v4776, 5
        %v4779 = vsel %vm1424, %v4774, %v4778
        %v4781 = vshrl.u32 %v4668, 16
        %v4783 = vrot.slane %v4781, 4
        %v4784 = vshll.u32 %v4668, 16
        %v4786 = vrot.slane %v4784, 5
        %v4787 = vor.u32 %v4783, %v4786
        %v4788 = vrot.slane %v4787, 4
        %v4790 = vshll.u32 %v4669, 16
        %v4792 = vrot.slane %v4790, 5
        %v4793 = vsel %vm1424, %v4788, %v4792
        %v4795 = vshrl.u32 %v4670, 16
        %v4797 = vrot.slane %v4795, 4
        %v4798 = vshll.u32 %v4670, 16
        %v4800 = vrot.slane %v4798, 5
        %v4801 = vor.u32 %v4797, %v4800
        %v4802 = vrot.slane %v4801, 4
        %v4804 = vshll.u32 %v4671, 16
        %v4806 = vrot.slane %v4804, 5
        %v4807 = vsel %vm1424, %v4802, %v4806
        %v4809 = vshrl.u32 %v4672, 16
        %v4811 = vrot.slane %v4809, 4
        %v4812 = vshll.u32 %v4672, 16
        %v4814 = vrot.slane %v4812, 5
        %v4815 = vor.u32 %v4811, %v4814
        %v4816 = vrot.slane %v4815, 4
        %v4818 = vshll.u32 %v4673, 16
        %v4820 = vrot.slane %v4818, 5
        %v4821 = vsel %vm1424, %v4816, %v4820
        %v4823 = vshrl.u32 %v4674, 16
        %v4825 = vrot.slane %v4823, 4
        %v4826 = vshll.u32 %v4674, 16
        %v4828 = vrot.slane %v4826, 5
        %v4829 = vor.u32 %v4825, %v4828
        %v4830 = vrot.slane %v4829, 4
        %v4832 = vshll.u32 %v4675, 16
        %v4834 = vrot.slane %v4832, 5
        %v4835 = vsel %vm1424, %v4830, %v4834
        %v4837 = vshrl.u32 %v4676, 16
        %v4839 = vrot.slane %v4837, 4
        %v4840 = vshll.u32 %v4676, 16
        %v4842 = vrot.slane %v4840, 5
        %v4843 = vor.u32 %v4839, %v4842
        %v4844 = vrot.slane %v4843, 4
        %v4846 = vshll.u32 %v4677, 16
        %v4848 = vrot.slane %v4846, 5
        %v4849 = vsel %vm1424, %v4844, %v4848
        %v4851 = vshrl.u32 %v4678, 16
        %v4853 = vrot.slane %v4851, 4
        %v4854 = vshll.u32 %v4678, 16
        %v4856 = vrot.slane %v4854, 5
        %v4857 = vor.u32 %v4853, %v4856
        %v4858 = vrot.slane %v4857, 4
        %v4860 = vshll.u32 %v4679, 16
        %v4862 = vrot.slane %v4860, 5
        %v4863 = vsel %vm1424, %v4858, %v4862
        %v4865 = vshrl.u32 %v4680, 16
        %v4867 = vrot.slane %v4865, 4
        %v4868 = vshll.u32 %v4680, 16
        %v4870 = vrot.slane %v4868, 5
        %v4871 = vor.u32 %v4867, %v4870
        %v4872 = vrot.slane %v4871, 4
        %v4874 = vshll.u32 %v4681, 16
        %v4876 = vrot.slane %v4874, 5
        %v4877 = vsel %vm1424, %v4872, %v4876
        %v4879 = vshrl.u32 %v4682, 16
        %v4881 = vrot.slane %v4879, 4
        %v4882 = vshll.u32 %v4682, 16
        %v4884 = vrot.slane %v4882, 5
        %v4885 = vor.u32 %v4881, %v4884
        %v4886 = vrot.slane %v4885, 4
        %v4888 = vshll.u32 %v4683, 16
        %v4890 = vrot.slane %v4888, 5
        %v4891 = vsel %vm1424, %v4886, %v4890
        %v4893 = vshrl.u32 %v4684, 16
        %v4895 = vrot.slane %v4893, 4
        %v4896 = vshll.u32 %v4684, 16
        %v4898 = vrot.slane %v4896, 5
        %v4899 = vor.u32 %v4895, %v4898
        %v4900 = vrot.slane %v4899, 4
        %v4902 = vshll.u32 %v4685, 16
        %v4904 = vrot.slane %v4902, 5
        %v4905 = vsel %vm1424, %v4900, %v4904
        %v4907 = vshrl.u32 %v4686, 16
        %v4909 = vrot.slane %v4907, 4
        %v4910 = vshll.u32 %v4686, 16
        %v4912 = vrot.slane %v4910, 5
        %v4913 = vor.u32 %v4909, %v4912
        %v4914 = vrot.slane %v4913, 4
        %v4916 = vshll.u32 %v4687, 16
        %v4918 = vrot.slane %v4916, 5
        %v4919 = vsel %vm1424, %v4914, %v4918
        %v4921 = vshrl.u32 %v4688, 16
        %v4923 = vrot.slane %v4921, 4
        %v4924 = vshll.u32 %v4688, 16
        %v4926 = vrot.slane %v4924, 5
        %v4927 = vor.u32 %v4923, %v4926
        %v4928 = vrot.slane %v4927, 4
        %v4930 = vshll.u32 %v4689, 16
        %v4932 = vrot.slane %v4930, 5
        %v4933 = vsel %vm1424, %v4928, %v4932
        %v4935 = vshrl.u32 %v4690, 16
        %v4937 = vrot.slane %v4935, 4
        %v4938 = vshll.u32 %v4690, 16
        %v4940 = vrot.slane %v4938, 5
        %v4941 = vor.u32 %v4937, %v4940
        %v4942 = vrot.slane %v4941, 4
        %v4944 = vshll.u32 %v4691, 16
        %v4946 = vrot.slane %v4944, 5
        %v4947 = vsel %vm1424, %v4942, %v4946
        %v4949 = vshrl.u32 %v4692, 16
        %v4951 = vrot.slane %v4949, 4
        %v4952 = vshll.u32 %v4692, 16
        %v4954 = vrot.slane %v4952, 5
        %v4955 = vor.u32 %v4951, %v4954
        %v4956 = vrot.slane %v4955, 4
        %v4958 = vshll.u32 %v4693, 16
        %v4960 = vrot.slane %v4958, 5
        %v4961 = vsel %vm1424, %v4956, %v4960
        %v4963 = vshrl.u32 %v4694, 16
        %v4965 = vrot.slane %v4963, 4
        %v4966 = vshll.u32 %v4694, 16
        %v4968 = vrot.slane %v4966, 5
        %v4969 = vor.u32 %v4965, %v4968
        %v4970 = vrot.slane %v4969, 4
        %v4972 = vshll.u32 %v4695, 16
        %v4974 = vrot.slane %v4972, 5
        %v4975 = vsel %vm1424, %v4970, %v4974
        %v4977 = vshrl.u32 %v4696, 16
        %v4979 = vrot.slane %v4977, 4
        %v4980 = vshll.u32 %v4696, 16
        %v4982 = vrot.slane %v4980, 5
        %v4983 = vor.u32 %v4979, %v4982
        %v4984 = vrot.slane %v4983, 4
        %v4986 = vshll.u32 %v4697, 16
        %v4988 = vrot.slane %v4986, 5
        %v4989 = vsel %vm1424, %v4984, %v4988
        %v4991 = vshrl.u32 %v4698, 16
        %v4993 = vrot.slane %v4991, 4
        %v4994 = vshll.u32 %v4698, 16
        %v4996 = vrot.slane %v4994, 5
        %v4997 = vor.u32 %v4993, %v4996
        %v4998 = vrot.slane %v4997, 4
        %v5000 = vshll.u32 %v4699, 16
        %v5002 = vrot.slane %v5000, 5
        %v5003 = vsel %vm1424, %v4998, %v5002
        %v5005 = vshrl.u32 %v4700, 16
        %v5007 = vrot.slane %v5005, 4
        %v5008 = vshll.u32 %v4700, 16
        %v5010 = vrot.slane %v5008, 5
        %v5011 = vor.u32 %v5007, %v5010
        %v5012 = vrot.slane %v5011, 4
        %v5014 = vshll.u32 %v4701, 16
        %v5016 = vrot.slane %v5014, 5
        %v5017 = vsel %vm1424, %v5012, %v5016
        %v5019 = vshrl.u32 %v4702, 16
        %v5021 = vrot.slane %v5019, 4
        %v5022 = vshll.u32 %v4702, 16
        %v5024 = vrot.slane %v5022, 5
        %v5025 = vor.u32 %v5021, %v5024
        %v5026 = vrot.slane %v5025, 4
        %v5028 = vshll.u32 %v4703, 16
        %v5030 = vrot.slane %v5028, 5
        %v5031 = vsel %vm1424, %v5026, %v5030
        %v5033 = vshrl.u32 %v4704, 16
        %v5035 = vrot.slane %v5033, 4
        %v5036 = vshll.u32 %v4704, 16
        %v5038 = vrot.slane %v5036, 5
        %v5039 = vor.u32 %v5035, %v5038
        %v5040 = vrot.slane %v5039, 4
        %v5042 = vshll.u32 %v4705, 16
        %v5044 = vrot.slane %v5042, 5
        %v5045 = vsel %vm1424, %v5040, %v5044
        %v5047 = vshrl.u32 %v4706, 16
        %v5049 = vrot.slane %v5047, 4
        %v5050 = vshll.u32 %v4706, 16
        %v5052 = vrot.slane %v5050, 5
        %v5053 = vor.u32 %v5049, %v5052
        %v5054 = vrot.slane %v5053, 4
        %v5056 = vshll.u32 %v4707, 16
        %v5058 = vrot.slane %v5056, 5
        %v5059 = vsel %vm1424, %v5054, %v5058
        %v5061 = vshrl.u32 %v4708, 16
        %v5063 = vrot.slane %v5061, 4
        %v5064 = vshll.u32 %v4708, 16
        %v5066 = vrot.slane %v5064, 5
        %v5067 = vor.u32 %v5063, %v5066
        %v5068 = vrot.slane %v5067, 4
        %v5070 = vshll.u32 %v4709, 16
        %v5072 = vrot.slane %v5070, 5
        %v5073 = vsel %vm1424, %v5068, %v5072
        %v5075 = vshrl.u32 %v4710, 16
        %v5077 = vrot.slane %v5075, 4
        %v5078 = vshll.u32 %v4710, 16
        %v5080 = vrot.slane %v5078, 5
        %v5081 = vor.u32 %v5077, %v5080
        %v5082 = vrot.slane %v5081, 4
        %v5084 = vshll.u32 %v4711, 16
        %v5086 = vrot.slane %v5084, 5
        %v5087 = vsel %vm1424, %v5082, %v5086
        %v5089 = vshrl.u32 %v4712, 16
        %v5091 = vrot.slane %v5089, 4
        %v5092 = vshll.u32 %v4712, 16
        %v5094 = vrot.slane %v5092, 5
        %v5095 = vor.u32 %v5091, %v5094
        %v5096 = vrot.slane %v5095, 4
        %v5098 = vshll.u32 %v4713, 16
        %v5100 = vrot.slane %v5098, 5
        %v5101 = vsel %vm1424, %v5096, %v5100
        %v5103 = vshrl.u32 %v4714, 16
        %v5105 = vrot.slane %v5103, 4
        %v5106 = vshll.u32 %v4714, 16
        %v5108 = vrot.slane %v5106, 5
        %v5109 = vor.u32 %v5105, %v5108
        %v5110 = vrot.slane %v5109, 4
        %v5112 = vshll.u32 %v4715, 16
        %v5114 = vrot.slane %v5112, 5
        %v5115 = vsel %vm1424, %v5110, %v5114
        %v5117 = vshrl.u32 %v4716, 16
        %v5119 = vrot.slane %v5117, 4
        %v5120 = vshll.u32 %v4716, 16
        %v5122 = vrot.slane %v5120, 5
        %v5123 = vor.u32 %v5119, %v5122
        %v5124 = vrot.slane %v5123, 4
        %v5126 = vshll.u32 %v4717, 16
        %v5128 = vrot.slane %v5126, 5
        %v5129 = vsel %vm1424, %v5124, %v5128
        %v5131 = vshrl.u32 %v4718, 16
        %v5133 = vrot.slane %v5131, 4
        %v5134 = vshll.u32 %v4718, 16
        %v5136 = vrot.slane %v5134, 5
        %v5137 = vor.u32 %v5133, %v5136
        %v5138 = vrot.slane %v5137, 4
        %v5140 = vshll.u32 %v4719, 16
        %v5142 = vrot.slane %v5140, 5
        %v5143 = vsel %vm1424, %v5138, %v5142
        %v5145 = vshrl.u32 %v4720, 16
        %v5147 = vrot.slane %v5145, 4
        %v5148 = vshll.u32 %v4720, 16
        %v5150 = vrot.slane %v5148, 5
        %v5151 = vor.u32 %v5147, %v5150
        %v5152 = vrot.slane %v5151, 4
        %v5154 = vshll.u32 %v4721, 16
        %v5156 = vrot.slane %v5154, 5
        %v5157 = vsel %vm1424, %v5152, %v5156
        %v5159 = vshrl.u32 %v4722, 16
        %v5161 = vrot.slane %v5159, 4
        %v5162 = vshll.u32 %v4722, 16
        %v5164 = vrot.slane %v5162, 5
        %v5165 = vor.u32 %v5161, %v5164
        %v5166 = vrot.slane %v5165, 4
        %v5168 = vshll.u32 %v4723, 16
        %v5170 = vrot.slane %v5168, 5
        %v5171 = vsel %vm1424, %v5166, %v5170
        %v5172 = vld [vmem:[#allocation6 + $0x1c0] sm:$0xf]
        %v5173 = vld [vmem:[#allocation6 + $0x1c4] sm:$0xf]
        %v5174 = vld [vmem:[#allocation6 + $0x1c8] sm:$0xf]
        %v5175 = vld [vmem:[#allocation6 + $0x1cc] sm:$0xf]
        %v5176 = vld [vmem:[#allocation6 + $0x1d0] sm:$0xf]
        %v5177 = vld [vmem:[#allocation6 + $0x1d4] sm:$0xf]
        %v5178 = vld [vmem:[#allocation6 + $0x1d8] sm:$0xf]
        %v5179 = vld [vmem:[#allocation6 + $0x1dc] sm:$0xf]
        %v5180 = vld [vmem:[#allocation6 + $0x1e0] sm:$0xf]
        %v5181 = vld [vmem:[#allocation6 + $0x1e4] sm:$0xf]
        %v5182 = vld [vmem:[#allocation6 + $0x1e8] sm:$0xf]
        %v5183 = vld [vmem:[#allocation6 + $0x1ec] sm:$0xf]
        %v5184 = vld [vmem:[#allocation6 + $0x1f0] sm:$0xf]
        %v5185 = vld [vmem:[#allocation6 + $0x1f4] sm:$0xf]
        %v5186 = vld [vmem:[#allocation6 + $0x1f8] sm:$0xf]
        %v5187 = vld [vmem:[#allocation6 + $0x1fc] sm:$0xf]
        %v5188 = vunpack.c.l.b16 %v4737
        %v5189 = vunpack.c.l.b16 %v4751
        %v5190 = vunpack.c.l.b16 %v4765
        %v5191 = vunpack.c.l.b16 %v4779
        %v5192 = vunpack.c.l.b16 %v4793
        %v5193 = vunpack.c.l.b16 %v4807
        %v5194 = vunpack.c.l.b16 %v4821
        %v5195 = vunpack.c.l.b16 %v4835
        %v5196 = vunpack.c.l.b16 %v4849
        %v5197 = vunpack.c.l.b16 %v4863
        %v5198 = vunpack.c.l.b16 %v4877
        %v5199 = vunpack.c.l.b16 %v4891
        %v5200 = vunpack.c.l.b16 %v4905
        %v5201 = vunpack.c.l.b16 %v4919
        %v5202 = vunpack.c.l.b16 %v4933
        %v5203 = vunpack.c.l.b16 %v4947
        %v5204 = vunpack.c.l.b16 %v4961
        %v5205 = vunpack.c.l.b16 %v4975
        %v5206 = vunpack.c.l.b16 %v4989
        %v5207 = vunpack.c.l.b16 %v5003
        %v5208 = vunpack.c.l.b16 %v5017
        %v5209 = vunpack.c.l.b16 %v5031
        %v5210 = vunpack.c.l.b16 %v5045
        %v5211 = vunpack.c.l.b16 %v5059
        %v5212 = vunpack.c.l.b16 %v5073
        %v5213 = vunpack.c.l.b16 %v5087
        %v5214 = vunpack.c.l.b16 %v5101
        %v5215 = vunpack.c.l.b16 %v5115
        %v5216 = vunpack.c.l.b16 %v5129
        %v5217 = vunpack.c.l.b16 %v5143
        %v5218 = vunpack.c.l.b16 %v5157
        %v5219 = vunpack.c.l.b16 %v5171
        %v5220 = vpack.c.b16 %v5189, %v5188
        %v5221 = vpack.c.b16 %v5191, %v5190
        %v5222 = vpack.c.b16 %v5193, %v5192
        %v5223 = vpack.c.b16 %v5195, %v5194
        %v5224 = vpack.c.b16 %v5197, %v5196
        %v5225 = vpack.c.b16 %v5199, %v5198
        %v5226 = vpack.c.b16 %v5201, %v5200
        %v5227 = vpack.c.b16 %v5203, %v5202
        %v5228 = vpack.c.b16 %v5205, %v5204
        %v5229 = vpack.c.b16 %v5207, %v5206
        %v5230 = vpack.c.b16 %v5209, %v5208
        %v5231 = vpack.c.b16 %v5211, %v5210
        %v5232 = vpack.c.b16 %v5213, %v5212
        %v5233 = vpack.c.b16 %v5215, %v5214
        %v5234 = vpack.c.b16 %v5217, %v5216
        %v5235 = vpack.c.b16 %v5219, %v5218
        %v5268 = vunpack.c.l.b16 %v5172
        %v5269 = vunpack.c.l.b16 %v5173
        %v5270 = vunpack.c.l.b16 %v5174
        %v5271 = vunpack.c.l.b16 %v5175
        %v5272 = vunpack.c.l.b16 %v5176
        %v5273 = vunpack.c.l.b16 %v5177
        %v5274 = vunpack.c.l.b16 %v5178
        %v5275 = vunpack.c.l.b16 %v5179
        %v5276 = vunpack.c.l.b16 %v5180
        %v5277 = vunpack.c.l.b16 %v5181
        %v5278 = vunpack.c.l.b16 %v5182
        %v5279 = vunpack.c.l.b16 %v5183
        %v5280 = vunpack.c.l.b16 %v5184
        %v5281 = vunpack.c.l.b16 %v5185
        %v5282 = vunpack.c.l.b16 %v5186
        %v5283 = vunpack.c.l.b16 %v5187
        %v5284 = vpack.c.b16 %v5269, %v5268
        %v5285 = vpack.c.b16 %v5271, %v5270
        %v5286 = vpack.c.b16 %v5273, %v5272
        %v5287 = vpack.c.b16 %v5275, %v5274
        %v5288 = vpack.c.b16 %v5277, %v5276
        %v5289 = vpack.c.b16 %v5279, %v5278
        %v5290 = vpack.c.b16 %v5281, %v5280
        %v5291 = vpack.c.b16 %v5283, %v5282
        %5300 = vmatpush.bf16.msra.mxu0 %v5291
        %5301 = vmatpush.bf16.msra.mxu0 %v5290
        %5302 = vmatpush.bf16.msra.mxu0 %v5289
        %5303 = vmatpush.bf16.msra.mxu0 %v5288
        %5304 = vmatpush.bf16.msra.mxu0 %v5287
        %5305 = vmatpush.bf16.msra.mxu0 %v5286
        %5306 = vmatpush.bf16.msra.mxu0 %v5285
        %5307 = vmatpush.bf16.msra.mxu0 %v5284
        %5308 = vmatmul.bf16.gmra.mxu0 %v5220
        %v5309 = vpop.f32.mrf.mxu0
        %v5310 = vadd.f32 0.0, %v5309
        %v5311 = vpop.f32.mrf.mxu0
        %v5312 = vadd.f32 0.0, %v5311
        %5313 = vmatmul.bf16.gmra.mxu0 %v5221
        %v5314 = vpop.f32.mrf.mxu0
        %v5315 = vadd.f32 0.0, %v5314
        %v5316 = vpop.f32.mrf.mxu0
        %v5317 = vadd.f32 0.0, %v5316
        %5318 = vmatmul.bf16.gmra.mxu0 %v5222
        %v5319 = vpop.f32.mrf.mxu0
        %v5320 = vadd.f32 0.0, %v5319
        %v5321 = vpop.f32.mrf.mxu0
        %v5322 = vadd.f32 0.0, %v5321
        %5323 = vmatmul.bf16.gmra.mxu0 %v5223
        %v5324 = vpop.f32.mrf.mxu0
        %v5325 = vadd.f32 0.0, %v5324
        %v5326 = vpop.f32.mrf.mxu0
        %v5327 = vadd.f32 0.0, %v5326
        %5328 = vmatmul.bf16.gmra.mxu0 %v5224
        %v5329 = vpop.f32.mrf.mxu0
        %v5330 = vadd.f32 0.0, %v5329
        %v5331 = vpop.f32.mrf.mxu0
        %v5332 = vadd.f32 0.0, %v5331
        %5333 = vmatmul.bf16.gmra.mxu0 %v5225
        %v5334 = vpop.f32.mrf.mxu0
        %v5335 = vadd.f32 0.0, %v5334
        %v5336 = vpop.f32.mrf.mxu0
        %v5337 = vadd.f32 0.0, %v5336
        %5338 = vmatmul.bf16.gmra.mxu0 %v5226
        %v5339 = vpop.f32.mrf.mxu0
        %v5340 = vadd.f32 0.0, %v5339
        %v5341 = vpop.f32.mrf.mxu0
        %v5342 = vadd.f32 0.0, %v5341
        %5343 = vmatmul.bf16.gmra.mxu0 %v5227
        %v5344 = vpop.f32.mrf.mxu0
        %v5345 = vadd.f32 0.0, %v5344
        %v5346 = vpop.f32.mrf.mxu0
        %v5347 = vadd.f32 0.0, %v5346
        %5348 = vmatmul.bf16.gmra.mxu0 %v5228
        %v5349 = vpop.f32.mrf.mxu0
        %v5350 = vadd.f32 0.0, %v5349
        %v5351 = vpop.f32.mrf.mxu0
        %v5352 = vadd.f32 0.0, %v5351
        %5353 = vmatmul.bf16.gmra.mxu0 %v5229
        %v5354 = vpop.f32.mrf.mxu0
        %v5355 = vadd.f32 0.0, %v5354
        %v5356 = vpop.f32.mrf.mxu0
        %v5357 = vadd.f32 0.0, %v5356
        %5358 = vmatmul.bf16.gmra.mxu0 %v5230
        %v5359 = vpop.f32.mrf.mxu0
        %v5360 = vadd.f32 0.0, %v5359
        %v5361 = vpop.f32.mrf.mxu0
        %v5362 = vadd.f32 0.0, %v5361
        %5363 = vmatmul.bf16.gmra.mxu0 %v5231
        %v5364 = vpop.f32.mrf.mxu0
        %v5365 = vadd.f32 0.0, %v5364
        %v5366 = vpop.f32.mrf.mxu0
        %v5367 = vadd.f32 0.0, %v5366
        %5368 = vmatmul.bf16.gmra.mxu0 %v5232
        %v5369 = vpop.f32.mrf.mxu0
        %v5370 = vadd.f32 0.0, %v5369
        %v5371 = vpop.f32.mrf.mxu0
        %v5372 = vadd.f32 0.0, %v5371
        %5373 = vmatmul.bf16.gmra.mxu0 %v5233
        %v5374 = vpop.f32.mrf.mxu0
        %v5375 = vadd.f32 0.0, %v5374
        %v5376 = vpop.f32.mrf.mxu0
        %v5377 = vadd.f32 0.0, %v5376
        %5378 = vmatmul.bf16.gmra.mxu0 %v5234
        %v5379 = vpop.f32.mrf.mxu0
        %v5380 = vadd.f32 0.0, %v5379
        %v5381 = vpop.f32.mrf.mxu0
        %v5382 = vadd.f32 0.0, %v5381
        %5383 = vmatmul.bf16.gmra.mxu0 %v5235
        %v5384 = vpop.f32.mrf.mxu0
        %v5385 = vadd.f32 0.0, %v5384
        %v5386 = vpop.f32.mrf.mxu0
        %v5387 = vadd.f32 0.0, %v5386
        %5388 = vdwg.mxu0
        %v5389 = vadd.f32 %v4628, %v5310
        %v5390 = vadd.f32 %v4629, %v5312
        %v5391 = vadd.f32 %v4630, %v5315
        %v5392 = vadd.f32 %v4631, %v5317
        %v5393 = vadd.f32 %v4632, %v5320
        %v5394 = vadd.f32 %v4633, %v5322
        %v5395 = vadd.f32 %v4634, %v5325
        %v5396 = vadd.f32 %v4635, %v5327
        %v5397 = vadd.f32 %v4636, %v5330
        %v5398 = vadd.f32 %v4637, %v5332
        %v5399 = vadd.f32 %v4638, %v5335
        %v5400 = vadd.f32 %v4639, %v5337
        %v5401 = vadd.f32 %v4640, %v5340
        %v5402 = vadd.f32 %v4641, %v5342
        %v5403 = vadd.f32 %v4642, %v5345
        %v5404 = vadd.f32 %v4643, %v5347
        %v5405 = vadd.f32 %v4644, %v5350
        %v5406 = vadd.f32 %v4645, %v5352
        %v5407 = vadd.f32 %v4646, %v5355
        %v5408 = vadd.f32 %v4647, %v5357
        %v5409 = vadd.f32 %v4648, %v5360
        %v5410 = vadd.f32 %v4649, %v5362
        %v5411 = vadd.f32 %v4650, %v5365
        %v5412 = vadd.f32 %v4651, %v5367
        %v5413 = vadd.f32 %v4652, %v5370
        %v5414 = vadd.f32 %v4653, %v5372
        %v5415 = vadd.f32 %v4654, %v5375
        %v5416 = vadd.f32 %v4655, %v5377
        %v5417 = vadd.f32 %v4656, %v5380
        %v5418 = vadd.f32 %v4657, %v5382
        %v5419 = vadd.f32 %v4658, %v5385
        %v5420 = vadd.f32 %v4659, %v5387
        %v5421 = vld [vmem:[%s4346] sm:$0xe]
        %v5422 = vld [vmem:[%s4346 + $0x8] sm:$0xe]
        %v5423 = vld [vmem:[%s4346 + $0x10] sm:$0xe]
        %v5424 = vld [vmem:[%s4346 + $0x18] sm:$0xe]
        %v5425 = vld [vmem:[%s4346 + $0x20] sm:$0xe]
        %v5426 = vld [vmem:[%s4346 + $0x28] sm:$0xe]
        %v5427 = vld [vmem:[%s4346 + $0x30] sm:$0xe]
        %v5428 = vld [vmem:[%s4346 + $0x38] sm:$0xe]
        %v5429 = vld [vmem:[%s4346 + $0x50] sm:$0xe]
        %v5430 = vld [vmem:[%s4346 + $0x58] sm:$0xe]
        %v5431 = vld [vmem:[%s4346 + $0x60] sm:$0xe]
        %v5432 = vld [vmem:[%s4346 + $0x68] sm:$0xe]
        %v5433 = vld [vmem:[%s4346 + $0x70] sm:$0xe]
        %v5434 = vld [vmem:[%s4346 + $0x78] sm:$0xe]
        %v5435 = vld [vmem:[%s4346 + $0x80] sm:$0xe]
        %v5436 = vld [vmem:[%s4346 + $0x88] sm:$0xe]
        %v5437 = vld [vmem:[%s4346 + $0xa0] sm:$0xe]
        %v5438 = vld [vmem:[%s4346 + $0xa8] sm:$0xe]
        %v5439 = vld [vmem:[%s4346 + $0xb0] sm:$0xe]
        %v5440 = vld [vmem:[%s4346 + $0xb8] sm:$0xe]
        %v5441 = vld [vmem:[%s4346 + $0xc0] sm:$0xe]
        %v5442 = vld [vmem:[%s4346 + $0xc8] sm:$0xe]
        %v5443 = vld [vmem:[%s4346 + $0xd0] sm:$0xe]
        %v5444 = vld [vmem:[%s4346 + $0xd8] sm:$0xe]
        %v5445 = vld [vmem:[%s4346 + $0xf0] sm:$0xe]
        %v5446 = vld [vmem:[%s4346 + $0xf8] sm:$0xe]
        %v5447 = vld [vmem:[%s4346 + $0x100] sm:$0xe]
        %v5448 = vld [vmem:[%s4346 + $0x108] sm:$0xe]
        %v5449 = vld [vmem:[%s4346 + $0x110] sm:$0xe]
        %v5450 = vld [vmem:[%s4346 + $0x118] sm:$0xe]
        %v5451 = vld [vmem:[%s4346 + $0x120] sm:$0xe]
        %v5452 = vld [vmem:[%s4346 + $0x128] sm:$0xe]
        %v5517 = vrot.slane %v5421, 5
        %v5518 = vrot.slane %v5517, 4
        %v5519 = vrot.slane %v4661, 5
        %v5520 = vsel %vm2421, %v5518, %v5519
        %v5521 = vrot.slane %v5422, 5
        %v5522 = vrot.slane %v5521, 4
        %v5523 = vrot.slane %v4663, 5
        %v5524 = vsel %vm2421, %v5522, %v5523
        %v5525 = vrot.slane %v5423, 5
        %v5526 = vrot.slane %v5525, 4
        %v5527 = vrot.slane %v4665, 5
        %v5528 = vsel %vm2421, %v5526, %v5527
        %v5529 = vrot.slane %v5424, 5
        %v5530 = vrot.slane %v5529, 4
        %v5531 = vrot.slane %v4667, 5
        %v5532 = vsel %vm2421, %v5530, %v5531
        %v5533 = vrot.slane %v5425, 5
        %v5534 = vrot.slane %v5533, 4
        %v5535 = vrot.slane %v4669, 5
        %v5536 = vsel %vm2421, %v5534, %v5535
        %v5537 = vrot.slane %v5426, 5
        %v5538 = vrot.slane %v5537, 4
        %v5539 = vrot.slane %v4671, 5
        %v5540 = vsel %vm2421, %v5538, %v5539
        %v5541 = vrot.slane %v5427, 5
        %v5542 = vrot.slane %v5541, 4
        %v5543 = vrot.slane %v4673, 5
        %v5544 = vsel %vm2421, %v5542, %v5543
        %v5545 = vrot.slane %v5428, 5
        %v5546 = vrot.slane %v5545, 4
        %v5547 = vrot.slane %v4675, 5
        %v5548 = vsel %vm2421, %v5546, %v5547
        %v5549 = vrot.slane %v5429, 5
        %v5550 = vrot.slane %v5549, 4
        %v5551 = vrot.slane %v4677, 5
        %v5552 = vsel %vm2421, %v5550, %v5551
        %v5553 = vrot.slane %v5430, 5
        %v5554 = vrot.slane %v5553, 4
        %v5555 = vrot.slane %v4679, 5
        %v5556 = vsel %vm2421, %v5554, %v5555
        %v5557 = vrot.slane %v5431, 5
        %v5558 = vrot.slane %v5557, 4
        %v5559 = vrot.slane %v4681, 5
        %v5560 = vsel %vm2421, %v5558, %v5559
        %v5561 = vrot.slane %v5432, 5
        %v5562 = vrot.slane %v5561, 4
        %v5563 = vrot.slane %v4683, 5
        %v5564 = vsel %vm2421, %v5562, %v5563
        %v5565 = vrot.slane %v5433, 5
        %v5566 = vrot.slane %v5565, 4
        %v5567 = vrot.slane %v4685, 5
        %v5568 = vsel %vm2421, %v5566, %v5567
        %v5569 = vrot.slane %v5434, 5
        %v5570 = vrot.slane %v5569, 4
        %v5571 = vrot.slane %v4687, 5
        %v5572 = vsel %vm2421, %v5570, %v5571
        %v5573 = vrot.slane %v5435, 5
        %v5574 = vrot.slane %v5573, 4
        %v5575 = vrot.slane %v4689, 5
        %v5576 = vsel %vm2421, %v5574, %v5575
        %v5577 = vrot.slane %v5436, 5
        %v5578 = vrot.slane %v5577, 4
        %v5579 = vrot.slane %v4691, 5
        %v5580 = vsel %vm2421, %v5578, %v5579
        %v5581 = vrot.slane %v5437, 5
        %v5582 = vrot.slane %v5581, 4
        %v5583 = vrot.slane %v4693, 5
        %v5584 = vsel %vm2421, %v5582, %v5583
        %v5585 = vrot.slane %v5438, 5
        %v5586 = vrot.slane %v5585, 4
        %v5587 = vrot.slane %v4695, 5
        %v5588 = vsel %vm2421, %v5586, %v5587
        %v5589 = vrot.slane %v5439, 5
        %v5590 = vrot.slane %v5589, 4
        %v5591 = vrot.slane %v4697, 5
        %v5592 = vsel %vm2421, %v5590, %v5591
        %v5593 = vrot.slane %v5440, 5
        %v5594 = vrot.slane %v5593, 4
        %v5595 = vrot.slane %v4699, 5
        %v5596 = vsel %vm2421, %v5594, %v5595
        %v5597 = vrot.slane %v5441, 5
        %v5598 = vrot.slane %v5597, 4
        %v5599 = vrot.slane %v4701, 5
        %v5600 = vsel %vm2421, %v5598, %v5599
        %v5601 = vrot.slane %v5442, 5
        %v5602 = vrot.slane %v5601, 4
        %v5603 = vrot.slane %v4703, 5
        %v5604 = vsel %vm2421, %v5602, %v5603
        %v5605 = vrot.slane %v5443, 5
        %v5606 = vrot.slane %v5605, 4
        %v5607 = vrot.slane %v4705, 5
        %v5608 = vsel %vm2421, %v5606, %v5607
        %v5609 = vrot.slane %v5444, 5
        %v5610 = vrot.slane %v5609, 4
        %v5611 = vrot.slane %v4707, 5
        %v5612 = vsel %vm2421, %v5610, %v5611
        %v5613 = vrot.slane %v5445, 5
        %v5614 = vrot.slane %v5613, 4
        %v5615 = vrot.slane %v4709, 5
        %v5616 = vsel %vm2421, %v5614, %v5615
        %v5617 = vrot.slane %v5446, 5
        %v5618 = vrot.slane %v5617, 4
        %v5619 = vrot.slane %v4711, 5
        %v5620 = vsel %vm2421, %v5618, %v5619
        %v5621 = vrot.slane %v5447, 5
        %v5622 = vrot.slane %v5621, 4
        %v5623 = vrot.slane %v4713, 5
        %v5624 = vsel %vm2421, %v5622, %v5623
        %v5625 = vrot.slane %v5448, 5
        %v5626 = vrot.slane %v5625, 4
        %v5627 = vrot.slane %v4715, 5
        %v5628 = vsel %vm2421, %v5626, %v5627
        %v5629 = vrot.slane %v5449, 5
        %v5630 = vrot.slane %v5629, 4
        %v5631 = vrot.slane %v4717, 5
        %v5632 = vsel %vm2421, %v5630, %v5631
        %v5633 = vrot.slane %v5450, 5
        %v5634 = vrot.slane %v5633, 4
        %v5635 = vrot.slane %v4719, 5
        %v5636 = vsel %vm2421, %v5634, %v5635
        %v5637 = vrot.slane %v5451, 5
        %v5638 = vrot.slane %v5637, 4
        %v5639 = vrot.slane %v4721, 5
        %v5640 = vsel %vm2421, %v5638, %v5639
        %v5641 = vrot.slane %v5452, 5
        %v5642 = vrot.slane %v5641, 4
        %v5643 = vrot.slane %v4723, 5
        %v5644 = vsel %vm2421, %v5642, %v5643
        %v5645 = vld [vmem:[#allocation6 + $0x200] sm:$0xf]
        %v5646 = vld [vmem:[#allocation6 + $0x204] sm:$0xf]
        %v5647 = vld [vmem:[#allocation6 + $0x208] sm:$0xf]
        %v5648 = vld [vmem:[#allocation6 + $0x20c] sm:$0xf]
        %v5649 = vld [vmem:[#allocation6 + $0x210] sm:$0xf]
        %v5650 = vld [vmem:[#allocation6 + $0x214] sm:$0xf]
        %v5651 = vld [vmem:[#allocation6 + $0x218] sm:$0xf]
        %v5652 = vld [vmem:[#allocation6 + $0x21c] sm:$0xf]
        %v5653 = vld [vmem:[#allocation6 + $0x220] sm:$0xf]
        %v5654 = vld [vmem:[#allocation6 + $0x224] sm:$0xf]
        %v5655 = vld [vmem:[#allocation6 + $0x228] sm:$0xf]
        %v5656 = vld [vmem:[#allocation6 + $0x22c] sm:$0xf]
        %v5657 = vld [vmem:[#allocation6 + $0x230] sm:$0xf]
        %v5658 = vld [vmem:[#allocation6 + $0x234] sm:$0xf]
        %v5659 = vld [vmem:[#allocation6 + $0x238] sm:$0xf]
        %v5660 = vld [vmem:[#allocation6 + $0x23c] sm:$0xf]
        %v5661 = vunpack.c.l.b16 %v5520
        %v5662 = vunpack.c.l.b16 %v5524
        %v5663 = vunpack.c.l.b16 %v5528
        %v5664 = vunpack.c.l.b16 %v5532
        %v5665 = vunpack.c.l.b16 %v5536
        %v5666 = vunpack.c.l.b16 %v5540
        %v5667 = vunpack.c.l.b16 %v5544
        %v5668 = vunpack.c.l.b16 %v5548
        %v5669 = vunpack.c.l.b16 %v5552
        %v5670 = vunpack.c.l.b16 %v5556
        %v5671 = vunpack.c.l.b16 %v5560
        %v5672 = vunpack.c.l.b16 %v5564
        %v5673 = vunpack.c.l.b16 %v5568
        %v5674 = vunpack.c.l.b16 %v5572
        %v5675 = vunpack.c.l.b16 %v5576
        %v5676 = vunpack.c.l.b16 %v5580
        %v5677 = vunpack.c.l.b16 %v5584
        %v5678 = vunpack.c.l.b16 %v5588
        %v5679 = vunpack.c.l.b16 %v5592
        %v5680 = vunpack.c.l.b16 %v5596
        %v5681 = vunpack.c.l.b16 %v5600
        %v5682 = vunpack.c.l.b16 %v5604
        %v5683 = vunpack.c.l.b16 %v5608
        %v5684 = vunpack.c.l.b16 %v5612
        %v5685 = vunpack.c.l.b16 %v5616
        %v5686 = vunpack.c.l.b16 %v5620
        %v5687 = vunpack.c.l.b16 %v5624
        %v5688 = vunpack.c.l.b16 %v5628
        %v5689 = vunpack.c.l.b16 %v5632
        %v5690 = vunpack.c.l.b16 %v5636
        %v5691 = vunpack.c.l.b16 %v5640
        %v5692 = vunpack.c.l.b16 %v5644
        %v5693 = vpack.c.b16 %v5662, %v5661
        %v5694 = vpack.c.b16 %v5664, %v5663
        %v5695 = vpack.c.b16 %v5666, %v5665
        %v5696 = vpack.c.b16 %v5668, %v5667
        %v5697 = vpack.c.b16 %v5670, %v5669
        %v5698 = vpack.c.b16 %v5672, %v5671
        %v5699 = vpack.c.b16 %v5674, %v5673
        %v5700 = vpack.c.b16 %v5676, %v5675
        %v5701 = vpack.c.b16 %v5678, %v5677
        %v5702 = vpack.c.b16 %v5680, %v5679
        %v5703 = vpack.c.b16 %v5682, %v5681
        %v5704 = vpack.c.b16 %v5684, %v5683
        %v5705 = vpack.c.b16 %v5686, %v5685
        %v5706 = vpack.c.b16 %v5688, %v5687
        %v5707 = vpack.c.b16 %v5690, %v5689
        %v5708 = vpack.c.b16 %v5692, %v5691
        %v5741 = vunpack.c.l.b16 %v5645
        %v5742 = vunpack.c.l.b16 %v5646
        %v5743 = vunpack.c.l.b16 %v5647
        %v5744 = vunpack.c.l.b16 %v5648
        %v5745 = vunpack.c.l.b16 %v5649
        %v5746 = vunpack.c.l.b16 %v5650
        %v5747 = vunpack.c.l.b16 %v5651
        %v5748 = vunpack.c.l.b16 %v5652
        %v5749 = vunpack.c.l.b16 %v5653
        %v5750 = vunpack.c.l.b16 %v5654
        %v5751 = vunpack.c.l.b16 %v5655
        %v5752 = vunpack.c.l.b16 %v5656
        %v5753 = vunpack.c.l.b16 %v5657
        %v5754 = vunpack.c.l.b16 %v5658
        %v5755 = vunpack.c.l.b16 %v5659
        %v5756 = vunpack.c.l.b16 %v5660
        %v5757 = vpack.c.b16 %v5742, %v5741
        %v5758 = vpack.c.b16 %v5744, %v5743
        %v5759 = vpack.c.b16 %v5746, %v5745
        %v5760 = vpack.c.b16 %v5748, %v5747
        %v5761 = vpack.c.b16 %v5750, %v5749
        %v5762 = vpack.c.b16 %v5752, %v5751
        %v5763 = vpack.c.b16 %v5754, %v5753
        %v5764 = vpack.c.b16 %v5756, %v5755
        %5773 = vmatpush.bf16.msra.mxu0 %v5764
        %5774 = vmatpush.bf16.msra.mxu0 %v5763
        %5775 = vmatpush.bf16.msra.mxu0 %v5762
        %5776 = vmatpush.bf16.msra.mxu0 %v5761
        %5777 = vmatpush.bf16.msra.mxu0 %v5760
        %5778 = vmatpush.bf16.msra.mxu0 %v5759
        %5779 = vmatpush.bf16.msra.mxu0 %v5758
        %5780 = vmatpush.bf16.msra.mxu0 %v5757
        %5781 = vmatmul.bf16.gmra.mxu0 %v5693
        %v5782 = vpop.f32.mrf.mxu0
        %v5783 = vadd.f32 0.0, %v5782
        %v5784 = vpop.f32.mrf.mxu0
        %v5785 = vadd.f32 0.0, %v5784
        %5786 = vmatmul.bf16.gmra.mxu0 %v5694
        %v5787 = vpop.f32.mrf.mxu0
        %v5788 = vadd.f32 0.0, %v5787
        %v5789 = vpop.f32.mrf.mxu0
        %v5790 = vadd.f32 0.0, %v5789
        %5791 = vmatmul.bf16.gmra.mxu0 %v5695
        %v5792 = vpop.f32.mrf.mxu0
        %v5793 = vadd.f32 0.0, %v5792
        %v5794 = vpop.f32.mrf.mxu0
        %v5795 = vadd.f32 0.0, %v5794
        %5796 = vmatmul.bf16.gmra.mxu0 %v5696
        %v5797 = vpop.f32.mrf.mxu0
        %v5798 = vadd.f32 0.0, %v5797
        %v5799 = vpop.f32.mrf.mxu0
        %v5800 = vadd.f32 0.0, %v5799
        %5801 = vmatmul.bf16.gmra.mxu0 %v5697
        %v5802 = vpop.f32.mrf.mxu0
        %v5803 = vadd.f32 0.0, %v5802
        %v5804 = vpop.f32.mrf.mxu0
        %v5805 = vadd.f32 0.0, %v5804
        %5806 = vmatmul.bf16.gmra.mxu0 %v5698
        %v5807 = vpop.f32.mrf.mxu0
        %v5808 = vadd.f32 0.0, %v5807
        %v5809 = vpop.f32.mrf.mxu0
        %v5810 = vadd.f32 0.0, %v5809
        %5811 = vmatmul.bf16.gmra.mxu0 %v5699
        %v5812 = vpop.f32.mrf.mxu0
        %v5813 = vadd.f32 0.0, %v5812
        %v5814 = vpop.f32.mrf.mxu0
        %v5815 = vadd.f32 0.0, %v5814
        %5816 = vmatmul.bf16.gmra.mxu0 %v5700
        %v5817 = vpop.f32.mrf.mxu0
        %v5818 = vadd.f32 0.0, %v5817
        %v5819 = vpop.f32.mrf.mxu0
        %v5820 = vadd.f32 0.0, %v5819
        %5821 = vmatmul.bf16.gmra.mxu0 %v5701
        %v5822 = vpop.f32.mrf.mxu0
        %v5823 = vadd.f32 0.0, %v5822
        %v5824 = vpop.f32.mrf.mxu0
        %v5825 = vadd.f32 0.0, %v5824
        %5826 = vmatmul.bf16.gmra.mxu0 %v5702
        %v5827 = vpop.f32.mrf.mxu0
        %v5828 = vadd.f32 0.0, %v5827
        %v5829 = vpop.f32.mrf.mxu0
        %v5830 = vadd.f32 0.0, %v5829
        %5831 = vmatmul.bf16.gmra.mxu0 %v5703
        %v5832 = vpop.f32.mrf.mxu0
        %v5833 = vadd.f32 0.0, %v5832
        %v5834 = vpop.f32.mrf.mxu0
        %v5835 = vadd.f32 0.0, %v5834
        %5836 = vmatmul.bf16.gmra.mxu0 %v5704
        %v5837 = vpop.f32.mrf.mxu0
        %v5838 = vadd.f32 0.0, %v5837
        %v5839 = vpop.f32.mrf.mxu0
        %v5840 = vadd.f32 0.0, %v5839
        %5841 = vmatmul.bf16.gmra.mxu0 %v5705
        %v5842 = vpop.f32.mrf.mxu0
        %v5843 = vadd.f32 0.0, %v5842
        %v5844 = vpop.f32.mrf.mxu0
        %v5845 = vadd.f32 0.0, %v5844
        %5846 = vmatmul.bf16.gmra.mxu0 %v5706
        %v5847 = vpop.f32.mrf.mxu0
        %v5848 = vadd.f32 0.0, %v5847
        %v5849 = vpop.f32.mrf.mxu0
        %v5850 = vadd.f32 0.0, %v5849
        %5851 = vmatmul.bf16.gmra.mxu0 %v5707
        %v5852 = vpop.f32.mrf.mxu0
        %v5853 = vadd.f32 0.0, %v5852
        %v5854 = vpop.f32.mrf.mxu0
        %v5855 = vadd.f32 0.0, %v5854
        %5856 = vmatmul.bf16.gmra.mxu0 %v5708
        %v5857 = vpop.f32.mrf.mxu0
        %v5858 = vadd.f32 0.0, %v5857
        %v5859 = vpop.f32.mrf.mxu0
        %v5860 = vadd.f32 0.0, %v5859
        %5861 = vdwg.mxu0
        %v5862 = vadd.f32 %v5389, %v5783
        %v5863 = vadd.f32 %v5390, %v5785
        %v5864 = vadd.f32 %v5391, %v5788
        %v5865 = vadd.f32 %v5392, %v5790
        %v5866 = vadd.f32 %v5393, %v5793
        %v5867 = vadd.f32 %v5394, %v5795
        %v5868 = vadd.f32 %v5395, %v5798
        %v5869 = vadd.f32 %v5396, %v5800
        %v5870 = vadd.f32 %v5397, %v5803
        %v5871 = vadd.f32 %v5398, %v5805
        %v5872 = vadd.f32 %v5399, %v5808
        %v5873 = vadd.f32 %v5400, %v5810
        %v5874 = vadd.f32 %v5401, %v5813
        %v5875 = vadd.f32 %v5402, %v5815
        %v5876 = vadd.f32 %v5403, %v5818
        %v5877 = vadd.f32 %v5404, %v5820
        %v5878 = vadd.f32 %v5405, %v5823
        %v5879 = vadd.f32 %v5406, %v5825
        %v5880 = vadd.f32 %v5407, %v5828
        %v5881 = vadd.f32 %v5408, %v5830
        %v5882 = vadd.f32 %v5409, %v5833
        %v5883 = vadd.f32 %v5410, %v5835
        %v5884 = vadd.f32 %v5411, %v5838
        %v5885 = vadd.f32 %v5412, %v5840
        %v5886 = vadd.f32 %v5413, %v5843
        %v5887 = vadd.f32 %v5414, %v5845
        %v5888 = vadd.f32 %v5415, %v5848
        %v5889 = vadd.f32 %v5416, %v5850
        %v5890 = vadd.f32 %v5417, %v5853
        %v5891 = vadd.f32 %v5418, %v5855
        %v5892 = vadd.f32 %v5419, %v5858
        %v5893 = vadd.f32 %v5420, %v5860
        %v5894 = vld [vmem:[%s2] sm:$0x1]
        %v5896 = vperm.slane %v5894, 0
        %v5898 = vadd.f32 %v5862, %v5896
        %v5899 = vadd.f32 %v5863, %v5896
        %v5900 = vadd.f32 %v5864, %v5896
        %v5901 = vadd.f32 %v5865, %v5896
        %v5902 = vadd.f32 %v5866, %v5896
        %v5903 = vadd.f32 %v5867, %v5896
        %v5904 = vadd.f32 %v5868, %v5896
        %v5905 = vadd.f32 %v5869, %v5896
        %v5906 = vadd.f32 %v5870, %v5896
        %v5907 = vadd.f32 %v5871, %v5896
        %v5908 = vadd.f32 %v5872, %v5896
        %v5909 = vadd.f32 %v5873, %v5896
        %v5910 = vadd.f32 %v5874, %v5896
        %v5911 = vadd.f32 %v5875, %v5896
        %v5912 = vadd.f32 %v5876, %v5896
        %v5913 = vadd.f32 %v5877, %v5896
        %v5914 = vadd.f32 %v5878, %v5896
        %v5915 = vadd.f32 %v5879, %v5896
        %v5916 = vadd.f32 %v5880, %v5896
        %v5917 = vadd.f32 %v5881, %v5896
        %v5918 = vadd.f32 %v5882, %v5896
        %v5919 = vadd.f32 %v5883, %v5896
        %v5920 = vadd.f32 %v5884, %v5896
        %v5921 = vadd.f32 %v5885, %v5896
        %v5922 = vadd.f32 %v5886, %v5896
        %v5923 = vadd.f32 %v5887, %v5896
        %v5924 = vadd.f32 %v5888, %v5896
        %v5925 = vadd.f32 %v5889, %v5896
        %v5926 = vadd.f32 %v5890, %v5896
        %v5927 = vadd.f32 %v5891, %v5896
        %v5928 = vadd.f32 %v5892, %v5896
        %v5929 = vadd.f32 %v5893, %v5896
        %5930 = vst [vmem:[%s208] sm:$0xff] %v5898
        %5931 = vst [vmem:[%s208 + $0x8] sm:$0xff] %v5899
        %5932 = vst [vmem:[%s208 + $0x10] sm:$0xff] %v5900
        %5933 = vst [vmem:[%s208 + $0x18] sm:$0xff] %v5901
        %5934 = vst [vmem:[%s208 + $0x20] sm:$0xff] %v5902
        %5935 = vst [vmem:[%s208 + $0x28] sm:$0xff] %v5903
        %5936 = vst [vmem:[%s208 + $0x30] sm:$0xff] %v5904
        %5937 = vst [vmem:[%s208 + $0x38] sm:$0xff] %v5905
        %5938 = vst [vmem:[%s208 + $0x40] sm:$0xff] %v5906
        %5939 = vst [vmem:[%s208 + $0x48] sm:$0xff] %v5907
        %5940 = vst [vmem:[%s208 + $0x50] sm:$0xff] %v5908
        %5941 = vst [vmem:[%s208 + $0x58] sm:$0xff] %v5909
        %5942 = vst [vmem:[%s208 + $0x60] sm:$0xff] %v5910
        %5943 = vst [vmem:[%s208 + $0x68] sm:$0xff] %v5911
        %5944 = vst [vmem:[%s208 + $0x70] sm:$0xff] %v5912
        %5945 = vst [vmem:[%s208 + $0x78] sm:$0xff] %v5913
        %5946 = vst [vmem:[%s208 + $0x80] sm:$0xff] %v5914
        %5947 = vst [vmem:[%s208 + $0x88] sm:$0xff] %v5915
        %5948 = vst [vmem:[%s208 + $0x90] sm:$0xff] %v5916
        %5949 = vst [vmem:[%s208 + $0x98] sm:$0xff] %v5917
        %5950 = vst [vmem:[%s208 + $0xa0] sm:$0xff] %v5918
        %5951 = vst [vmem:[%s208 + $0xa8] sm:$0xff] %v5919
        %5952 = vst [vmem:[%s208 + $0xb0] sm:$0xff] %v5920
        %5953 = vst [vmem:[%s208 + $0xb8] sm:$0xff] %v5921
        %5954 = vst [vmem:[%s208 + $0xc0] sm:$0xff] %v5922
        %5955 = vst [vmem:[%s208 + $0xc8] sm:$0xff] %v5923
        %5956 = vst [vmem:[%s208 + $0xd0] sm:$0xff] %v5924
        %5957 = vst [vmem:[%s208 + $0xd8] sm:$0xff] %v5925
        %5958 = vst [vmem:[%s208 + $0xe0] sm:$0xff] %v5926
        %5959 = vst [vmem:[%s208 + $0xe8] sm:$0xff] %v5927
        %5960 = vst [vmem:[%s208 + $0xf0] sm:$0xff] %v5928
        %5961 = vst [vmem:[%s208 + $0xf8] sm:$0xff] %v5929
        %s5962 = sand.u32 %s97, 1
        %s5963 = scalar_lea.sflag [#allocation5], %s5962
        %s5964 = sand.u32 %s97, 1
        %s5965 = smul.addr %s5964, 256
        %s5966 = scalar_lea.vmem [#allocation8], %s5965
        // Predicated region
        $region41: #{tpu_custom_call.1} parent=31 // pred_check
          %p5967 = pneg %p107
        $region42: #{tpu_custom_call.1} parent=31 // pred_check_branch
          %5969 = sbr.rel (%p5967) target = $region44
        $region43: #{tpu_custom_call.1} parent=31 // pred_region
          %s5970 = smul.u32 4, %s21
          %5972 = vsyncadd %s5963, 0
          %s5973 = smul.addr %s5970, 8
          %s5974 = smul.addr %s5973, 8
          %s5975 = scalar_lea.hbm %s3, %s5974
          %s5976 = sshll.u32 %s5966, 4
          %s5977 = int_to_ptr.vmem [resolvable:$true] %s5976
          %s5978 = sshll.u32 %s5975, 4
          %s5979 = int_to_ptr.hbm [resolvable:$true] %s5978
          %5984 = dma.vmem_to_hbm [thread:$0]  %s5977, 4096, %s5979, %s5963, 128, 128, 8
        $region44: #{tpu_custom_call.1} parent=31 // pred_fallthru
          _
      $region32: #{tpu_custom_call.1} parent=5 // pred_fallthru
        _
      %p5985 = scmp.le.s32.totalorder 2, %s16
      // Predicated region
      $region45: #{tpu_custom_call.1} parent=5 // pred_check
        %p5986 = pneg %p5985
      $region46: #{tpu_custom_call.1} parent=5 // pred_check_branch
        %5988 = sbr.rel (%p5986) target = $region48
      $region47: #{tpu_custom_call.1} parent=5 // pred_region
        %s5989 = ssub.s32 %s16, 2
        // Predicated region
        $region49: #{tpu_custom_call.1} parent=47 // pred_check
          %p5990 = pneg %p113
        $region50: #{tpu_custom_call.1} parent=47 // pred_check_branch
          %5992 = sbr.rel (%p5990) target = $region52
        $region51: #{tpu_custom_call.1} parent=47 // pred_region
          %s5993 = sand.u32 %s98, 1
          %s5994 = scalar_lea.sflag [#allocation5], %s5993
          %s5995 = sand.u32 %s98, 1
          %s5996 = smul.addr %s5995, 256
          %s5997 = scalar_lea.vmem [#allocation8], %s5996
          %5999 = dma.done %s5994, 4096
        $region52: #{tpu_custom_call.1} parent=47 // pred_fallthru
          _
      $region48: #{tpu_custom_call.1} parent=5 // pred_fallthru
        _
    $region6: #{tpu_custom_call.1} parent=1 // loop_footer
      %s20 = sadd.s32 1, %s16
    $region7: #{tpu_custom_call.1} parent=1 // loop_footer_branch
      %15 = sbr.rel target = $region3
    $region8: #{tpu_custom_call.1} parent=1 // loop_exit
      _
    %6000 = vsyncpa [#allocation4], 1
    %s6001 = scalar_lea.sflag [#allocation4], 1
    %6002 = vsyncpa %s6001, 1
    %6003 = vsyncpa [#allocation7], 1
    %6004 = vsyncpa [#allocation5], 1
    %s6005 = scalar_lea.sflag [#allocation5], 1
    %6006 = vsyncpa %s6005, 1

</llo_original>
